<compile_context>
chip_gen: v7x
topology: tpu7x:2x2x1
jax: 0.10.0
libtpu: 0.0.40
codegen_flags: <defaults>
</compile_context>

<pallas_src>
import functools

import jax
import jax.numpy as jnp
from jax.experimental import pallas as pl
from jax.experimental.pallas import tpu as pltpu

_EPS = 1e-5  # nn.InstanceNorm3d default (affine=False)


def _round_up(x, m):
    return (x + m - 1) // m * m


# -------------------- Pallas kernel (both conv+IN layers fused) --------------------

def _resblock_kernel(x_ref, w1_ref, b1_ref, w2_ref, b2_ref, m_ref, o_ref, rhs_ref,
                     *, D, H, W):
    Hp, Wp = H + 2, W + 2
    HW = Hp * Wp
    C, S = o_ref.shape                       # S = round_up(Dp*Hp*Wp, 128)
    inv_cnt = 1.0 / float(D * H * W)

    m_int = m_ref[0:1, :]                    # (1, S) interior mask (float32)

    def shifted(slab, r):
        # shifted(slab, r)[:, p] == slab[:, (p + r) % S]; for interior output positions
        # p + r always stays inside the padded grid, so the wrap-around never pollutes
        # anything that survives the interior mask / border fill / final slice.
        sh = (-r) % S
        return slab if sh == 0 else pltpu.roll(slab, shift=sh, axis=1)

    def conv_norm(slab, w_ref_, b_ref_):
        # 3x3x3 conv as 3 stacked-K matmuls: (C, 9C) @ (9C, S), one per kd plane.
        # The (9C, S) operand is assembled in a VMEM scratch from 9 lane-rolled copies of
        # the slab (rolls on XLU co-issue with MXU pushes; no unaligned value slices).
        acc = jnp.broadcast_to(b_ref_[...], (C, S))    # bias-init accumulator (free pass)
        for kd in range(3):
            j = 0
            for kh in range(3):
                for kw in range(3):
                    r = (kd - 1) * HW + (kh - 1) * Wp + (kw - 1)
                    rhs_ref[j * C:(j + 1) * C, :] = shifted(slab, r)
                    j += 1
            acc = acc + jnp.dot(w_ref_[kd], rhs_ref[...],
                                preferred_element_type=jnp.float32)
        # one-pass instance-norm statistics over valid (interior) positions only
        am = acc * m_int
        s1 = jnp.sum(am, axis=1, keepdims=True)
        s2 = jnp.sum(am * acc, axis=1, keepdims=True)
        mean = s1 * inv_cnt
        var = jnp.maximum(s2 * inv_cnt - mean * mean, 0.0)
        return (acc - mean) * jax.lax.rsqrt(var + _EPS)

    # ---- layer 1: Conv3d + InstanceNorm3d + ReLU (output aligned to the padded grid)
    y1 = jnp.maximum(conv_norm(x_ref[...], w1_ref, b1_ref), 0.0)

    # ---- reflection-pad y1 in place on the padded grid via roll + border masks.
    #      Order matters (corners/edges): D planes first, then H rows, then W columns.
    for row, d in ((1, 2 * HW), (2, -2 * HW),
                   (3, 2 * Wp), (4, -2 * Wp),
                   (5, 2), (6, -2)):
        m = m_ref[row:row + 1, :]
        y1 = y1 + m * (shifted(y1, d) - y1)

    # ---- layer 2: Conv3d + InstanceNorm3d on the in-VMEM padded intermediate
    y2 = conv_norm(y1, w2_ref, b2_ref)

    # ---- residual add straight from the x block still resident in VMEM
    o_ref[...] = y2 + x_ref[...]


# -------------------- JAX wrapper --------------------

def residual_block(x, w1, b1, w2, b2):
    """ResidualBlock.forward(x) with x: (N, C, D, H, W) float32."""
    N, C, D, H, W = x.shape
    assert min(D, H, W) >= 2, "ReflectionPad3d(1) requires spatial dims >= 2"
    Dp, Hp, Wp = D + 2, H + 2, W + 2
    HW = Hp * Wp
    P = Dp * HW                               # flat padded-grid length
    S = _round_up(P, 128)                     # lane-dense slab / output length

    # reflection-padded x, flattened onto the padded grid, zero slack up to S lanes
    xp = jnp.pad(x, ((0, 0), (0, 0), (1, 1), (1, 1), (1, 1)), mode="reflect")
    x_slab = jnp.pad(xp.reshape(N, C, P), ((0, 0), (0, 0), (0, S - P)))

    # weights stacked along the contraction: (3, C_out, 9*C_in), K ordered (kh, kw, c_in)
    w1m = jnp.transpose(w1, (2, 0, 3, 4, 1)).reshape(3, C, 9 * C)
    w2m = jnp.transpose(w2, (2, 0, 3, 4, 1)).reshape(3, C, 9 * C)
    b1m = b1.reshape(C, 1)
    b2m = b2.reshape(C, 1)

    # interior mask + 6 reflection border masks over the flat padded grid (tiny, shared)
    idx = jnp.arange(S)
    d_ = idx // HW
    h_ = (idx // Wp) % Hp
    w_ = idx % Wp
    inb = idx < P
    m_int = (inb & (d_ >= 1) & (d_ <= D) & (h_ >= 1) & (h_ <= H)
             & (w_ >= 1) & (w_ <= W))
    masks = jnp.stack([m_int,
                       inb & (d_ == 0), inb & (d_ == Dp - 1),
                       inb & (h_ == 0), inb & (h_ == Hp - 1),
                       inb & (w_ == 0), inb & (w_ == Wp - 1)]).astype(jnp.float32)

    kernel = functools.partial(_resblock_kernel, D=D, H=H, W=W)

    # VMEM budget derived from the actual double-buffered blocks + the stacked-tap scratch
    block_bytes = 4 * (2 * 2 * C * S                          # x + out blocks, 2 buffers
                       + 2 * (2 * 27 * C * C + 2 * C + 7 * S)  # weights/biases/masks
                       + 9 * C * S)                            # (9C, S) scratch
    vmem_limit = int(min(96 * 1024 * 1024, max(16 * 1024 * 1024, 2 * block_bytes)))

    flops = N * 2 * 2 * 27 * C * C * S
    bytes_accessed = 4 * (x_slab.size + N * C * S + w1m.size + w2m.size
                          + b1m.size + b2m.size + masks.size)

    out_flat = pl.pallas_call(
        kernel,
        out_shape=jax.ShapeDtypeStruct((N, C, S), jnp.float32),
        grid_spec=pltpu.PrefetchScalarGridSpec(
            num_scalar_prefetch=0,
            grid=(N,),
            in_specs=[
                pl.BlockSpec((None, C, S), lambda n: (n, 0, 0)),     # per-sample x slab
                pl.BlockSpec((3, C, 9 * C), lambda n: (0, 0, 0)),    # w1 (shared)
                pl.BlockSpec((C, 1), lambda n: (0, 0)),              # b1
                pl.BlockSpec((3, C, 9 * C), lambda n: (0, 0, 0)),    # w2
                pl.BlockSpec((C, 1), lambda n: (0, 0)),              # b2
                pl.BlockSpec((7, S), lambda n: (0, 0)),              # masks (shared)
            ],
            out_specs=pl.BlockSpec((None, C, S), lambda n: (n, 0, 0)),
            scratch_shapes=[pltpu.VMEM((9 * C, S), jnp.float32)],    # stacked-tap operand
        ),
        compiler_params=pltpu.CompilerParams(
            dimension_semantics=("parallel",),
            vmem_limit_bytes=vmem_limit,
        ),
        cost_estimate=pl.CostEstimate(flops=flops, transcendentals=N * 2 * C,
                                      bytes_accessed=bytes_accessed),
    )(x_slab, w1m, b1m, w2m, b2m, masks)

    out = out_flat[:, :, :P].reshape(N, C, Dp, Hp, Wp)
    return out[:, :, 1:1 + D, 1:1 + H, 1:1 + W]


# -------------------- pure-JAX reference (for verification) --------------------

def _reference(x, w1, b1, w2, b2):
    def conv(y, w, b):
        yp = jnp.pad(y, ((0, 0), (0, 0), (1, 1), (1, 1), (1, 1)), mode="reflect")
        o = jax.lax.conv_general_dilated(
            yp, w, window_strides=(1, 1, 1), padding="VALID",
            dimension_numbers=("NCDHW", "OIDHW", "NCDHW"))
        return o + b[None, :, None, None, None]

    def inorm(y):
        m = y.mean(axis=(2, 3, 4), keepdims=True)
        v = ((y - m) ** 2).mean(axis=(2, 3, 4), keepdims=True)
        return (y - m) * jax.lax.rsqrt(v + _EPS)

    h = jax.nn.relu(inorm(conv(x, w1, b1)))
    return x + inorm(conv(h, w2, b2))


# -------------------- main --------------------

if __name__ == "__main__":
    N, C, D, H, W = 2, 4, 8, 8, 8          # in_features = C = 4

    key = jax.random.PRNGKey(0)
    kx, kw1, kb1, kw2, kb2 = jax.random.split(key, 5)

    x = jax.random.normal(kx, (N, C, D, H, W), dtype=jnp.float32)
    fan_in = C * 3 * 3 * 3
    w1 = jax.random.normal(kw1, (C, C, 3, 3, 3), dtype=jnp.float32) / jnp.sqrt(fan_in)
    b1 = jax.random.normal(kb1, (C,), dtype=jnp.float32) * 0.1
    w2 = jax.random.normal(kw2, (C, C, 3, 3, 3), dtype=jnp.float32) / jnp.sqrt(fan_in)
    b2 = jax.random.normal(kb2, (C,), dtype=jnp.float32) * 0.1

    out = jax.block_until_ready(residual_block(x, w1, b1, w2, b2))

    ref = jax.block_until_ready(_reference(x, w1, b1, w2, b2))
    assert out.shape == (N, C, D, H, W)
    err = float(jnp.max(jnp.abs(out - ref)))
    assert jnp.allclose(out, ref, atol=1e-3, rtol=1e-3), err

    print("KERNEL_OK")
</pallas_src>

<mosaic_0001>
module attributes {stable_mosaic.version = 11 : i64} {
  func.func @_resblock_kernel(%arg0: i32, %arg1: memref<1x4x1024xf32, #tpu.memory_space<vmem>>, %arg2: memref<3x4x36xf32, #tpu.memory_space<vmem>>, %arg3: memref<4x1xf32, #tpu.memory_space<vmem>>, %arg4: memref<3x4x36xf32, #tpu.memory_space<vmem>>, %arg5: memref<4x1xf32, #tpu.memory_space<vmem>>, %arg6: memref<7x1024xf32, #tpu.memory_space<vmem>>, %arg7: memref<1x4x1024xf32, #tpu.memory_space<vmem>>, %arg8: memref<36x1024xf32, #tpu.memory_space<vmem>>) attributes {dimension_semantics = [#tpu.dimension_semantics<parallel>], iteration_bounds = array<i64: 2>, scalar_prefetch = 0 : i64, scratch_operands = 1 : i64, tpu.core_type = #tpu.core_type<tc>, window_params = [{transform_indices = @transform_0, window_bounds = array<i64: 1, 4, 1024>}, {pipeline_mode = #tpu.pipeline_mode<synchronous>, transform_indices = @transform_1, window_bounds = array<i64: 3, 4, 36>}, {pipeline_mode = #tpu.pipeline_mode<synchronous>, transform_indices = @transform_2, window_bounds = array<i64: 4, 1>}, {pipeline_mode = #tpu.pipeline_mode<synchronous>, transform_indices = @transform_3, window_bounds = array<i64: 3, 4, 36>}, {pipeline_mode = #tpu.pipeline_mode<synchronous>, transform_indices = @transform_4, window_bounds = array<i64: 4, 1>}, {pipeline_mode = #tpu.pipeline_mode<synchronous>, transform_indices = @transform_5, window_bounds = array<i64: 7, 1024>}, {transform_indices = @transform_6, window_bounds = array<i64: 1, 4, 1024>}]} {
    %c0 = arith.constant 0 : index
    %c0_0 = arith.constant 0 : index
    %0 = vector.load %arg6[%c0, %c0_0] : memref<7x1024xf32, #tpu.memory_space<vmem>>, vector<1x1024xf32>
    %c0_1 = arith.constant 0 : index
    %c0_2 = arith.constant 0 : index
    %c0_3 = arith.constant 0 : index
    %1 = vector.load %arg1[%c0_1, %c0_2, %c0_3] : memref<1x4x1024xf32, #tpu.memory_space<vmem>>, vector<1x4x1024xf32>
    %2 = vector.shape_cast %1 : vector<1x4x1024xf32> to vector<4x1024xf32>
    %c0_4 = arith.constant 0 : index
    %c0_5 = arith.constant 0 : index
    %3 = vector.load %arg3[%c0_4, %c0_5] : memref<4x1xf32, #tpu.memory_space<vmem>>, vector<4x1xf32>
    %4 = vector.shape_cast %3 : vector<4x1xf32> to vector<4x1xf32>
    %5 = vector.broadcast %4 : vector<4x1xf32> to vector<4x1024xf32>
    %c111_i32 = arith.constant 111 : i32
    %6 = tpu.dynamic_rotate %2 by %c111_i32 dim 1 : vector<4x1024xf32>, i32 -> vector<4x1024xf32>
    %c0_6 = arith.constant 0 : index
    %c0_7 = arith.constant 0 : index
    %7 = vector.load %arg8[%c0_6, %c0_7] : memref<36x1024xf32, #tpu.memory_space<vmem>>, vector<4x1024xf32>
    tpu.vector_store %arg8[%c0_6, %c0_7], %6 {strides = array<i32>} : memref<36x1024xf32, #tpu.memory_space<vmem>>, vector<4x1024xf32>,
    %c110_i32 = arith.constant 110 : i32
    %8 = tpu.dynamic_rotate %2 by %c110_i32 dim 1 : vector<4x1024xf32>, i32 -> vector<4x1024xf32>
    %c4 = arith.constant 4 : index
    %c0_8 = arith.constant 0 : index
    %9 = vector.load %arg8[%c4, %c0_8] : memref<36x1024xf32, #tpu.memory_space<vmem>>, vector<4x1024xf32>
    tpu.vector_store %arg8[%c4, %c0_8], %8 {strides = array<i32>} : memref<36x1024xf32, #tpu.memory_space<vmem>>, vector<4x1024xf32>,
    %c109_i32 = arith.constant 109 : i32
    %10 = tpu.dynamic_rotate %2 by %c109_i32 dim 1 : vector<4x1024xf32>, i32 -> vector<4x1024xf32>
    %c8 = arith.constant 8 : index
    %c0_9 = arith.constant 0 : index
    %11 = vector.load %arg8[%c8, %c0_9] : memref<36x1024xf32, #tpu.memory_space<vmem>>, vector<4x1024xf32>
    tpu.vector_store %arg8[%c8, %c0_9], %10 {strides = array<i32>} : memref<36x1024xf32, #tpu.memory_space<vmem>>, vector<4x1024xf32>,
    %c101_i32 = arith.constant 101 : i32
    %12 = tpu.dynamic_rotate %2 by %c101_i32 dim 1 : vector<4x1024xf32>, i32 -> vector<4x1024xf32>
    %c12 = arith.constant 12 : index
    %c0_10 = arith.constant 0 : index
    %13 = vector.load %arg8[%c12, %c0_10] : memref<36x1024xf32, #tpu.memory_space<vmem>>, vector<4x1024xf32>
    tpu.vector_store %arg8[%c12, %c0_10], %12 {strides = array<i32>} : memref<36x1024xf32, #tpu.memory_space<vmem>>, vector<4x1024xf32>,
    %c100_i32 = arith.constant 100 : i32
    %14 = tpu.dynamic_rotate %2 by %c100_i32 dim 1 : vector<4x1024xf32>, i32 -> vector<4x1024xf32>
    %c16 = arith.constant 16 : index
    %c0_11 = arith.constant 0 : index
    %15 = vector.load %arg8[%c16, %c0_11] : memref<36x1024xf32, #tpu.memory_space<vmem>>, vector<4x1024xf32>
    tpu.vector_store %arg8[%c16, %c0_11], %14 {strides = array<i32>} : memref<36x1024xf32, #tpu.memory_space<vmem>>, vector<4x1024xf32>,
    %c99_i32 = arith.constant 99 : i32
    %16 = tpu.dynamic_rotate %2 by %c99_i32 dim 1 : vector<4x1024xf32>, i32 -> vector<4x1024xf32>
    %c20 = arith.constant 20 : index
    %c0_12 = arith.constant 0 : index
    %17 = vector.load %arg8[%c20, %c0_12] : memref<36x1024xf32, #tpu.memory_space<vmem>>, vector<4x1024xf32>
    tpu.vector_store %arg8[%c20, %c0_12], %16 {strides = array<i32>} : memref<36x1024xf32, #tpu.memory_space<vmem>>, vector<4x1024xf32>,
    %c91_i32 = arith.constant 91 : i32
    %18 = tpu.dynamic_rotate %2 by %c91_i32 dim 1 : vector<4x1024xf32>, i32 -> vector<4x1024xf32>
    %c24 = arith.constant 24 : index
    %c0_13 = arith.constant 0 : index
    %19 = vector.load %arg8[%c24, %c0_13] : memref<36x1024xf32, #tpu.memory_space<vmem>>, vector<4x1024xf32>
    tpu.vector_store %arg8[%c24, %c0_13], %18 {strides = array<i32>} : memref<36x1024xf32, #tpu.memory_space<vmem>>, vector<4x1024xf32>,
    %c90_i32 = arith.constant 90 : i32
    %20 = tpu.dynamic_rotate %2 by %c90_i32 dim 1 : vector<4x1024xf32>, i32 -> vector<4x1024xf32>
    %c28 = arith.constant 28 : index
    %c0_14 = arith.constant 0 : index
    %21 = vector.load %arg8[%c28, %c0_14] : memref<36x1024xf32, #tpu.memory_space<vmem>>, vector<4x1024xf32>
    tpu.vector_store %arg8[%c28, %c0_14], %20 {strides = array<i32>} : memref<36x1024xf32, #tpu.memory_space<vmem>>, vector<4x1024xf32>,
    %c89_i32 = arith.constant 89 : i32
    %22 = tpu.dynamic_rotate %2 by %c89_i32 dim 1 : vector<4x1024xf32>, i32 -> vector<4x1024xf32>
    %c32 = arith.constant 32 : index
    %c0_15 = arith.constant 0 : index
    %23 = vector.load %arg8[%c32, %c0_15] : memref<36x1024xf32, #tpu.memory_space<vmem>>, vector<4x1024xf32>
    tpu.vector_store %arg8[%c32, %c0_15], %22 {strides = array<i32>} : memref<36x1024xf32, #tpu.memory_space<vmem>>, vector<4x1024xf32>,
    %c0_16 = arith.constant 0 : index
    %c0_17 = arith.constant 0 : index
    %c0_18 = arith.constant 0 : index
    %24 = vector.load %arg2[%c0_16, %c0_17, %c0_18] : memref<3x4x36xf32, #tpu.memory_space<vmem>>, vector<1x4x36xf32>
    %25 = vector.shape_cast %24 : vector<1x4x36xf32> to vector<4x36xf32>
    %c0_19 = arith.constant 0 : index
    %c0_20 = arith.constant 0 : index
    %26 = vector.load %arg8[%c0_19, %c0_20] : memref<36x1024xf32, #tpu.memory_space<vmem>>, vector<36x1024xf32>
    %cst = arith.constant dense<0.000000e+00> : vector<4x1024xf32>
    %27 = tpu.matmul %25, %26, %cst {dimension_numbers = #tpu.dot_dimension_numbers<[1], [0], [0], [1], [0, 0, 1, 1], [], []>} : vector<4x36xf32>, vector<36x1024xf32>, vector<4x1024xf32> -> vector<4x1024xf32>
    %28 = arith.addf %5, %27 : vector<4x1024xf32>
    %c11_i32 = arith.constant 11 : i32
    %29 = tpu.dynamic_rotate %2 by %c11_i32 dim 1 : vector<4x1024xf32>, i32 -> vector<4x1024xf32>
    %c0_21 = arith.constant 0 : index
    %c0_22 = arith.constant 0 : index
    %30 = vector.load %arg8[%c0_21, %c0_22] : memref<36x1024xf32, #tpu.memory_space<vmem>>, vector<4x1024xf32>
    tpu.vector_store %arg8[%c0_21, %c0_22], %29 {strides = array<i32>} : memref<36x1024xf32, #tpu.memory_space<vmem>>, vector<4x1024xf32>,
    %c10_i32 = arith.constant 10 : i32
    %31 = tpu.dynamic_rotate %2 by %c10_i32 dim 1 : vector<4x1024xf32>, i32 -> vector<4x1024xf32>
    %c4_23 = arith.constant 4 : index
    %c0_24 = arith.constant 0 : index
    %32 = vector.load %arg8[%c4_23, %c0_24] : memref<36x1024xf32, #tpu.memory_space<vmem>>, vector<4x1024xf32>
    tpu.vector_store %arg8[%c4_23, %c0_24], %31 {strides = array<i32>} : memref<36x1024xf32, #tpu.memory_space<vmem>>, vector<4x1024xf32>,
    %c9_i32 = arith.constant 9 : i32
    %33 = tpu.dynamic_rotate %2 by %c9_i32 dim 1 : vector<4x1024xf32>, i32 -> vector<4x1024xf32>
    %c8_25 = arith.constant 8 : index
    %c0_26 = arith.constant 0 : index
    %34 = vector.load %arg8[%c8_25, %c0_26] : memref<36x1024xf32, #tpu.memory_space<vmem>>, vector<4x1024xf32>
    tpu.vector_store %arg8[%c8_25, %c0_26], %33 {strides = array<i32>} : memref<36x1024xf32, #tpu.memory_space<vmem>>, vector<4x1024xf32>,
    %c1_i32 = arith.constant 1 : i32
    %35 = tpu.dynamic_rotate %2 by %c1_i32 dim 1 : vector<4x1024xf32>, i32 -> vector<4x1024xf32>
    %c12_27 = arith.constant 12 : index
    %c0_28 = arith.constant 0 : index
    %36 = vector.load %arg8[%c12_27, %c0_28] : memref<36x1024xf32, #tpu.memory_space<vmem>>, vector<4x1024xf32>
    tpu.vector_store %arg8[%c12_27, %c0_28], %35 {strides = array<i32>} : memref<36x1024xf32, #tpu.memory_space<vmem>>, vector<4x1024xf32>,
    %c16_29 = arith.constant 16 : index
    %c0_30 = arith.constant 0 : index
    %37 = vector.load %arg8[%c16_29, %c0_30] : memref<36x1024xf32, #tpu.memory_space<vmem>>, vector<4x1024xf32>
    tpu.vector_store %arg8[%c16_29, %c0_30], %2 {strides = array<i32>} : memref<36x1024xf32, #tpu.memory_space<vmem>>, vector<4x1024xf32>,
    %c1023_i32 = arith.constant 1023 : i32
    %38 = tpu.dynamic_rotate %2 by %c1023_i32 dim 1 : vector<4x1024xf32>, i32 -> vector<4x1024xf32>
    %c20_31 = arith.constant 20 : index
    %c0_32 = arith.constant 0 : index
    %39 = vector.load %arg8[%c20_31, %c0_32] : memref<36x1024xf32, #tpu.memory_space<vmem>>, vector<4x1024xf32>
    tpu.vector_store %arg8[%c20_31, %c0_32], %38 {strides = array<i32>} : memref<36x1024xf32, #tpu.memory_space<vmem>>, vector<4x1024xf32>,
    %c1015_i32 = arith.constant 1015 : i32
    %40 = tpu.dynamic_rotate %2 by %c1015_i32 dim 1 : vector<4x1024xf32>, i32 -> vector<4x1024xf32>
    %c24_33 = arith.constant 24 : index
    %c0_34 = arith.constant 0 : index
    %41 = vector.load %arg8[%c24_33, %c0_34] : memref<36x1024xf32, #tpu.memory_space<vmem>>, vector<4x1024xf32>
    tpu.vector_store %arg8[%c24_33, %c0_34], %40 {strides = array<i32>} : memref<36x1024xf32, #tpu.memory_space<vmem>>, vector<4x1024xf32>,
    %c1014_i32 = arith.constant 1014 : i32
    %42 = tpu.dynamic_rotate %2 by %c1014_i32 dim 1 : vector<4x1024xf32>, i32 -> vector<4x1024xf32>
    %c28_35 = arith.constant 28 : index
    %c0_36 = arith.constant 0 : index
    %43 = vector.load %arg8[%c28_35, %c0_36] : memref<36x1024xf32, #tpu.memory_space<vmem>>, vector<4x1024xf32>
    tpu.vector_store %arg8[%c28_35, %c0_36], %42 {strides = array<i32>} : memref<36x1024xf32, #tpu.memory_space<vmem>>, vector<4x1024xf32>,
    %c1013_i32 = arith.constant 1013 : i32
    %44 = tpu.dynamic_rotate %2 by %c1013_i32 dim 1 : vector<4x1024xf32>, i32 -> vector<4x1024xf32>
    %c32_37 = arith.constant 32 : index
    %c0_38 = arith.constant 0 : index
    %45 = vector.load %arg8[%c32_37, %c0_38] : memref<36x1024xf32, #tpu.memory_space<vmem>>, vector<4x1024xf32>
    tpu.vector_store %arg8[%c32_37, %c0_38], %44 {strides = array<i32>} : memref<36x1024xf32, #tpu.memory_space<vmem>>, vector<4x1024xf32>,
    %c1 = arith.constant 1 : index
    %c0_39 = arith.constant 0 : index
    %c0_40 = arith.constant 0 : index
    %46 = vector.load %arg2[%c1, %c0_39, %c0_40] : memref<3x4x36xf32, #tpu.memory_space<vmem>>, vector<1x4x36xf32>
    %47 = vector.shape_cast %46 : vector<1x4x36xf32> to vector<4x36xf32>
    %c0_41 = arith.constant 0 : index
    %c0_42 = arith.constant 0 : index
    %48 = vector.load %arg8[%c0_41, %c0_42] : memref<36x1024xf32, #tpu.memory_space<vmem>>, vector<36x1024xf32>
    %cst_43 = arith.constant dense<0.000000e+00> : vector<4x1024xf32>
    %49 = tpu.matmul %47, %48, %cst_43 {dimension_numbers = #tpu.dot_dimension_numbers<[1], [0], [0], [1], [0, 0, 1, 1], [], []>} : vector<4x36xf32>, vector<36x1024xf32>, vector<4x1024xf32> -> vector<4x1024xf32>
    %50 = arith.addf %28, %49 : vector<4x1024xf32>
    %c935_i32 = arith.constant 935 : i32
    %51 = tpu.dynamic_rotate %2 by %c935_i32 dim 1 : vector<4x1024xf32>, i32 -> vector<4x1024xf32>
    %c0_44 = arith.constant 0 : index
    %c0_45 = arith.constant 0 : index
    %52 = vector.load %arg8[%c0_44, %c0_45] : memref<36x1024xf32, #tpu.memory_space<vmem>>, vector<4x1024xf32>
    tpu.vector_store %arg8[%c0_44, %c0_45], %51 {strides = array<i32>} : memref<36x1024xf32, #tpu.memory_space<vmem>>, vector<4x1024xf32>,
    %c934_i32 = arith.constant 934 : i32
    %53 = tpu.dynamic_rotate %2 by %c934_i32 dim 1 : vector<4x1024xf32>, i32 -> vector<4x1024xf32>
    %c4_46 = arith.constant 4 : index
    %c0_47 = arith.constant 0 : index
    %54 = vector.load %arg8[%c4_46, %c0_47] : memref<36x1024xf32, #tpu.memory_space<vmem>>, vector<4x1024xf32>
    tpu.vector_store %arg8[%c4_46, %c0_47], %53 {strides = array<i32>} : memref<36x1024xf32, #tpu.memory_space<vmem>>, vector<4x1024xf32>,
    %c933_i32 = arith.constant 933 : i32
    %55 = tpu.dynamic_rotate %2 by %c933_i32 dim 1 : vector<4x1024xf32>, i32 -> vector<4x1024xf32>
    %c8_48 = arith.constant 8 : index
    %c0_49 = arith.constant 0 : index
    %56 = vector.load %arg8[%c8_48, %c0_49] : memref<36x1024xf32, #tpu.memory_space<vmem>>, vector<4x1024xf32>
    tpu.vector_store %arg8[%c8_48, %c0_49], %55 {strides = array<i32>} : memref<36x1024xf32, #tpu.memory_space<vmem>>, vector<4x1024xf32>,
    %c925_i32 = arith.constant 925 : i32
    %57 = tpu.dynamic_rotate %2 by %c925_i32 dim 1 : vector<4x1024xf32>, i32 -> vector<4x1024xf32>
    %c12_50 = arith.constant 12 : index
    %c0_51 = arith.constant 0 : index
    %58 = vector.load %arg8[%c12_50, %c0_51] : memref<36x1024xf32, #tpu.memory_space<vmem>>, vector<4x1024xf32>
    tpu.vector_store %arg8[%c12_50, %c0_51], %57 {strides = array<i32>} : memref<36x1024xf32, #tpu.memory_space<vmem>>, vector<4x1024xf32>,
    %c924_i32 = arith.constant 924 : i32
    %59 = tpu.dynamic_rotate %2 by %c924_i32 dim 1 : vector<4x1024xf32>, i32 -> vector<4x1024xf32>
    %c16_52 = arith.constant 16 : index
    %c0_53 = arith.constant 0 : index
    %60 = vector.load %arg8[%c16_52, %c0_53] : memref<36x1024xf32, #tpu.memory_space<vmem>>, vector<4x1024xf32>
    tpu.vector_store %arg8[%c16_52, %c0_53], %59 {strides = array<i32>} : memref<36x1024xf32, #tpu.memory_space<vmem>>, vector<4x1024xf32>,
    %c923_i32 = arith.constant 923 : i32
    %61 = tpu.dynamic_rotate %2 by %c923_i32 dim 1 : vector<4x1024xf32>, i32 -> vector<4x1024xf32>
    %c20_54 = arith.constant 20 : index
    %c0_55 = arith.constant 0 : index
    %62 = vector.load %arg8[%c20_54, %c0_55] : memref<36x1024xf32, #tpu.memory_space<vmem>>, vector<4x1024xf32>
    tpu.vector_store %arg8[%c20_54, %c0_55], %61 {strides = array<i32>} : memref<36x1024xf32, #tpu.memory_space<vmem>>, vector<4x1024xf32>,
    %c915_i32 = arith.constant 915 : i32
    %63 = tpu.dynamic_rotate %2 by %c915_i32 dim 1 : vector<4x1024xf32>, i32 -> vector<4x1024xf32>
    %c24_56 = arith.constant 24 : index
    %c0_57 = arith.constant 0 : index
    %64 = vector.load %arg8[%c24_56, %c0_57] : memref<36x1024xf32, #tpu.memory_space<vmem>>, vector<4x1024xf32>
    tpu.vector_store %arg8[%c24_56, %c0_57], %63 {strides = array<i32>} : memref<36x1024xf32, #tpu.memory_space<vmem>>, vector<4x1024xf32>,
    %c914_i32 = arith.constant 914 : i32
    %65 = tpu.dynamic_rotate %2 by %c914_i32 dim 1 : vector<4x1024xf32>, i32 -> vector<4x1024xf32>
    %c28_58 = arith.constant 28 : index
    %c0_59 = arith.constant 0 : index
    %66 = vector.load %arg8[%c28_58, %c0_59] : memref<36x1024xf32, #tpu.memory_space<vmem>>, vector<4x1024xf32>
    tpu.vector_store %arg8[%c28_58, %c0_59], %65 {strides = array<i32>} : memref<36x1024xf32, #tpu.memory_space<vmem>>, vector<4x1024xf32>,
    %c913_i32 = arith.constant 913 : i32
    %67 = tpu.dynamic_rotate %2 by %c913_i32 dim 1 : vector<4x1024xf32>, i32 -> vector<4x1024xf32>
    %c32_60 = arith.constant 32 : index
    %c0_61 = arith.constant 0 : index
    %68 = vector.load %arg8[%c32_60, %c0_61] : memref<36x1024xf32, #tpu.memory_space<vmem>>, vector<4x1024xf32>
    tpu.vector_store %arg8[%c32_60, %c0_61], %67 {strides = array<i32>} : memref<36x1024xf32, #tpu.memory_space<vmem>>, vector<4x1024xf32>,
    %c2 = arith.constant 2 : index
    %c0_62 = arith.constant 0 : index
    %c0_63 = arith.constant 0 : index
    %69 = vector.load %arg2[%c2, %c0_62, %c0_63] : memref<3x4x36xf32, #tpu.memory_space<vmem>>, vector<1x4x36xf32>
    %70 = vector.shape_cast %69 : vector<1x4x36xf32> to vector<4x36xf32>
    %c0_64 = arith.constant 0 : index
    %c0_65 = arith.constant 0 : index
    %71 = vector.load %arg8[%c0_64, %c0_65] : memref<36x1024xf32, #tpu.memory_space<vmem>>, vector<36x1024xf32>
    %cst_66 = arith.constant dense<0.000000e+00> : vector<4x1024xf32>
    %72 = tpu.matmul %70, %71, %cst_66 {dimension_numbers = #tpu.dot_dimension_numbers<[1], [0], [0], [1], [0, 0, 1, 1], [], []>} : vector<4x36xf32>, vector<36x1024xf32>, vector<4x1024xf32> -> vector<4x1024xf32>
    %73 = arith.addf %50, %72 : vector<4x1024xf32>
    %74 = vector.broadcast %0 : vector<1x1024xf32> to vector<4x1024xf32>
    %75 = arith.mulf %73, %74 : vector<4x1024xf32>
    %cst_67 = arith.constant dense<0.000000e+00> : vector<4xf32>
    %76 = vector.multi_reduction <add>, %75, %cst_67 [1] : vector<4x1024xf32> to vector<4xf32>
    %77 = vector.shape_cast %76 : vector<4xf32> to vector<4x1xf32>
    %78 = arith.mulf %75, %73 : vector<4x1024xf32>
    %cst_68 = arith.constant dense<0.000000e+00> : vector<4xf32>
    %79 = vector.multi_reduction <add>, %78, %cst_68 [1] : vector<4x1024xf32> to vector<4xf32>
    %80 = vector.shape_cast %79 : vector<4xf32> to vector<4x1xf32>
    %cst_69 = arith.constant 0.001953125 : f32
    %81 = vector.broadcast %cst_69 : f32 to vector<4x1xf32>
    %82 = arith.mulf %77, %81 : vector<4x1xf32>
    %cst_70 = arith.constant 0.001953125 : f32
    %83 = vector.broadcast %cst_70 : f32 to vector<4x1xf32>
    %84 = arith.mulf %80, %83 : vector<4x1xf32>
    %85 = arith.mulf %82, %82 : vector<4x1xf32>
    %86 = arith.subf %84, %85 : vector<4x1xf32>
    %cst_71 = arith.constant 0.000000e+00 : f32
    %87 = vector.broadcast %cst_71 : f32 to vector<4x1xf32>
    %88 = arith.maximumf %86, %87 : vector<4x1xf32>
    %89 = vector.broadcast %82 : vector<4x1xf32> to vector<4x1024xf32>
    %90 = arith.subf %73, %89 : vector<4x1024xf32>
    %cst_72 = arith.constant 9.99999974E-6 : f32
    %91 = vector.broadcast %cst_72 : f32 to vector<4x1xf32>
    %92 = arith.addf %88, %91 : vector<4x1xf32>
    %93 = math.rsqrt %92 : vector<4x1xf32>
    %94 = vector.broadcast %93 : vector<4x1xf32> to vector<4x1024xf32>
    %95 = arith.mulf %90, %94 : vector<4x1024xf32>
    %cst_73 = arith.constant 0.000000e+00 : f32
    %96 = vector.broadcast %cst_73 : f32 to vector<4x1024xf32>
    %97 = arith.maximumf %95, %96 : vector<4x1024xf32>
    %c1_74 = arith.constant 1 : index
    %c0_75 = arith.constant 0 : index
    %98 = vector.load %arg6[%c1_74, %c0_75] : memref<7x1024xf32, #tpu.memory_space<vmem>>, vector<1x1024xf32>
    %c824_i32 = arith.constant 824 : i32
    %99 = tpu.dynamic_rotate %97 by %c824_i32 dim 1 : vector<4x1024xf32>, i32 -> vector<4x1024xf32>
    %100 = arith.subf %99, %97 : vector<4x1024xf32>
    %101 = vector.broadcast %98 : vector<1x1024xf32> to vector<4x1024xf32>
    %102 = arith.mulf %101, %100 : vector<4x1024xf32>
    %103 = arith.addf %97, %102 : vector<4x1024xf32>
    %c2_76 = arith.constant 2 : index
    %c0_77 = arith.constant 0 : index
    %104 = vector.load %arg6[%c2_76, %c0_77] : memref<7x1024xf32, #tpu.memory_space<vmem>>, vector<1x1024xf32>
    %c200_i32 = arith.constant 200 : i32
    %105 = tpu.dynamic_rotate %103 by %c200_i32 dim 1 : vector<4x1024xf32>, i32 -> vector<4x1024xf32>
    %106 = arith.subf %105, %103 : vector<4x1024xf32>
    %107 = vector.broadcast %104 : vector<1x1024xf32> to vector<4x1024xf32>
    %108 = arith.mulf %107, %106 : vector<4x1024xf32>
    %109 = arith.addf %103, %108 : vector<4x1024xf32>
    %c3 = arith.constant 3 : index
    %c0_78 = arith.constant 0 : index
    %110 = vector.load %arg6[%c3, %c0_78] : memref<7x1024xf32, #tpu.memory_space<vmem>>, vector<1x1024xf32>
    %c1004_i32 = arith.constant 1004 : i32
    %111 = tpu.dynamic_rotate %109 by %c1004_i32 dim 1 : vector<4x1024xf32>, i32 -> vector<4x1024xf32>
    %112 = arith.subf %111, %109 : vector<4x1024xf32>
    %113 = vector.broadcast %110 : vector<1x1024xf32> to vector<4x1024xf32>
    %114 = arith.mulf %113, %112 : vector<4x1024xf32>
    %115 = arith.addf %109, %114 : vector<4x1024xf32>
    %c4_79 = arith.constant 4 : index
    %c0_80 = arith.constant 0 : index
    %116 = vector.load %arg6[%c4_79, %c0_80] : memref<7x1024xf32, #tpu.memory_space<vmem>>, vector<1x1024xf32>
    %c20_i32 = arith.constant 20 : i32
    %117 = tpu.dynamic_rotate %115 by %c20_i32 dim 1 : vector<4x1024xf32>, i32 -> vector<4x1024xf32>
    %118 = arith.subf %117, %115 : vector<4x1024xf32>
    %119 = vector.broadcast %116 : vector<1x1024xf32> to vector<4x1024xf32>
    %120 = arith.mulf %119, %118 : vector<4x1024xf32>
    %121 = arith.addf %115, %120 : vector<4x1024xf32>
    %c5 = arith.constant 5 : index
    %c0_81 = arith.constant 0 : index
    %122 = vector.load %arg6[%c5, %c0_81] : memref<7x1024xf32, #tpu.memory_space<vmem>>, vector<1x1024xf32>
    %c1022_i32 = arith.constant 1022 : i32
    %123 = tpu.dynamic_rotate %121 by %c1022_i32 dim 1 : vector<4x1024xf32>, i32 -> vector<4x1024xf32>
    %124 = arith.subf %123, %121 : vector<4x1024xf32>
    %125 = vector.broadcast %122 : vector<1x1024xf32> to vector<4x1024xf32>
    %126 = arith.mulf %125, %124 : vector<4x1024xf32>
    %127 = arith.addf %121, %126 : vector<4x1024xf32>
    %c6 = arith.constant 6 : index
    %c0_82 = arith.constant 0 : index
    %128 = vector.load %arg6[%c6, %c0_82] : memref<7x1024xf32, #tpu.memory_space<vmem>>, vector<1x1024xf32>
    %c2_i32 = arith.constant 2 : i32
    %129 = tpu.dynamic_rotate %127 by %c2_i32 dim 1 : vector<4x1024xf32>, i32 -> vector<4x1024xf32>
    %130 = arith.subf %129, %127 : vector<4x1024xf32>
    %131 = vector.broadcast %128 : vector<1x1024xf32> to vector<4x1024xf32>
    %132 = arith.mulf %131, %130 : vector<4x1024xf32>
    %133 = arith.addf %127, %132 : vector<4x1024xf32>
    %c0_83 = arith.constant 0 : index
    %c0_84 = arith.constant 0 : index
    %134 = vector.load %arg5[%c0_83, %c0_84] : memref<4x1xf32, #tpu.memory_space<vmem>>, vector<4x1xf32>
    %135 = vector.shape_cast %134 : vector<4x1xf32> to vector<4x1xf32>
    %136 = vector.broadcast %135 : vector<4x1xf32> to vector<4x1024xf32>
    %c111_i32_85 = arith.constant 111 : i32
    %137 = tpu.dynamic_rotate %133 by %c111_i32_85 dim 1 : vector<4x1024xf32>, i32 -> vector<4x1024xf32>
    %c0_86 = arith.constant 0 : index
    %c0_87 = arith.constant 0 : index
    %138 = vector.load %arg8[%c0_86, %c0_87] : memref<36x1024xf32, #tpu.memory_space<vmem>>, vector<4x1024xf32>
    tpu.vector_store %arg8[%c0_86, %c0_87], %137 {strides = array<i32>} : memref<36x1024xf32, #tpu.memory_space<vmem>>, vector<4x1024xf32>,
    %c110_i32_88 = arith.constant 110 : i32
    %139 = tpu.dynamic_rotate %133 by %c110_i32_88 dim 1 : vector<4x1024xf32>, i32 -> vector<4x1024xf32>
    %c4_89 = arith.constant 4 : index
    %c0_90 = arith.constant 0 : index
    %140 = vector.load %arg8[%c4_89, %c0_90] : memref<36x1024xf32, #tpu.memory_space<vmem>>, vector<4x1024xf32>
    tpu.vector_store %arg8[%c4_89, %c0_90], %139 {strides = array<i32>} : memref<36x1024xf32, #tpu.memory_space<vmem>>, vector<4x1024xf32>,
    %c109_i32_91 = arith.constant 109 : i32
    %141 = tpu.dynamic_rotate %133 by %c109_i32_91 dim 1 : vector<4x1024xf32>, i32 -> vector<4x1024xf32>
    %c8_92 = arith.constant 8 : index
    %c0_93 = arith.constant 0 : index
    %142 = vector.load %arg8[%c8_92, %c0_93] : memref<36x1024xf32, #tpu.memory_space<vmem>>, vector<4x1024xf32>
    tpu.vector_store %arg8[%c8_92, %c0_93], %141 {strides = array<i32>} : memref<36x1024xf32, #tpu.memory_space<vmem>>, vector<4x1024xf32>,
    %c101_i32_94 = arith.constant 101 : i32
    %143 = tpu.dynamic_rotate %133 by %c101_i32_94 dim 1 : vector<4x1024xf32>, i32 -> vector<4x1024xf32>
    %c12_95 = arith.constant 12 : index
    %c0_96 = arith.constant 0 : index
    %144 = vector.load %arg8[%c12_95, %c0_96] : memref<36x1024xf32, #tpu.memory_space<vmem>>, vector<4x1024xf32>
    tpu.vector_store %arg8[%c12_95, %c0_96], %143 {strides = array<i32>} : memref<36x1024xf32, #tpu.memory_space<vmem>>, vector<4x1024xf32>,
    %c100_i32_97 = arith.constant 100 : i32
    %145 = tpu.dynamic_rotate %133 by %c100_i32_97 dim 1 : vector<4x1024xf32>, i32 -> vector<4x1024xf32>
    %c16_98 = arith.constant 16 : index
    %c0_99 = arith.constant 0 : index
    %146 = vector.load %arg8[%c16_98, %c0_99] : memref<36x1024xf32, #tpu.memory_space<vmem>>, vector<4x1024xf32>
    tpu.vector_store %arg8[%c16_98, %c0_99], %145 {strides = array<i32>} : memref<36x1024xf32, #tpu.memory_space<vmem>>, vector<4x1024xf32>,
    %c99_i32_100 = arith.constant 99 : i32
    %147 = tpu.dynamic_rotate %133 by %c99_i32_100 dim 1 : vector<4x1024xf32>, i32 -> vector<4x1024xf32>
    %c20_101 = arith.constant 20 : index
    %c0_102 = arith.constant 0 : index
    %148 = vector.load %arg8[%c20_101, %c0_102] : memref<36x1024xf32, #tpu.memory_space<vmem>>, vector<4x1024xf32>
    tpu.vector_store %arg8[%c20_101, %c0_102], %147 {strides = array<i32>} : memref<36x1024xf32, #tpu.memory_space<vmem>>, vector<4x1024xf32>,
    %c91_i32_103 = arith.constant 91 : i32
    %149 = tpu.dynamic_rotate %133 by %c91_i32_103 dim 1 : vector<4x1024xf32>, i32 -> vector<4x1024xf32>
    %c24_104 = arith.constant 24 : index
    %c0_105 = arith.constant 0 : index
    %150 = vector.load %arg8[%c24_104, %c0_105] : memref<36x1024xf32, #tpu.memory_space<vmem>>, vector<4x1024xf32>
    tpu.vector_store %arg8[%c24_104, %c0_105], %149 {strides = array<i32>} : memref<36x1024xf32, #tpu.memory_space<vmem>>, vector<4x1024xf32>,
    %c90_i32_106 = arith.constant 90 : i32
    %151 = tpu.dynamic_rotate %133 by %c90_i32_106 dim 1 : vector<4x1024xf32>, i32 -> vector<4x1024xf32>
    %c28_107 = arith.constant 28 : index
    %c0_108 = arith.constant 0 : index
    %152 = vector.load %arg8[%c28_107, %c0_108] : memref<36x1024xf32, #tpu.memory_space<vmem>>, vector<4x1024xf32>
    tpu.vector_store %arg8[%c28_107, %c0_108], %151 {strides = array<i32>} : memref<36x1024xf32, #tpu.memory_space<vmem>>, vector<4x1024xf32>,
    %c89_i32_109 = arith.constant 89 : i32
    %153 = tpu.dynamic_rotate %133 by %c89_i32_109 dim 1 : vector<4x1024xf32>, i32 -> vector<4x1024xf32>
    %c32_110 = arith.constant 32 : index
    %c0_111 = arith.constant 0 : index
    %154 = vector.load %arg8[%c32_110, %c0_111] : memref<36x1024xf32, #tpu.memory_space<vmem>>, vector<4x1024xf32>
    tpu.vector_store %arg8[%c32_110, %c0_111], %153 {strides = array<i32>} : memref<36x1024xf32, #tpu.memory_space<vmem>>, vector<4x1024xf32>,
    %c0_112 = arith.constant 0 : index
    %c0_113 = arith.constant 0 : index
    %c0_114 = arith.constant 0 : index
    %155 = vector.load %arg4[%c0_112, %c0_113, %c0_114] : memref<3x4x36xf32, #tpu.memory_space<vmem>>, vector<1x4x36xf32>
    %156 = vector.shape_cast %155 : vector<1x4x36xf32> to vector<4x36xf32>
    %c0_115 = arith.constant 0 : index
    %c0_116 = arith.constant 0 : index
    %157 = vector.load %arg8[%c0_115, %c0_116] : memref<36x1024xf32, #tpu.memory_space<vmem>>, vector<36x1024xf32>
    %cst_117 = arith.constant dense<0.000000e+00> : vector<4x1024xf32>
    %158 = tpu.matmul %156, %157, %cst_117 {dimension_numbers = #tpu.dot_dimension_numbers<[1], [0], [0], [1], [0, 0, 1, 1], [], []>} : vector<4x36xf32>, vector<36x1024xf32>, vector<4x1024xf32> -> vector<4x1024xf32>
    %159 = arith.addf %136, %158 : vector<4x1024xf32>
    %c11_i32_118 = arith.constant 11 : i32
    %160 = tpu.dynamic_rotate %133 by %c11_i32_118 dim 1 : vector<4x1024xf32>, i32 -> vector<4x1024xf32>
    %c0_119 = arith.constant 0 : index
    %c0_120 = arith.constant 0 : index
    %161 = vector.load %arg8[%c0_119, %c0_120] : memref<36x1024xf32, #tpu.memory_space<vmem>>, vector<4x1024xf32>
    tpu.vector_store %arg8[%c0_119, %c0_120], %160 {strides = array<i32>} : memref<36x1024xf32, #tpu.memory_space<vmem>>, vector<4x1024xf32>,
    %c10_i32_121 = arith.constant 10 : i32
    %162 = tpu.dynamic_rotate %133 by %c10_i32_121 dim 1 : vector<4x1024xf32>, i32 -> vector<4x1024xf32>
    %c4_122 = arith.constant 4 : index
    %c0_123 = arith.constant 0 : index
    %163 = vector.load %arg8[%c4_122, %c0_123] : memref<36x1024xf32, #tpu.memory_space<vmem>>, vector<4x1024xf32>
    tpu.vector_store %arg8[%c4_122, %c0_123], %162 {strides = array<i32>} : memref<36x1024xf32, #tpu.memory_space<vmem>>, vector<4x1024xf32>,
    %c9_i32_124 = arith.constant 9 : i32
    %164 = tpu.dynamic_rotate %133 by %c9_i32_124 dim 1 : vector<4x1024xf32>, i32 -> vector<4x1024xf32>
    %c8_125 = arith.constant 8 : index
    %c0_126 = arith.constant 0 : index
    %165 = vector.load %arg8[%c8_125, %c0_126] : memref<36x1024xf32, #tpu.memory_space<vmem>>, vector<4x1024xf32>
    tpu.vector_store %arg8[%c8_125, %c0_126], %164 {strides = array<i32>} : memref<36x1024xf32, #tpu.memory_space<vmem>>, vector<4x1024xf32>,
    %c1_i32_127 = arith.constant 1 : i32
    %166 = tpu.dynamic_rotate %133 by %c1_i32_127 dim 1 : vector<4x1024xf32>, i32 -> vector<4x1024xf32>
    %c12_128 = arith.constant 12 : index
    %c0_129 = arith.constant 0 : index
    %167 = vector.load %arg8[%c12_128, %c0_129] : memref<36x1024xf32, #tpu.memory_space<vmem>>, vector<4x1024xf32>
    tpu.vector_store %arg8[%c12_128, %c0_129], %166 {strides = array<i32>} : memref<36x1024xf32, #tpu.memory_space<vmem>>, vector<4x1024xf32>,
    %c16_130 = arith.constant 16 : index
    %c0_131 = arith.constant 0 : index
    %168 = vector.load %arg8[%c16_130, %c0_131] : memref<36x1024xf32, #tpu.memory_space<vmem>>, vector<4x1024xf32>
    tpu.vector_store %arg8[%c16_130, %c0_131], %133 {strides = array<i32>} : memref<36x1024xf32, #tpu.memory_space<vmem>>, vector<4x1024xf32>,
    %c1023_i32_132 = arith.constant 1023 : i32
    %169 = tpu.dynamic_rotate %133 by %c1023_i32_132 dim 1 : vector<4x1024xf32>, i32 -> vector<4x1024xf32>
    %c20_133 = arith.constant 20 : index
    %c0_134 = arith.constant 0 : index
    %170 = vector.load %arg8[%c20_133, %c0_134] : memref<36x1024xf32, #tpu.memory_space<vmem>>, vector<4x1024xf32>
    tpu.vector_store %arg8[%c20_133, %c0_134], %169 {strides = array<i32>} : memref<36x1024xf32, #tpu.memory_space<vmem>>, vector<4x1024xf32>,
    %c1015_i32_135 = arith.constant 1015 : i32
    %171 = tpu.dynamic_rotate %133 by %c1015_i32_135 dim 1 : vector<4x1024xf32>, i32 -> vector<4x1024xf32>
    %c24_136 = arith.constant 24 : index
    %c0_137 = arith.constant 0 : index
    %172 = vector.load %arg8[%c24_136, %c0_137] : memref<36x1024xf32, #tpu.memory_space<vmem>>, vector<4x1024xf32>
    tpu.vector_store %arg8[%c24_136, %c0_137], %171 {strides = array<i32>} : memref<36x1024xf32, #tpu.memory_space<vmem>>, vector<4x1024xf32>,
    %c1014_i32_138 = arith.constant 1014 : i32
    %173 = tpu.dynamic_rotate %133 by %c1014_i32_138 dim 1 : vector<4x1024xf32>, i32 -> vector<4x1024xf32>
    %c28_139 = arith.constant 28 : index
    %c0_140 = arith.constant 0 : index
    %174 = vector.load %arg8[%c28_139, %c0_140] : memref<36x1024xf32, #tpu.memory_space<vmem>>, vector<4x1024xf32>
    tpu.vector_store %arg8[%c28_139, %c0_140], %173 {strides = array<i32>} : memref<36x1024xf32, #tpu.memory_space<vmem>>, vector<4x1024xf32>,
    %c1013_i32_141 = arith.constant 1013 : i32
    %175 = tpu.dynamic_rotate %133 by %c1013_i32_141 dim 1 : vector<4x1024xf32>, i32 -> vector<4x1024xf32>
    %c32_142 = arith.constant 32 : index
    %c0_143 = arith.constant 0 : index
    %176 = vector.load %arg8[%c32_142, %c0_143] : memref<36x1024xf32, #tpu.memory_space<vmem>>, vector<4x1024xf32>
    tpu.vector_store %arg8[%c32_142, %c0_143], %175 {strides = array<i32>} : memref<36x1024xf32, #tpu.memory_space<vmem>>, vector<4x1024xf32>,
    %c1_144 = arith.constant 1 : index
    %c0_145 = arith.constant 0 : index
    %c0_146 = arith.constant 0 : index
    %177 = vector.load %arg4[%c1_144, %c0_145, %c0_146] : memref<3x4x36xf32, #tpu.memory_space<vmem>>, vector<1x4x36xf32>
    %178 = vector.shape_cast %177 : vector<1x4x36xf32> to vector<4x36xf32>
    %c0_147 = arith.constant 0 : index
    %c0_148 = arith.constant 0 : index
    %179 = vector.load %arg8[%c0_147, %c0_148] : memref<36x1024xf32, #tpu.memory_space<vmem>>, vector<36x1024xf32>
    %cst_149 = arith.constant dense<0.000000e+00> : vector<4x1024xf32>
    %180 = tpu.matmul %178, %179, %cst_149 {dimension_numbers = #tpu.dot_dimension_numbers<[1], [0], [0], [1], [0, 0, 1, 1], [], []>} : vector<4x36xf32>, vector<36x1024xf32>, vector<4x1024xf32> -> vector<4x1024xf32>
    %181 = arith.addf %159, %180 : vector<4x1024xf32>
    %c935_i32_150 = arith.constant 935 : i32
    %182 = tpu.dynamic_rotate %133 by %c935_i32_150 dim 1 : vector<4x1024xf32>, i32 -> vector<4x1024xf32>
    %c0_151 = arith.constant 0 : index
    %c0_152 = arith.constant 0 : index
    %183 = vector.load %arg8[%c0_151, %c0_152] : memref<36x1024xf32, #tpu.memory_space<vmem>>, vector<4x1024xf32>
    tpu.vector_store %arg8[%c0_151, %c0_152], %182 {strides = array<i32>} : memref<36x1024xf32, #tpu.memory_space<vmem>>, vector<4x1024xf32>,
    %c934_i32_153 = arith.constant 934 : i32
    %184 = tpu.dynamic_rotate %133 by %c934_i32_153 dim 1 : vector<4x1024xf32>, i32 -> vector<4x1024xf32>
    %c4_154 = arith.constant 4 : index
    %c0_155 = arith.constant 0 : index
    %185 = vector.load %arg8[%c4_154, %c0_155] : memref<36x1024xf32, #tpu.memory_space<vmem>>, vector<4x1024xf32>
    tpu.vector_store %arg8[%c4_154, %c0_155], %184 {strides = array<i32>} : memref<36x1024xf32, #tpu.memory_space<vmem>>, vector<4x1024xf32>,
    %c933_i32_156 = arith.constant 933 : i32
    %186 = tpu.dynamic_rotate %133 by %c933_i32_156 dim 1 : vector<4x1024xf32>, i32 -> vector<4x1024xf32>
    %c8_157 = arith.constant 8 : index
    %c0_158 = arith.constant 0 : index
    %187 = vector.load %arg8[%c8_157, %c0_158] : memref<36x1024xf32, #tpu.memory_space<vmem>>, vector<4x1024xf32>
    tpu.vector_store %arg8[%c8_157, %c0_158], %186 {strides = array<i32>} : memref<36x1024xf32, #tpu.memory_space<vmem>>, vector<4x1024xf32>,
    %c925_i32_159 = arith.constant 925 : i32
    %188 = tpu.dynamic_rotate %133 by %c925_i32_159 dim 1 : vector<4x1024xf32>, i32 -> vector<4x1024xf32>
    %c12_160 = arith.constant 12 : index
    %c0_161 = arith.constant 0 : index
    %189 = vector.load %arg8[%c12_160, %c0_161] : memref<36x1024xf32, #tpu.memory_space<vmem>>, vector<4x1024xf32>
    tpu.vector_store %arg8[%c12_160, %c0_161], %188 {strides = array<i32>} : memref<36x1024xf32, #tpu.memory_space<vmem>>, vector<4x1024xf32>,
    %c924_i32_162 = arith.constant 924 : i32
    %190 = tpu.dynamic_rotate %133 by %c924_i32_162 dim 1 : vector<4x1024xf32>, i32 -> vector<4x1024xf32>
    %c16_163 = arith.constant 16 : index
    %c0_164 = arith.constant 0 : index
    %191 = vector.load %arg8[%c16_163, %c0_164] : memref<36x1024xf32, #tpu.memory_space<vmem>>, vector<4x1024xf32>
    tpu.vector_store %arg8[%c16_163, %c0_164], %190 {strides = array<i32>} : memref<36x1024xf32, #tpu.memory_space<vmem>>, vector<4x1024xf32>,
    %c923_i32_165 = arith.constant 923 : i32
    %192 = tpu.dynamic_rotate %133 by %c923_i32_165 dim 1 : vector<4x1024xf32>, i32 -> vector<4x1024xf32>
    %c20_166 = arith.constant 20 : index
    %c0_167 = arith.constant 0 : index
    %193 = vector.load %arg8[%c20_166, %c0_167] : memref<36x1024xf32, #tpu.memory_space<vmem>>, vector<4x1024xf32>
    tpu.vector_store %arg8[%c20_166, %c0_167], %192 {strides = array<i32>} : memref<36x1024xf32, #tpu.memory_space<vmem>>, vector<4x1024xf32>,
    %c915_i32_168 = arith.constant 915 : i32
    %194 = tpu.dynamic_rotate %133 by %c915_i32_168 dim 1 : vector<4x1024xf32>, i32 -> vector<4x1024xf32>
    %c24_169 = arith.constant 24 : index
    %c0_170 = arith.constant 0 : index
    %195 = vector.load %arg8[%c24_169, %c0_170] : memref<36x1024xf32, #tpu.memory_space<vmem>>, vector<4x1024xf32>
    tpu.vector_store %arg8[%c24_169, %c0_170], %194 {strides = array<i32>} : memref<36x1024xf32, #tpu.memory_space<vmem>>, vector<4x1024xf32>,
    %c914_i32_171 = arith.constant 914 : i32
    %196 = tpu.dynamic_rotate %133 by %c914_i32_171 dim 1 : vector<4x1024xf32>, i32 -> vector<4x1024xf32>
    %c28_172 = arith.constant 28 : index
    %c0_173 = arith.constant 0 : index
    %197 = vector.load %arg8[%c28_172, %c0_173] : memref<36x1024xf32, #tpu.memory_space<vmem>>, vector<4x1024xf32>
    tpu.vector_store %arg8[%c28_172, %c0_173], %196 {strides = array<i32>} : memref<36x1024xf32, #tpu.memory_space<vmem>>, vector<4x1024xf32>,
    %c913_i32_174 = arith.constant 913 : i32
    %198 = tpu.dynamic_rotate %133 by %c913_i32_174 dim 1 : vector<4x1024xf32>, i32 -> vector<4x1024xf32>
    %c32_175 = arith.constant 32 : index
    %c0_176 = arith.constant 0 : index
    %199 = vector.load %arg8[%c32_175, %c0_176] : memref<36x1024xf32, #tpu.memory_space<vmem>>, vector<4x1024xf32>
    tpu.vector_store %arg8[%c32_175, %c0_176], %198 {strides = array<i32>} : memref<36x1024xf32, #tpu.memory_space<vmem>>, vector<4x1024xf32>,
    %c2_177 = arith.constant 2 : index
    %c0_178 = arith.constant 0 : index
    %c0_179 = arith.constant 0 : index
    %200 = vector.load %arg4[%c2_177, %c0_178, %c0_179] : memref<3x4x36xf32, #tpu.memory_space<vmem>>, vector<1x4x36xf32>
    %201 = vector.shape_cast %200 : vector<1x4x36xf32> to vector<4x36xf32>
    %c0_180 = arith.constant 0 : index
    %c0_181 = arith.constant 0 : index
    %202 = vector.load %arg8[%c0_180, %c0_181] : memref<36x1024xf32, #tpu.memory_space<vmem>>, vector<36x1024xf32>
    %cst_182 = arith.constant dense<0.000000e+00> : vector<4x1024xf32>
    %203 = tpu.matmul %201, %202, %cst_182 {dimension_numbers = #tpu.dot_dimension_numbers<[1], [0], [0], [1], [0, 0, 1, 1], [], []>} : vector<4x36xf32>, vector<36x1024xf32>, vector<4x1024xf32> -> vector<4x1024xf32>
    %204 = arith.addf %181, %203 : vector<4x1024xf32>
    %205 = vector.broadcast %0 : vector<1x1024xf32> to vector<4x1024xf32>
    %206 = arith.mulf %204, %205 : vector<4x1024xf32>
    %cst_183 = arith.constant dense<0.000000e+00> : vector<4xf32>
    %207 = vector.multi_reduction <add>, %206, %cst_183 [1] : vector<4x1024xf32> to vector<4xf32>
    %208 = vector.shape_cast %207 : vector<4xf32> to vector<4x1xf32>
    %209 = arith.mulf %206, %204 : vector<4x1024xf32>
    %cst_184 = arith.constant dense<0.000000e+00> : vector<4xf32>
    %210 = vector.multi_reduction <add>, %209, %cst_184 [1] : vector<4x1024xf32> to vector<4xf32>
    %211 = vector.shape_cast %210 : vector<4xf32> to vector<4x1xf32>
    %cst_185 = arith.constant 0.001953125 : f32
    %212 = vector.broadcast %cst_185 : f32 to vector<4x1xf32>
    %213 = arith.mulf %208, %212 : vector<4x1xf32>
    %cst_186 = arith.constant 0.001953125 : f32
    %214 = vector.broadcast %cst_186 : f32 to vector<4x1xf32>
    %215 = arith.mulf %211, %214 : vector<4x1xf32>
    %216 = arith.mulf %213, %213 : vector<4x1xf32>
    %217 = arith.subf %215, %216 : vector<4x1xf32>
    %cst_187 = arith.constant 0.000000e+00 : f32
    %218 = vector.broadcast %cst_187 : f32 to vector<4x1xf32>
    %219 = arith.maximumf %217, %218 : vector<4x1xf32>
    %220 = vector.broadcast %213 : vector<4x1xf32> to vector<4x1024xf32>
    %221 = arith.subf %204, %220 : vector<4x1024xf32>
    %cst_188 = arith.constant 9.99999974E-6 : f32
    %222 = vector.broadcast %cst_188 : f32 to vector<4x1xf32>
    %223 = arith.addf %219, %222 : vector<4x1xf32>
    %224 = math.rsqrt %223 : vector<4x1xf32>
    %225 = vector.broadcast %224 : vector<4x1xf32> to vector<4x1024xf32>
    %226 = arith.mulf %221, %225 : vector<4x1024xf32>
    %c0_189 = arith.constant 0 : index
    %c0_190 = arith.constant 0 : index
    %c0_191 = arith.constant 0 : index
    %227 = vector.load %arg1[%c0_189, %c0_190, %c0_191] : memref<1x4x1024xf32, #tpu.memory_space<vmem>>, vector<1x4x1024xf32>
    %228 = vector.shape_cast %227 : vector<1x4x1024xf32> to vector<4x1024xf32>
    %229 = arith.addf %226, %228 : vector<4x1024xf32>
    %c0_192 = arith.constant 0 : index
    %c0_193 = arith.constant 0 : index
    %c0_194 = arith.constant 0 : index
    %230 = vector.load %arg7[%c0_192, %c0_193, %c0_194] : memref<1x4x1024xf32, #tpu.memory_space<vmem>>, vector<1x4x1024xf32>
    %231 = vector.shape_cast %230 : vector<1x4x1024xf32> to vector<4x1024xf32>
    %232 = vector.shape_cast %229 : vector<4x1024xf32> to vector<1x4x1024xf32>
    tpu.vector_store %arg7[%c0_192, %c0_193, %c0_194], %232 {strides = array<i32>} : memref<1x4x1024xf32, #tpu.memory_space<vmem>>, vector<1x4x1024xf32>,
    return
  }
  func.func @transform_0(%arg0: i32) -> (i32, i32, i32) {
    %c0_i32 = arith.constant 0 : i32
    %c0_i32_0 = arith.constant 0 : i32
    %c0_i32_1 = arith.constant 0 : i32
    return %arg0, %c0_i32, %c0_i32_0 : i32, i32, i32
  }
  func.func @transform_1(%arg0: i32) -> (i32, i32, i32) {
    %c0_i32 = arith.constant 0 : i32
    %c0_i32_0 = arith.constant 0 : i32
    %c0_i32_1 = arith.constant 0 : i32
    %c0_i32_2 = arith.constant 0 : i32
    return %c0_i32, %c0_i32_0, %c0_i32_1 : i32, i32, i32
  }
  func.func @transform_2(%arg0: i32) -> (i32, i32) {
    %c0_i32 = arith.constant 0 : i32
    %c0_i32_0 = arith.constant 0 : i32
    %c0_i32_1 = arith.constant 0 : i32
    return %c0_i32, %c0_i32_0 : i32, i32
  }
  func.func @transform_3(%arg0: i32) -> (i32, i32, i32) {
    %c0_i32 = arith.constant 0 : i32
    %c0_i32_0 = arith.constant 0 : i32
    %c0_i32_1 = arith.constant 0 : i32
    %c0_i32_2 = arith.constant 0 : i32
    return %c0_i32, %c0_i32_0, %c0_i32_1 : i32, i32, i32
  }
  func.func @transform_4(%arg0: i32) -> (i32, i32) {
    %c0_i32 = arith.constant 0 : i32
    %c0_i32_0 = arith.constant 0 : i32
    %c0_i32_1 = arith.constant 0 : i32
    return %c0_i32, %c0_i32_0 : i32, i32
  }
  func.func @transform_5(%arg0: i32) -> (i32, i32) {
    %c0_i32 = arith.constant 0 : i32
    %c0_i32_0 = arith.constant 0 : i32
    %c0_i32_1 = arith.constant 0 : i32
    return %c0_i32, %c0_i32_0 : i32, i32
  }
  func.func @transform_6(%arg0: i32) -> (i32, i32, i32) {
    %c0_i32 = arith.constant 0 : i32
    %c0_i32_0 = arith.constant 0 : i32
    %c0_i32_1 = arith.constant 0 : i32
    return %arg0, %c0_i32, %c0_i32_0 : i32, i32, i32
  }
}

</mosaic_0001>

<llo_original>
// kernel: tpu_custom_call.1
$region0: #{tpu_custom_call.1}
  #allocation0 [shape = 'u32[]', space=smem, size = 0x4, offset = 0x4, fixed_abs, tag = 'smem constant byte address 0x4 - core index']
  #allocation1 [shape = 'u32[144,128]{1,0:T(1,128)}', space=vmem, size = 0x12000, scoped, tag = 'internal scratch']
  #allocation2 [shape = 'f32[36,1024]{1,0:T(8,128)}', space=vmem, size = 0x28000, scoped, tag = 'scratch operand']
  %s0 = inlined_call_operand.hbm [shape: f32[2,4,1024], index: 0, kind: input, shape index: {}]
  %s1 = inlined_call_operand.vmem [shape: f32[3,4,36], index: 1, kind: input, shape index: {}]
  %s2 = inlined_call_operand.vmem [shape: f32[4,1], index: 2, kind: input, shape index: {}]
  %s3 = inlined_call_operand.hbm [shape: f32[3,4,36], index: 3, kind: input, shape index: {}]
  %s4 = inlined_call_operand.vmem [shape: f32[4,1], index: 4, kind: input, shape index: {}]
  %s5 = inlined_call_operand.hbm [shape: f32[7,1024], index: 5, kind: input, shape index: {}]
  %s6 = inlined_call_operand.hbm [shape: f32[2,4,1024], index: 6, kind: output, shape index: {}]
  %s7 = sld [smem:[#allocation0]]
  $region69: #{tpu_custom_call.1} parent=0
    _
  %s9 = ssub.s32 1, %s7
  %s10 = scalar_select 0, %s9, %s7
  $region1: #{tpu_custom_call.1} parent=0
    #allocation3 [shape = 'u8[32768]{0}', space=vmem, size = 0x8000, scoped, tag = 'input window, operand 0']
    #allocation4 [shape = 's32[2]{0}', space=sflag, size = 0x8, scoped, tag = 'scoped memory for tpu_custom_call.1']
    #allocation5 [shape = 's32[2]{0}', space=sflag, size = 0x8, scoped, tag = 'scoped memory for tpu_custom_call.1']
    #allocation6 [shape = 'u8[6144]{0}', space=vmem, size = 0x1800, scoped, tag = 'input window, operand 3, single buffered']
    #allocation7 [shape = 's32[1]{0}', space=sflag, size = 0x4, scoped, tag = 'scoped memory for tpu_custom_call.1']
    #allocation8 [shape = 'u8[32768]{0}', space=vmem, size = 0x8000, scoped, tag = 'input window, operand 5, single buffered']
    #allocation9 [shape = 'u8[32768]{0}', space=vmem, size = 0x8000, scoped, tag = 'output window, operand 0']
    %11 = vsyncpa [#allocation4], 0
    %s12 = scalar_lea.sflag [#allocation4], 1
    %13 = vsyncpa %s12, 0
    %14 = vsyncpa [#allocation7], 0
    %15 = vsyncpa [#allocation5], 0
    %s16 = scalar_lea.sflag [#allocation5], 1
    %17 = vsyncpa %s16, 0
    loop: start=0, step=1, limit=4
    $region2: #{tpu_custom_call.1} parent=1 // loop_pre_header
      _
    $region3: #{tpu_custom_call.1} parent=1 // loop_header
      %s19 = sphi 0, %s23
      %p20 = scmp.ge.s32.totalorder %s19, 4
      %s29 = sphi 0, %s31
      %s32 = sphi 0, %s29
      %s33 = sphi 0, %s32
      %s49 = sphi 0, %s33
      %s53 = sphi 0, %s53
      %s55 = sphi 0, %s53
      %s56 = sphi 0, %s55
      %s70 = sphi 0, %s56
      %s74 = sphi 0, %s74
      %s76 = sphi 0, %s74
      %s77 = sphi 0, %s76
      %s91 = sphi 0, %s77
      %s95 = sphi 0, %s95
      %s97 = sphi 0, %s95
      %s98 = sphi 0, %s97
      %s112 = sphi 0, %s98
      %s116 = sphi 0, %s116
      %s118 = sphi 0, %s116
      %s119 = sphi 0, %s118
      %s133 = sphi 0, %s119
      %s137 = sphi 0, %s137
      %s139 = sphi 0, %s137
      %s140 = sphi 0, %s139
      %s154 = sphi 0, %s140
      %s160 = sphi 0, %s162
      %s163 = sphi 0, %s160
      %s164 = sphi 0, %s163
      %s180 = sphi 0, %s164
    $region4: #{tpu_custom_call.1} parent=1 // loop_header_branch
      %22 = sbr.rel (%p20) target = $region8
    $region5: #{tpu_custom_call.1} parent=1 // loop_body
      %s24 = ssub.s32 %s19, 1
      %s25 = ssub.s32 %s19, 2
      %s26 = sadd.s32 %s19, 1
      %s27 = ssub.s32 %s19, %s26
      %p28 = scmp.eq.s32.totalorder %s27, 0
      %s30 = sadd.s32 %s29, 1
      %s31 = scalar_select %p28, %s29, %s30
      %p34 = pneg %p28
      %p35 = scmp.eq.s32.totalorder %s19, 1
      %p36 = por %p34, %p35
      %p37 = scmp.ne.s32.totalorder %s29, %s32
      %p38 = scmp.eq.s32.totalorder %s19, 0
      %p39 = por %p37, %p38
      %p40 = scmp.ne.s32.totalorder %s29, %s32
      %p41 = scmp.eq.s32.totalorder %s24, 1
      %p42 = por %p40, %p41
      %p43 = scmp.ne.s32.totalorder %s32, %s33
      %p44 = scmp.eq.s32.totalorder %s24, 0
      %p45 = por %p43, %p44
      %p46 = scmp.ne.s32.totalorder %s32, %s33
      %p47 = scmp.eq.s32.totalorder %s25, 1
      %p48 = por %p46, %p47
      %p50 = scmp.ne.s32.totalorder %s33, %s49
      %p51 = scmp.eq.s32.totalorder %s25, 0
      %p52 = por %p50, %p51
      %s54 = sadd.s32 %s53, 1
      %p57 = scmp.eq.s32.totalorder %s19, 1
      %p58 = scmp.ne.s32.totalorder %s53, %s55
      %p59 = scmp.eq.s32.totalorder %s19, 0
      %p60 = por %p58, %p59
      %p61 = scmp.ne.s32.totalorder %s53, %s55
      %p62 = scmp.eq.s32.totalorder %s24, 1
      %p63 = por %p61, %p62
      %p64 = scmp.ne.s32.totalorder %s55, %s56
      %p65 = scmp.eq.s32.totalorder %s24, 0
      %p66 = por %p64, %p65
      %p67 = scmp.ne.s32.totalorder %s55, %s56
      %p68 = scmp.eq.s32.totalorder %s25, 1
      %p69 = por %p67, %p68
      %p71 = scmp.ne.s32.totalorder %s56, %s70
      %p72 = scmp.eq.s32.totalorder %s25, 0
      %p73 = por %p71, %p72
      %s75 = sadd.s32 %s74, 1
      %p78 = scmp.eq.s32.totalorder %s19, 1
      %p79 = scmp.ne.s32.totalorder %s74, %s76
      %p80 = scmp.eq.s32.totalorder %s19, 0
      %p81 = por %p79, %p80
      %p82 = scmp.ne.s32.totalorder %s74, %s76
      %p83 = scmp.eq.s32.totalorder %s24, 1
      %p84 = por %p82, %p83
      %p85 = scmp.ne.s32.totalorder %s76, %s77
      %p86 = scmp.eq.s32.totalorder %s24, 0
      %p87 = por %p85, %p86
      %p88 = scmp.ne.s32.totalorder %s76, %s77
      %p89 = scmp.eq.s32.totalorder %s25, 1
      %p90 = por %p88, %p89
      %p92 = scmp.ne.s32.totalorder %s77, %s91
      %p93 = scmp.eq.s32.totalorder %s25, 0
      %p94 = por %p92, %p93
      %s96 = sadd.s32 %s95, 1
      %p99 = scmp.eq.s32.totalorder %s19, 1
      %p100 = scmp.ne.s32.totalorder %s95, %s97
      %p101 = scmp.eq.s32.totalorder %s19, 0
      %p102 = por %p100, %p101
      %p103 = scmp.ne.s32.totalorder %s95, %s97
      %p104 = scmp.eq.s32.totalorder %s24, 1
      %p105 = por %p103, %p104
      %p106 = scmp.ne.s32.totalorder %s97, %s98
      %p107 = scmp.eq.s32.totalorder %s24, 0
      %p108 = por %p106, %p107
      %p109 = scmp.ne.s32.totalorder %s97, %s98
      %p110 = scmp.eq.s32.totalorder %s25, 1
      %p111 = por %p109, %p110
      %p113 = scmp.ne.s32.totalorder %s98, %s112
      %p114 = scmp.eq.s32.totalorder %s25, 0
      %p115 = por %p113, %p114
      %s117 = sadd.s32 %s116, 1
      %p120 = scmp.eq.s32.totalorder %s19, 1
      %p121 = scmp.ne.s32.totalorder %s116, %s118
      %p122 = scmp.eq.s32.totalorder %s19, 0
      %p123 = por %p121, %p122
      %p124 = scmp.ne.s32.totalorder %s116, %s118
      %p125 = scmp.eq.s32.totalorder %s24, 1
      %p126 = por %p124, %p125
      %p127 = scmp.ne.s32.totalorder %s118, %s119
      %p128 = scmp.eq.s32.totalorder %s24, 0
      %p129 = por %p127, %p128
      %p130 = scmp.ne.s32.totalorder %s118, %s119
      %p131 = scmp.eq.s32.totalorder %s25, 1
      %p132 = por %p130, %p131
      %p134 = scmp.ne.s32.totalorder %s119, %s133
      %p135 = scmp.eq.s32.totalorder %s25, 0
      %p136 = por %p134, %p135
      %s138 = sadd.s32 %s137, 1
      %p141 = scmp.eq.s32.totalorder %s19, 1
      %p142 = scmp.ne.s32.totalorder %s137, %s139
      %p143 = scmp.eq.s32.totalorder %s19, 0
      %p144 = por %p142, %p143
      %p145 = scmp.ne.s32.totalorder %s137, %s139
      %p146 = scmp.eq.s32.totalorder %s24, 1
      %p147 = por %p145, %p146
      %p148 = scmp.ne.s32.totalorder %s139, %s140
      %p149 = scmp.eq.s32.totalorder %s24, 0
      %p150 = por %p148, %p149
      %p151 = scmp.ne.s32.totalorder %s139, %s140
      %p152 = scmp.eq.s32.totalorder %s25, 1
      %p153 = por %p151, %p152
      %p155 = scmp.ne.s32.totalorder %s140, %s154
      %p156 = scmp.eq.s32.totalorder %s25, 0
      %p157 = por %p155, %p156
      %s158 = ssub.s32 %s19, %s26
      %p159 = scmp.eq.s32.totalorder %s158, 0
      %s161 = sadd.s32 %s160, 1
      %s162 = scalar_select %p159, %s160, %s161
      %p165 = pneg %p159
      %p166 = scmp.eq.s32.totalorder %s19, 1
      %p167 = por %p165, %p166
      %p168 = scmp.ne.s32.totalorder %s160, %s163
      %p169 = scmp.eq.s32.totalorder %s19, 0
      %p170 = por %p168, %p169
      %p171 = scmp.ne.s32.totalorder %s160, %s163
      %p172 = scmp.eq.s32.totalorder %s24, 1
      %p173 = por %p171, %p172
      %p174 = scmp.ne.s32.totalorder %s163, %s164
      %p175 = scmp.eq.s32.totalorder %s24, 0
      %p176 = por %p174, %p175
      %p177 = scmp.ne.s32.totalorder %s163, %s164
      %p178 = scmp.eq.s32.totalorder %s25, 1
      %p179 = por %p177, %p178
      %p181 = scmp.ne.s32.totalorder %s164, %s180
      %p182 = scmp.eq.s32.totalorder %s25, 0
      %p183 = por %p181, %p182
      %p184 = scmp.le.s32.totalorder 1, %s19
      %p185 = scmp.lt.s32.totalorder %s19, 3
      %p186 = pnand %p184, %p185
      %p187 = pneg %p186
      // Predicated region
      $region9: #{tpu_custom_call.1} parent=5 // pred_check
        _
      $region10: #{tpu_custom_call.1} parent=5 // pred_check_branch
        %189 = sbr.rel (%p186) target = $region12
      $region11: #{tpu_custom_call.1} parent=5 // pred_region
        %s190 = ssub.s32 %s19, 1
        // Predicated region
        $region13: #{tpu_custom_call.1} parent=11 // pred_check
          %p191 = pneg %p66
        $region14: #{tpu_custom_call.1} parent=11 // pred_check_branch
          %193 = sbr.rel (%p191) target = $region16
        $region15: #{tpu_custom_call.1} parent=11 // pred_region
          _
        $region16: #{tpu_custom_call.1} parent=11 // pred_fallthru
          _
        // Predicated region
        $region17: #{tpu_custom_call.1} parent=11 // pred_check
          %p194 = pneg %p87
        $region18: #{tpu_custom_call.1} parent=11 // pred_check_branch
          %196 = sbr.rel (%p194) target = $region20
        $region19: #{tpu_custom_call.1} parent=11 // pred_region
          _
        $region20: #{tpu_custom_call.1} parent=11 // pred_fallthru
          _
        // Predicated region
        $region21: #{tpu_custom_call.1} parent=11 // pred_check
          %p197 = pneg %p108
        $region22: #{tpu_custom_call.1} parent=11 // pred_check_branch
          %199 = sbr.rel (%p197) target = $region24
        $region23: #{tpu_custom_call.1} parent=11 // pred_region
          %s201 = ssub.s32 192, 192
          %202 = vsyncadd [#allocation7], %s201
          %s203 = sshll.u32 [#allocation6], 4
          %s204 = int_to_ptr.vmem [resolvable:$true] %s203
          %209 = dma.hbm_to_vmem [thread:$0]  %s3, 192, %s204, [#allocation7], 64, 64, 4
        $region24: #{tpu_custom_call.1} parent=11 // pred_fallthru
          _
        // Predicated region
        $region25: #{tpu_custom_call.1} parent=11 // pred_check
          %p210 = pneg %p129
        $region26: #{tpu_custom_call.1} parent=11 // pred_check_branch
          %212 = sbr.rel (%p210) target = $region28
        $region27: #{tpu_custom_call.1} parent=11 // pred_region
          _
        $region28: #{tpu_custom_call.1} parent=11 // pred_fallthru
          _
        // Predicated region
        $region29: #{tpu_custom_call.1} parent=11 // pred_check
          %p213 = pneg %p150
        $region30: #{tpu_custom_call.1} parent=11 // pred_check_branch
          %215 = sbr.rel (%p213) target = $region32
        $region31: #{tpu_custom_call.1} parent=11 // pred_region
          %s217 = ssub.s32 1024, 1024
          %218 = vsyncadd [#allocation7], %s217
          %s220 = sshll.u32 [#allocation8], 4
          %s221 = int_to_ptr.vmem [resolvable:$true] %s220
          %223 = dma.hbm_to_vmem [thread:$0]  %s5, 1024, %s221, [#allocation7]
        $region32: #{tpu_custom_call.1} parent=11 // pred_fallthru
          _
      $region12: #{tpu_custom_call.1} parent=5 // pred_fallthru
        _
      %p224 = scmp.lt.s32.totalorder %s19, 2
      // Predicated region
      $region33: #{tpu_custom_call.1} parent=5 // pred_check
        %p225 = pneg %p224
      $region34: #{tpu_custom_call.1} parent=5 // pred_check_branch
        %227 = sbr.rel (%p225) target = $region36
      $region35: #{tpu_custom_call.1} parent=5 // pred_region
        // Predicated region
        $region37: #{tpu_custom_call.1} parent=35 // pred_check
          %p228 = pneg %p39
        $region38: #{tpu_custom_call.1} parent=35 // pred_check_branch
          %230 = sbr.rel (%p228) target = $region40
        $region39: #{tpu_custom_call.1} parent=35 // pred_region
          %s231 = sand.u32 %s29, 1
          %s232 = scalar_lea.sflag [#allocation4], %s231
          %s233 = sand.u32 %s29, 1
          %s234 = smul.addr %s233, 32
          %s235 = scalar_lea.vmem [#allocation3], %s234
          %s237 = ssub.s32 512, 512
          %238 = vsyncadd %s232, %s237
          %s239 = smul.addr %s19, 8
          %s240 = smul.addr %s239, 64
          %s241 = scalar_lea.hbm %s0, %s240
          %s243 = sshll.u32 %s235, 4
          %s244 = int_to_ptr.vmem [resolvable:$true] %s243
          %246 = dma.hbm_to_vmem [thread:$0]  %s241, 512, %s244, %s232
        $region40: #{tpu_custom_call.1} parent=35 // pred_fallthru
          _
      $region36: #{tpu_custom_call.1} parent=5 // pred_fallthru
        _
      %p247 = scmp.le.s32.totalorder 1, %s19
      %p248 = scmp.lt.s32.totalorder %s19, 3
      %p249 = pnand %p247, %p248
      %p250 = pneg %p249
      // Predicated region
      $region41: #{tpu_custom_call.1} parent=5 // pred_check
        _
      $region42: #{tpu_custom_call.1} parent=5 // pred_check_branch
        %252 = sbr.rel (%p249) target = $region44
      $region43: #{tpu_custom_call.1} parent=5 // pred_region
        %s253 = ssub.s32 %s19, 1
        %s254 = sand.u32 %s32, 1
        %s255 = scalar_lea.sflag [#allocation4], %s254
        %s256 = sand.u32 %s32, 1
        %s257 = smul.addr %s256, 32
        %s258 = scalar_lea.vmem [#allocation3], %s257
        // Predicated region
        $region45: #{tpu_custom_call.1} parent=43 // pred_check
          %p259 = pneg %p45
        $region46: #{tpu_custom_call.1} parent=43 // pred_check_branch
          %261 = sbr.rel (%p259) target = $region48
        $region47: #{tpu_custom_call.1} parent=43 // pred_region
          %262 = dma.done %s255, 512
        $region48: #{tpu_custom_call.1} parent=43 // pred_fallthru
          _
        // Predicated region
        $region49: #{tpu_custom_call.1} parent=43 // pred_check
          %p263 = pneg %p108
        $region50: #{tpu_custom_call.1} parent=43 // pred_check_branch
          %265 = sbr.rel (%p263) target = $region52
        $region51: #{tpu_custom_call.1} parent=43 // pred_region
          %266 = dma.done [#allocation7], 192
        $region52: #{tpu_custom_call.1} parent=43 // pred_fallthru
          _
        // Predicated region
        $region53: #{tpu_custom_call.1} parent=43 // pred_check
          %p267 = pneg %p150
        $region54: #{tpu_custom_call.1} parent=43 // pred_check_branch
          %269 = sbr.rel (%p267) target = $region56
        $region55: #{tpu_custom_call.1} parent=43 // pred_region
          %270 = dma.done [#allocation7], 1024
        $region56: #{tpu_custom_call.1} parent=43 // pred_fallthru
          _
        %s271 = sand.u32 %s32, 1
        %s272 = scalar_lea.sflag [#allocation4], %s271
        %s273 = sand.u32 %s32, 1
        %s274 = smul.addr %s273, 32
        %s275 = scalar_lea.vmem [#allocation3], %s274
        %p276 = pneg %p45
        %p277 = pneg %p42
        %p278 = pneg %p66
        %p279 = pneg %p63
        %p280 = pneg %p87
        %p281 = pneg %p84
        %p282 = pneg %p108
        %p283 = pneg %p105
        %p284 = pneg %p129
        %p285 = pneg %p126
        %p286 = pneg %p150
        %p287 = pneg %p147
        %p288 = pneg %p176
        %p289 = pneg %p173
        %s290 = sand.u32 %s163, 1
        %s291 = scalar_lea.sflag [#allocation5], %s290
        %s292 = sand.u32 %s163, 1
        %s293 = smul.addr %s292, 32
        %s294 = scalar_lea.vmem [#allocation9], %s293
        %v295 = vld [vmem:[#allocation8] ss:$8 sm:$0xf]
        %v296 = vld [vmem:[#allocation8] ss:$8 sm:$0xf0]
        %v297 = vor.u32 %v295, %v296
        %v298 = vld [vmem:[%s258] sm:$0xff]
        %v299 = vld [vmem:[%s258 + $0x8] sm:$0xff]
        %v300 = vld [vmem:[%s258 + $0x10] sm:$0xff]
        %v301 = vld [vmem:[%s258 + $0x18] sm:$0xff]
        %v302 = vld [vmem:[%s2] sm:$0xf]
        %304 = vset.pattern.permute.xlu0 0
        %305 = vperm.xlu0 %304, %v302
        %v306 = vpop.permute.xlu0 %305
        %v312 = vcombine.high %v298, %v298
        %v313 = vcombine.high %v299, %v299
        %v314 = vcombine.high %v300, %v300
        %v315 = vcombine.high %v301, %v301
        %320 = vrot.lane.b32.xlu0 %v298, 111
        %v321 = vpop.permute.xlu0 %320
        %322 = vrot.lane.b32.xlu0 %v312, 111
        %v323 = vpop.permute.xlu0 %322
        %324 = vrot.lane.b32.xlu0 %v299, 111
        %v325 = vpop.permute.xlu0 %324
        %326 = vrot.lane.b32.xlu0 %v313, 111
        %v327 = vpop.permute.xlu0 %326
        %328 = vrot.lane.b32.xlu0 %v300, 111
        %v329 = vpop.permute.xlu0 %328
        %330 = vrot.lane.b32.xlu0 %v314, 111
        %v331 = vpop.permute.xlu0 %330
        %332 = vrot.lane.b32.xlu0 %v301, 111
        %v333 = vpop.permute.xlu0 %332
        %334 = vrot.lane.b32.xlu0 %v315, 111
        %v335 = vpop.permute.xlu0 %334
        %v336 = vlaneseq
        %v337 = vand.u32 %v336, 127
        %vm338 = vcmp.lt.s32.totalorder %v337, 111
        %v339 = vsel %vm338, %v333, %v335
        %v340 = vsel %vm338, %v331, %v333
        %v341 = vsel %vm338, %v329, %v331
        %v342 = vsel %vm338, %v327, %v329
        %v343 = vsel %vm338, %v325, %v327
        %v344 = vsel %vm338, %v323, %v325
        %v345 = vsel %vm338, %v321, %v323
        %v346 = vsel %vm338, %v335, %v321
        %347 = vst [vmem:[#allocation2] sm:$0xf] %v346
        %348 = vst [vmem:[#allocation2 + $0x8] sm:$0xf] %v345
        %349 = vst [vmem:[#allocation2 + $0x10] sm:$0xf] %v344
        %350 = vst [vmem:[#allocation2 + $0x18] sm:$0xf] %v343
        %351 = vst [vmem:[#allocation2 + $0x20] sm:$0xf] %v342
        %352 = vst [vmem:[#allocation2 + $0x28] sm:$0xf] %v341
        %353 = vst [vmem:[#allocation2 + $0x30] sm:$0xf] %v340
        %354 = vst [vmem:[#allocation2 + $0x38] sm:$0xf] %v339
        %355 = vrot.lane.b32.xlu0 %v298, 110
        %v356 = vpop.permute.xlu0 %355
        %357 = vrot.lane.b32.xlu0 %v312, 110
        %v358 = vpop.permute.xlu0 %357
        %359 = vrot.lane.b32.xlu0 %v299, 110
        %v360 = vpop.permute.xlu0 %359
        %361 = vrot.lane.b32.xlu0 %v313, 110
        %v362 = vpop.permute.xlu0 %361
        %363 = vrot.lane.b32.xlu0 %v300, 110
        %v364 = vpop.permute.xlu0 %363
        %365 = vrot.lane.b32.xlu0 %v314, 110
        %v366 = vpop.permute.xlu0 %365
        %367 = vrot.lane.b32.xlu0 %v301, 110
        %v368 = vpop.permute.xlu0 %367
        %369 = vrot.lane.b32.xlu0 %v315, 110
        %v370 = vpop.permute.xlu0 %369
        %vm371 = vcmp.lt.s32.totalorder %v337, 110
        %v372 = vsel %vm371, %v368, %v370
        %v373 = vsel %vm371, %v366, %v368
        %v374 = vsel %vm371, %v364, %v366
        %v375 = vsel %vm371, %v362, %v364
        %v376 = vsel %vm371, %v360, %v362
        %v377 = vsel %vm371, %v358, %v360
        %v378 = vsel %vm371, %v356, %v358
        %v379 = vsel %vm371, %v370, %v356
        %v388 = vrot.slane %v379, 4
        %v389 = vrot.slane %v378, 4
        %v390 = vrot.slane %v377, 4
        %v391 = vrot.slane %v376, 4
        %v392 = vrot.slane %v375, 4
        %v393 = vrot.slane %v374, 4
        %v394 = vrot.slane %v373, 4
        %v395 = vrot.slane %v372, 4
        %404 = vst [vmem:[#allocation2] sm:$0xf0] %v388
        %405 = vst [vmem:[#allocation2 + $0x8] sm:$0xf0] %v389
        %406 = vst [vmem:[#allocation2 + $0x10] sm:$0xf0] %v390
        %407 = vst [vmem:[#allocation2 + $0x18] sm:$0xf0] %v391
        %408 = vst [vmem:[#allocation2 + $0x20] sm:$0xf0] %v392
        %409 = vst [vmem:[#allocation2 + $0x28] sm:$0xf0] %v393
        %410 = vst [vmem:[#allocation2 + $0x30] sm:$0xf0] %v394
        %411 = vst [vmem:[#allocation2 + $0x38] sm:$0xf0] %v395
        %412 = vrot.lane.b32.xlu0 %v298, 109
        %v413 = vpop.permute.xlu0 %412
        %414 = vrot.lane.b32.xlu0 %v312, 109
        %v415 = vpop.permute.xlu0 %414
        %416 = vrot.lane.b32.xlu0 %v299, 109
        %v417 = vpop.permute.xlu0 %416
        %418 = vrot.lane.b32.xlu0 %v313, 109
        %v419 = vpop.permute.xlu0 %418
        %420 = vrot.lane.b32.xlu0 %v300, 109
        %v421 = vpop.permute.xlu0 %420
        %422 = vrot.lane.b32.xlu0 %v314, 109
        %v423 = vpop.permute.xlu0 %422
        %424 = vrot.lane.b32.xlu0 %v301, 109
        %v425 = vpop.permute.xlu0 %424
        %426 = vrot.lane.b32.xlu0 %v315, 109
        %v427 = vpop.permute.xlu0 %426
        %vm428 = vcmp.lt.s32.totalorder %v337, 109
        %v429 = vsel %vm428, %v425, %v427
        %v430 = vsel %vm428, %v423, %v425
        %v431 = vsel %vm428, %v421, %v423
        %v432 = vsel %vm428, %v419, %v421
        %v433 = vsel %vm428, %v417, %v419
        %v434 = vsel %vm428, %v415, %v417
        %v435 = vsel %vm428, %v413, %v415
        %v436 = vsel %vm428, %v427, %v413
        %437 = vst [vmem:[#allocation2 + $0x40] sm:$0xf] %v436
        %438 = vst [vmem:[#allocation2 + $0x48] sm:$0xf] %v435
        %439 = vst [vmem:[#allocation2 + $0x50] sm:$0xf] %v434
        %440 = vst [vmem:[#allocation2 + $0x58] sm:$0xf] %v433
        %441 = vst [vmem:[#allocation2 + $0x60] sm:$0xf] %v432
        %442 = vst [vmem:[#allocation2 + $0x68] sm:$0xf] %v431
        %443 = vst [vmem:[#allocation2 + $0x70] sm:$0xf] %v430
        %444 = vst [vmem:[#allocation2 + $0x78] sm:$0xf] %v429
        %445 = vrot.lane.b32.xlu0 %v298, 101
        %v446 = vpop.permute.xlu0 %445
        %447 = vrot.lane.b32.xlu0 %v312, 101
        %v448 = vpop.permute.xlu0 %447
        %449 = vrot.lane.b32.xlu0 %v299, 101
        %v450 = vpop.permute.xlu0 %449
        %451 = vrot.lane.b32.xlu0 %v313, 101
        %v452 = vpop.permute.xlu0 %451
        %453 = vrot.lane.b32.xlu0 %v300, 101
        %v454 = vpop.permute.xlu0 %453
        %455 = vrot.lane.b32.xlu0 %v314, 101
        %v456 = vpop.permute.xlu0 %455
        %457 = vrot.lane.b32.xlu0 %v301, 101
        %v458 = vpop.permute.xlu0 %457
        %459 = vrot.lane.b32.xlu0 %v315, 101
        %v460 = vpop.permute.xlu0 %459
        %vm461 = vcmp.lt.s32.totalorder %v337, 101
        %v462 = vsel %vm461, %v458, %v460
        %v463 = vsel %vm461, %v456, %v458
        %v464 = vsel %vm461, %v454, %v456
        %v465 = vsel %vm461, %v452, %v454
        %v466 = vsel %vm461, %v450, %v452
        %v467 = vsel %vm461, %v448, %v450
        %v468 = vsel %vm461, %v446, %v448
        %v469 = vsel %vm461, %v460, %v446
        %v478 = vrot.slane %v469, 4
        %v479 = vrot.slane %v468, 4
        %v480 = vrot.slane %v467, 4
        %v481 = vrot.slane %v466, 4
        %v482 = vrot.slane %v465, 4
        %v483 = vrot.slane %v464, 4
        %v484 = vrot.slane %v463, 4
        %v485 = vrot.slane %v462, 4
        %494 = vst [vmem:[#allocation2 + $0x40] sm:$0xf0] %v478
        %495 = vst [vmem:[#allocation2 + $0x48] sm:$0xf0] %v479
        %496 = vst [vmem:[#allocation2 + $0x50] sm:$0xf0] %v480
        %497 = vst [vmem:[#allocation2 + $0x58] sm:$0xf0] %v481
        %498 = vst [vmem:[#allocation2 + $0x60] sm:$0xf0] %v482
        %499 = vst [vmem:[#allocation2 + $0x68] sm:$0xf0] %v483
        %500 = vst [vmem:[#allocation2 + $0x70] sm:$0xf0] %v484
        %501 = vst [vmem:[#allocation2 + $0x78] sm:$0xf0] %v485
        %502 = vrot.lane.b32.xlu0 %v298, 100
        %v503 = vpop.permute.xlu0 %502
        %504 = vrot.lane.b32.xlu0 %v312, 100
        %v505 = vpop.permute.xlu0 %504
        %506 = vrot.lane.b32.xlu0 %v299, 100
        %v507 = vpop.permute.xlu0 %506
        %508 = vrot.lane.b32.xlu0 %v313, 100
        %v509 = vpop.permute.xlu0 %508
        %510 = vrot.lane.b32.xlu0 %v300, 100
        %v511 = vpop.permute.xlu0 %510
        %512 = vrot.lane.b32.xlu0 %v314, 100
        %v513 = vpop.permute.xlu0 %512
        %514 = vrot.lane.b32.xlu0 %v301, 100
        %v515 = vpop.permute.xlu0 %514
        %516 = vrot.lane.b32.xlu0 %v315, 100
        %v517 = vpop.permute.xlu0 %516
        %vm518 = vcmp.lt.s32.totalorder %v337, 100
        %v519 = vsel %vm518, %v515, %v517
        %v520 = vsel %vm518, %v513, %v515
        %v521 = vsel %vm518, %v511, %v513
        %v522 = vsel %vm518, %v509, %v511
        %v523 = vsel %vm518, %v507, %v509
        %v524 = vsel %vm518, %v505, %v507
        %v525 = vsel %vm518, %v503, %v505
        %v526 = vsel %vm518, %v517, %v503
        %527 = vst [vmem:[#allocation2 + $0x80] sm:$0xf] %v526
        %528 = vst [vmem:[#allocation2 + $0x88] sm:$0xf] %v525
        %529 = vst [vmem:[#allocation2 + $0x90] sm:$0xf] %v524
        %530 = vst [vmem:[#allocation2 + $0x98] sm:$0xf] %v523
        %531 = vst [vmem:[#allocation2 + $0xa0] sm:$0xf] %v522
        %532 = vst [vmem:[#allocation2 + $0xa8] sm:$0xf] %v521
        %533 = vst [vmem:[#allocation2 + $0xb0] sm:$0xf] %v520
        %534 = vst [vmem:[#allocation2 + $0xb8] sm:$0xf] %v519
        %535 = vrot.lane.b32.xlu0 %v298, 99
        %v536 = vpop.permute.xlu0 %535
        %537 = vrot.lane.b32.xlu0 %v312, 99
        %v538 = vpop.permute.xlu0 %537
        %539 = vrot.lane.b32.xlu0 %v299, 99
        %v540 = vpop.permute.xlu0 %539
        %541 = vrot.lane.b32.xlu0 %v313, 99
        %v542 = vpop.permute.xlu0 %541
        %543 = vrot.lane.b32.xlu0 %v300, 99
        %v544 = vpop.permute.xlu0 %543
        %545 = vrot.lane.b32.xlu0 %v314, 99
        %v546 = vpop.permute.xlu0 %545
        %547 = vrot.lane.b32.xlu0 %v301, 99
        %v548 = vpop.permute.xlu0 %547
        %549 = vrot.lane.b32.xlu0 %v315, 99
        %v550 = vpop.permute.xlu0 %549
        %vm551 = vcmp.lt.s32.totalorder %v337, 99
        %v552 = vsel %vm551, %v548, %v550
        %v553 = vsel %vm551, %v546, %v548
        %v554 = vsel %vm551, %v544, %v546
        %v555 = vsel %vm551, %v542, %v544
        %v556 = vsel %vm551, %v540, %v542
        %v557 = vsel %vm551, %v538, %v540
        %v558 = vsel %vm551, %v536, %v538
        %v559 = vsel %vm551, %v550, %v536
        %v568 = vrot.slane %v559, 4
        %v569 = vrot.slane %v558, 4
        %v570 = vrot.slane %v557, 4
        %v571 = vrot.slane %v556, 4
        %v572 = vrot.slane %v555, 4
        %v573 = vrot.slane %v554, 4
        %v574 = vrot.slane %v553, 4
        %v575 = vrot.slane %v552, 4
        %584 = vst [vmem:[#allocation2 + $0x80] sm:$0xf0] %v568
        %585 = vst [vmem:[#allocation2 + $0x88] sm:$0xf0] %v569
        %586 = vst [vmem:[#allocation2 + $0x90] sm:$0xf0] %v570
        %587 = vst [vmem:[#allocation2 + $0x98] sm:$0xf0] %v571
        %588 = vst [vmem:[#allocation2 + $0xa0] sm:$0xf0] %v572
        %589 = vst [vmem:[#allocation2 + $0xa8] sm:$0xf0] %v573
        %590 = vst [vmem:[#allocation2 + $0xb0] sm:$0xf0] %v574
        %591 = vst [vmem:[#allocation2 + $0xb8] sm:$0xf0] %v575
        %592 = vrot.lane.b32.xlu0 %v298, 91
        %v593 = vpop.permute.xlu0 %592
        %594 = vrot.lane.b32.xlu0 %v312, 91
        %v595 = vpop.permute.xlu0 %594
        %596 = vrot.lane.b32.xlu0 %v299, 91
        %v597 = vpop.permute.xlu0 %596
        %598 = vrot.lane.b32.xlu0 %v313, 91
        %v599 = vpop.permute.xlu0 %598
        %600 = vrot.lane.b32.xlu0 %v300, 91
        %v601 = vpop.permute.xlu0 %600
        %602 = vrot.lane.b32.xlu0 %v314, 91
        %v603 = vpop.permute.xlu0 %602
        %604 = vrot.lane.b32.xlu0 %v301, 91
        %v605 = vpop.permute.xlu0 %604
        %606 = vrot.lane.b32.xlu0 %v315, 91
        %v607 = vpop.permute.xlu0 %606
        %vm608 = vcmp.lt.s32.totalorder %v337, 91
        %v609 = vsel %vm608, %v605, %v607
        %v610 = vsel %vm608, %v603, %v605
        %v611 = vsel %vm608, %v601, %v603
        %v612 = vsel %vm608, %v599, %v601
        %v613 = vsel %vm608, %v597, %v599
        %v614 = vsel %vm608, %v595, %v597
        %v615 = vsel %vm608, %v593, %v595
        %v616 = vsel %vm608, %v607, %v593
        %617 = vst [vmem:[#allocation2 + $0xc0] sm:$0xf] %v616
        %618 = vst [vmem:[#allocation2 + $0xc8] sm:$0xf] %v615
        %619 = vst [vmem:[#allocation2 + $0xd0] sm:$0xf] %v614
        %620 = vst [vmem:[#allocation2 + $0xd8] sm:$0xf] %v613
        %621 = vst [vmem:[#allocation2 + $0xe0] sm:$0xf] %v612
        %622 = vst [vmem:[#allocation2 + $0xe8] sm:$0xf] %v611
        %623 = vst [vmem:[#allocation2 + $0xf0] sm:$0xf] %v610
        %624 = vst [vmem:[#allocation2 + $0xf8] sm:$0xf] %v609
        %625 = vrot.lane.b32.xlu0 %v298, 90
        %v626 = vpop.permute.xlu0 %625
        %627 = vrot.lane.b32.xlu0 %v312, 90
        %v628 = vpop.permute.xlu0 %627
        %629 = vrot.lane.b32.xlu0 %v299, 90
        %v630 = vpop.permute.xlu0 %629
        %631 = vrot.lane.b32.xlu0 %v313, 90
        %v632 = vpop.permute.xlu0 %631
        %633 = vrot.lane.b32.xlu0 %v300, 90
        %v634 = vpop.permute.xlu0 %633
        %635 = vrot.lane.b32.xlu0 %v314, 90
        %v636 = vpop.permute.xlu0 %635
        %637 = vrot.lane.b32.xlu0 %v301, 90
        %v638 = vpop.permute.xlu0 %637
        %639 = vrot.lane.b32.xlu0 %v315, 90
        %v640 = vpop.permute.xlu0 %639
        %vm641 = vcmp.lt.s32.totalorder %v337, 90
        %v642 = vsel %vm641, %v638, %v640
        %v643 = vsel %vm641, %v636, %v638
        %v644 = vsel %vm641, %v634, %v636
        %v645 = vsel %vm641, %v632, %v634
        %v646 = vsel %vm641, %v630, %v632
        %v647 = vsel %vm641, %v628, %v630
        %v648 = vsel %vm641, %v626, %v628
        %v649 = vsel %vm641, %v640, %v626
        %v658 = vrot.slane %v649, 4
        %v659 = vrot.slane %v648, 4
        %v660 = vrot.slane %v647, 4
        %v661 = vrot.slane %v646, 4
        %v662 = vrot.slane %v645, 4
        %v663 = vrot.slane %v644, 4
        %v664 = vrot.slane %v643, 4
        %v665 = vrot.slane %v642, 4
        %674 = vst [vmem:[#allocation2 + $0xc0] sm:$0xf0] %v658
        %675 = vst [vmem:[#allocation2 + $0xc8] sm:$0xf0] %v659
        %676 = vst [vmem:[#allocation2 + $0xd0] sm:$0xf0] %v660
        %677 = vst [vmem:[#allocation2 + $0xd8] sm:$0xf0] %v661
        %678 = vst [vmem:[#allocation2 + $0xe0] sm:$0xf0] %v662
        %679 = vst [vmem:[#allocation2 + $0xe8] sm:$0xf0] %v663
        %680 = vst [vmem:[#allocation2 + $0xf0] sm:$0xf0] %v664
        %681 = vst [vmem:[#allocation2 + $0xf8] sm:$0xf0] %v665
        %682 = vrot.lane.b32.xlu0 %v298, 89
        %v683 = vpop.permute.xlu0 %682
        %684 = vrot.lane.b32.xlu0 %v312, 89
        %v685 = vpop.permute.xlu0 %684
        %686 = vrot.lane.b32.xlu0 %v299, 89
        %v687 = vpop.permute.xlu0 %686
        %688 = vrot.lane.b32.xlu0 %v313, 89
        %v689 = vpop.permute.xlu0 %688
        %690 = vrot.lane.b32.xlu0 %v300, 89
        %v691 = vpop.permute.xlu0 %690
        %692 = vrot.lane.b32.xlu0 %v314, 89
        %v693 = vpop.permute.xlu0 %692
        %694 = vrot.lane.b32.xlu0 %v301, 89
        %v695 = vpop.permute.xlu0 %694
        %696 = vrot.lane.b32.xlu0 %v315, 89
        %v697 = vpop.permute.xlu0 %696
        %vm698 = vcmp.lt.s32.totalorder %v337, 89
        %v699 = vsel %vm698, %v695, %v697
        %v700 = vsel %vm698, %v693, %v695
        %v701 = vsel %vm698, %v691, %v693
        %v702 = vsel %vm698, %v689, %v691
        %v703 = vsel %vm698, %v687, %v689
        %v704 = vsel %vm698, %v685, %v687
        %v705 = vsel %vm698, %v683, %v685
        %v706 = vsel %vm698, %v697, %v683
        %707 = vst [vmem:[#allocation2 + $0x100] sm:$0xf] %v706
        %708 = vst [vmem:[#allocation2 + $0x108] sm:$0xf] %v705
        %709 = vst [vmem:[#allocation2 + $0x110] sm:$0xf] %v704
        %710 = vst [vmem:[#allocation2 + $0x118] sm:$0xf] %v703
        %711 = vst [vmem:[#allocation2 + $0x120] sm:$0xf] %v702
        %712 = vst [vmem:[#allocation2 + $0x128] sm:$0xf] %v701
        %713 = vst [vmem:[#allocation2 + $0x130] sm:$0xf] %v700
        %714 = vst [vmem:[#allocation2 + $0x138] sm:$0xf] %v699
        %v715 = vld [vmem:[%s1] sm:$0xf]
        %v716 = vld [vmem:[#allocation2] sm:$0xff]
        %v717 = vld [vmem:[#allocation2 + $0x8] sm:$0xff]
        %v718 = vld [vmem:[#allocation2 + $0x10] sm:$0xff]
        %v719 = vld [vmem:[#allocation2 + $0x18] sm:$0xff]
        %v720 = vld [vmem:[#allocation2 + $0x20] sm:$0xff]
        %v721 = vld [vmem:[#allocation2 + $0x28] sm:$0xff]
        %v722 = vld [vmem:[#allocation2 + $0x30] sm:$0xff]
        %v723 = vld [vmem:[#allocation2 + $0x38] sm:$0xff]
        %v724 = vld [vmem:[#allocation2 + $0x40] sm:$0xff]
        %v725 = vld [vmem:[#allocation2 + $0x48] sm:$0xff]
        %v726 = vld [vmem:[#allocation2 + $0x50] sm:$0xff]
        %v727 = vld [vmem:[#allocation2 + $0x58] sm:$0xff]
        %v728 = vld [vmem:[#allocation2 + $0x60] sm:$0xff]
        %v729 = vld [vmem:[#allocation2 + $0x68] sm:$0xff]
        %v730 = vld [vmem:[#allocation2 + $0x70] sm:$0xff]
        %v731 = vld [vmem:[#allocation2 + $0x78] sm:$0xff]
        %v732 = vld [vmem:[#allocation2 + $0x80] sm:$0xff]
        %v733 = vld [vmem:[#allocation2 + $0x88] sm:$0xff]
        %v734 = vld [vmem:[#allocation2 + $0x90] sm:$0xff]
        %v735 = vld [vmem:[#allocation2 + $0x98] sm:$0xff]
        %v736 = vld [vmem:[#allocation2 + $0xa0] sm:$0xff]
        %v737 = vld [vmem:[#allocation2 + $0xa8] sm:$0xff]
        %v738 = vld [vmem:[#allocation2 + $0xb0] sm:$0xff]
        %v739 = vld [vmem:[#allocation2 + $0xb8] sm:$0xff]
        %v740 = vld [vmem:[#allocation2 + $0xc0] sm:$0xff]
        %v741 = vld [vmem:[#allocation2 + $0xc8] sm:$0xff]
        %v742 = vld [vmem:[#allocation2 + $0xd0] sm:$0xff]
        %v743 = vld [vmem:[#allocation2 + $0xd8] sm:$0xff]
        %v744 = vld [vmem:[#allocation2 + $0xe0] sm:$0xff]
        %v745 = vld [vmem:[#allocation2 + $0xe8] sm:$0xff]
        %v746 = vld [vmem:[#allocation2 + $0xf0] sm:$0xff]
        %v747 = vld [vmem:[#allocation2 + $0xf8] sm:$0xff]
        %v748 = vld [vmem:[#allocation2 + $0x100] sm:$0xf]
        %v749 = vld [vmem:[#allocation2 + $0x108] sm:$0xf]
        %v750 = vld [vmem:[#allocation2 + $0x110] sm:$0xf]
        %v751 = vld [vmem:[#allocation2 + $0x118] sm:$0xf]
        %v752 = vld [vmem:[#allocation2 + $0x120] sm:$0xf]
        %v753 = vld [vmem:[#allocation2 + $0x128] sm:$0xf]
        %v754 = vld [vmem:[#allocation2 + $0x130] sm:$0xf]
        %v755 = vld [vmem:[#allocation2 + $0x138] sm:$0xf]
        %vm756 = vcmask 293888
        %v758 = vsel %vm756, %v715, 0
        %vm760 = vcmask 1043456
        %v762 = vsel %vm760, %v748, 0
        %v765 = vsel %vm760, %v749, 0
        %v768 = vsel %vm760, %v750, 0
        %v771 = vsel %vm760, %v751, 0
        %v774 = vsel %vm760, %v752, 0
        %v777 = vsel %vm760, %v753, 0
        %v780 = vsel %vm760, %v754, 0
        %v783 = vsel %vm760, %v755, 0
        %785 = vmatprep.subr.mxu0 %v717
        %786 = vmatpush1.msra.mxu0 %v716
        %787 = vmatprep.subr.mxu0 %v725
        %788 = vmatpush1.msra.mxu0 %v724
        %789 = vmatprep.subr.mxu0 %v733
        %790 = vmatpush1.msra.mxu0 %v732
        %791 = vmatprep.subr.mxu0 %v741
        %792 = vmatpush1.msra.mxu0 %v740
        %793 = vmatprep.subr.mxu0 %v765
        %794 = vmatpush1.msra.mxu0 %v762
        %795 = vmatprep.subr.mxu0 0.0
        %796 = vmatpush1.msra.mxu0 0.0
        %797 = vmatprep.subr.mxu0 0.0
        %798 = vmatpush1.msra.mxu0 0.0
        %799 = vmatprep.subr.mxu0 0.0
        %800 = vmatpush1.msra.mxu0 0.0
        %801 = vmatprep.subr.mxu0 0.0
        %802 = vmatpush1.msra.mxu0 0.0
        %803 = vmatprep.subr.mxu0 0.0
        %804 = vmatpush1.msra.mxu0 0.0
        %805 = vmatprep.subr.mxu0 0.0
        %806 = vmatpush1.msra.mxu0 0.0
        %807 = vmatprep.subr.mxu0 0.0
        %808 = vmatpush1.msra.mxu0 0.0
        %809 = vmatprep.subr.mxu0 0.0
        %810 = vmatpush1.msra.mxu0 0.0
        %811 = vmatprep.subr.mxu0 0.0
        %812 = vmatpush1.msra.mxu0 0.0
        %813 = vmatprep.subr.mxu0 0.0
        %814 = vmatpush1.msra.mxu0 0.0
        %815 = vmatprep.subr.mxu0 0.0
        %816 = vmatpush1.msra.mxu0 0.0
        %817 = vmatprep.subr.mxu0 0.0
        %818 = vmatpush1.msra.mxu0 0.0
        %819 = vmatprep.subr.mxu0 0.0
        %820 = vmatpush1.msra.mxu0 0.0
        %821 = vmatprep.subr.mxu0 0.0
        %822 = vmatpush1.msra.mxu0 0.0
        %823 = vmatprep.subr.mxu0 0.0
        %824 = vmatpush1.msra.mxu0 0.0
        %825 = vmatprep.subr.mxu0 0.0
        %826 = vmatpush1.msra.mxu0 0.0
        %827 = vmatprep.subr.mxu0 0.0
        %828 = vmatpush1.msra.mxu0 0.0
        %829 = vmatprep.subr.mxu0 0.0
        %830 = vmatpush1.msra.mxu0 0.0
        %831 = vmatprep.subr.mxu0 0.0
        %832 = vmatpush1.msra.mxu0 0.0
        %833 = vmatprep.subr.mxu0 0.0
        %834 = vmatpush1.msra.mxu0 0.0
        %835 = vmatprep.subr.mxu0 0.0
        %836 = vmatpush1.msra.mxu0 0.0
        %837 = vmatprep.subr.mxu0 0.0
        %838 = vmatpush1.msra.mxu0 0.0
        %839 = vmatprep.subr.mxu0 0.0
        %840 = vmatpush1.msra.mxu0 0.0
        %841 = vmatprep.subr.mxu0 0.0
        %842 = vmatpush1.msra.mxu0 0.0
        %843 = vmatprep.subr.mxu0 0.0
        %844 = vmatpush1.msra.mxu0 0.0
        %845 = vmatprep.subr.mxu0 0.0
        %846 = vmatpush1.msra.mxu0 0.0
        %847 = vmatprep.subr.mxu0 0.0
        %848 = vmatpush1.msra.mxu0 0.0
        %849 = vmatprep.mubr.f32.mxu0 0.0
        %850 = vmatmul.mubr.f32.gmra.mrb[0].mxu0 %v758
        %v851 = vpop.f32.mrb[0].mxu0
        %v852 = vadd.f32 0.0, %v851
        %v853 = vpop.f32.mrb[0].mxu0
        %v854 = vadd.f32 0.0, %v853
        %855 = vdwg.mxu0
        %856 = vmatprep.subr.mxu0 %v719
        %857 = vmatpush1.msra.mxu0 %v718
        %858 = vmatprep.subr.mxu0 %v727
        %859 = vmatpush1.msra.mxu0 %v726
        %860 = vmatprep.subr.mxu0 %v735
        %861 = vmatpush1.msra.mxu0 %v734
        %862 = vmatprep.subr.mxu0 %v743
        %863 = vmatpush1.msra.mxu0 %v742
        %864 = vmatprep.subr.mxu0 %v771
        %865 = vmatpush1.msra.mxu0 %v768
        %866 = vmatprep.subr.mxu0 0.0
        %867 = vmatpush1.msra.mxu0 0.0
        %868 = vmatprep.subr.mxu0 0.0
        %869 = vmatpush1.msra.mxu0 0.0
        %870 = vmatprep.subr.mxu0 0.0
        %871 = vmatpush1.msra.mxu0 0.0
        %872 = vmatprep.subr.mxu0 0.0
        %873 = vmatpush1.msra.mxu0 0.0
        %874 = vmatprep.subr.mxu0 0.0
        %875 = vmatpush1.msra.mxu0 0.0
        %876 = vmatprep.subr.mxu0 0.0
        %877 = vmatpush1.msra.mxu0 0.0
        %878 = vmatprep.subr.mxu0 0.0
        %879 = vmatpush1.msra.mxu0 0.0
        %880 = vmatprep.subr.mxu0 0.0
        %881 = vmatpush1.msra.mxu0 0.0
        %882 = vmatprep.subr.mxu0 0.0
        %883 = vmatpush1.msra.mxu0 0.0
        %884 = vmatprep.subr.mxu0 0.0
        %885 = vmatpush1.msra.mxu0 0.0
        %886 = vmatprep.subr.mxu0 0.0
        %887 = vmatpush1.msra.mxu0 0.0
        %888 = vmatprep.subr.mxu0 0.0
        %889 = vmatpush1.msra.mxu0 0.0
        %890 = vmatprep.subr.mxu0 0.0
        %891 = vmatpush1.msra.mxu0 0.0
        %892 = vmatprep.subr.mxu0 0.0
        %893 = vmatpush1.msra.mxu0 0.0
        %894 = vmatprep.subr.mxu0 0.0
        %895 = vmatpush1.msra.mxu0 0.0
        %896 = vmatprep.subr.mxu0 0.0
        %897 = vmatpush1.msra.mxu0 0.0
        %898 = vmatprep.subr.mxu0 0.0
        %899 = vmatpush1.msra.mxu0 0.0
        %900 = vmatprep.subr.mxu0 0.0
        %901 = vmatpush1.msra.mxu0 0.0
        %902 = vmatprep.subr.mxu0 0.0
        %903 = vmatpush1.msra.mxu0 0.0
        %904 = vmatprep.subr.mxu0 0.0
        %905 = vmatpush1.msra.mxu0 0.0
        %906 = vmatprep.subr.mxu0 0.0
        %907 = vmatpush1.msra.mxu0 0.0
        %908 = vmatprep.subr.mxu0 0.0
        %909 = vmatpush1.msra.mxu0 0.0
        %910 = vmatprep.subr.mxu0 0.0
        %911 = vmatpush1.msra.mxu0 0.0
        %912 = vmatprep.subr.mxu0 0.0
        %913 = vmatpush1.msra.mxu0 0.0
        %914 = vmatprep.subr.mxu0 0.0
        %915 = vmatpush1.msra.mxu0 0.0
        %916 = vmatprep.subr.mxu0 0.0
        %917 = vmatpush1.msra.mxu0 0.0
        %918 = vmatprep.subr.mxu0 0.0
        %919 = vmatpush1.msra.mxu0 0.0
        %920 = vmatprep.mubr.f32.mxu0 0.0
        %921 = vmatmul.mubr.f32.gmra.mrb[0].mxu0 %v758
        %v922 = vpop.f32.mrb[0].mxu0
        %v923 = vadd.f32 0.0, %v922
        %v924 = vpop.f32.mrb[0].mxu0
        %v925 = vadd.f32 0.0, %v924
        %926 = vdwg.mxu0
        %927 = vmatprep.subr.mxu0 %v721
        %928 = vmatpush1.msra.mxu0 %v720
        %929 = vmatprep.subr.mxu0 %v729
        %930 = vmatpush1.msra.mxu0 %v728
        %931 = vmatprep.subr.mxu0 %v737
        %932 = vmatpush1.msra.mxu0 %v736
        %933 = vmatprep.subr.mxu0 %v745
        %934 = vmatpush1.msra.mxu0 %v744
        %935 = vmatprep.subr.mxu0 %v777
        %936 = vmatpush1.msra.mxu0 %v774
        %937 = vmatprep.subr.mxu0 0.0
        %938 = vmatpush1.msra.mxu0 0.0
        %939 = vmatprep.subr.mxu0 0.0
        %940 = vmatpush1.msra.mxu0 0.0
        %941 = vmatprep.subr.mxu0 0.0
        %942 = vmatpush1.msra.mxu0 0.0
        %943 = vmatprep.subr.mxu0 0.0
        %944 = vmatpush1.msra.mxu0 0.0
        %945 = vmatprep.subr.mxu0 0.0
        %946 = vmatpush1.msra.mxu0 0.0
        %947 = vmatprep.subr.mxu0 0.0
        %948 = vmatpush1.msra.mxu0 0.0
        %949 = vmatprep.subr.mxu0 0.0
        %950 = vmatpush1.msra.mxu0 0.0
        %951 = vmatprep.subr.mxu0 0.0
        %952 = vmatpush1.msra.mxu0 0.0
        %953 = vmatprep.subr.mxu0 0.0
        %954 = vmatpush1.msra.mxu0 0.0
        %955 = vmatprep.subr.mxu0 0.0
        %956 = vmatpush1.msra.mxu0 0.0
        %957 = vmatprep.subr.mxu0 0.0
        %958 = vmatpush1.msra.mxu0 0.0
        %959 = vmatprep.subr.mxu0 0.0
        %960 = vmatpush1.msra.mxu0 0.0
        %961 = vmatprep.subr.mxu0 0.0
        %962 = vmatpush1.msra.mxu0 0.0
        %963 = vmatprep.subr.mxu0 0.0
        %964 = vmatpush1.msra.mxu0 0.0
        %965 = vmatprep.subr.mxu0 0.0
        %966 = vmatpush1.msra.mxu0 0.0
        %967 = vmatprep.subr.mxu0 0.0
        %968 = vmatpush1.msra.mxu0 0.0
        %969 = vmatprep.subr.mxu0 0.0
        %970 = vmatpush1.msra.mxu0 0.0
        %971 = vmatprep.subr.mxu0 0.0
        %972 = vmatpush1.msra.mxu0 0.0
        %973 = vmatprep.subr.mxu0 0.0
        %974 = vmatpush1.msra.mxu0 0.0
        %975 = vmatprep.subr.mxu0 0.0
        %976 = vmatpush1.msra.mxu0 0.0
        %977 = vmatprep.subr.mxu0 0.0
        %978 = vmatpush1.msra.mxu0 0.0
        %979 = vmatprep.subr.mxu0 0.0
        %980 = vmatpush1.msra.mxu0 0.0
        %981 = vmatprep.subr.mxu0 0.0
        %982 = vmatpush1.msra.mxu0 0.0
        %983 = vmatprep.subr.mxu0 0.0
        %984 = vmatpush1.msra.mxu0 0.0
        %985 = vmatprep.subr.mxu0 0.0
        %986 = vmatpush1.msra.mxu0 0.0
        %987 = vmatprep.subr.mxu0 0.0
        %988 = vmatpush1.msra.mxu0 0.0
        %989 = vmatprep.subr.mxu0 0.0
        %990 = vmatpush1.msra.mxu0 0.0
        %991 = vmatprep.mubr.f32.mxu0 0.0
        %992 = vmatmul.mubr.f32.gmra.mrb[0].mxu0 %v758
        %v993 = vpop.f32.mrb[0].mxu0
        %v994 = vadd.f32 0.0, %v993
        %v995 = vpop.f32.mrb[0].mxu0
        %v996 = vadd.f32 0.0, %v995
        %997 = vdwg.mxu0
        %998 = vmatprep.subr.mxu0 %v723
        %999 = vmatpush1.msra.mxu0 %v722
        %1000 = vmatprep.subr.mxu0 %v731
        %1001 = vmatpush1.msra.mxu0 %v730
        %1002 = vmatprep.subr.mxu0 %v739
        %1003 = vmatpush1.msra.mxu0 %v738
        %1004 = vmatprep.subr.mxu0 %v747
        %1005 = vmatpush1.msra.mxu0 %v746
        %1006 = vmatprep.subr.mxu0 %v783
        %1007 = vmatpush1.msra.mxu0 %v780
        %1008 = vmatprep.subr.mxu0 0.0
        %1009 = vmatpush1.msra.mxu0 0.0
        %1010 = vmatprep.subr.mxu0 0.0
        %1011 = vmatpush1.msra.mxu0 0.0
        %1012 = vmatprep.subr.mxu0 0.0
        %1013 = vmatpush1.msra.mxu0 0.0
        %1014 = vmatprep.subr.mxu0 0.0
        %1015 = vmatpush1.msra.mxu0 0.0
        %1016 = vmatprep.subr.mxu0 0.0
        %1017 = vmatpush1.msra.mxu0 0.0
        %1018 = vmatprep.subr.mxu0 0.0
        %1019 = vmatpush1.msra.mxu0 0.0
        %1020 = vmatprep.subr.mxu0 0.0
        %1021 = vmatpush1.msra.mxu0 0.0
        %1022 = vmatprep.subr.mxu0 0.0
        %1023 = vmatpush1.msra.mxu0 0.0
        %1024 = vmatprep.subr.mxu0 0.0
        %1025 = vmatpush1.msra.mxu0 0.0
        %1026 = vmatprep.subr.mxu0 0.0
        %1027 = vmatpush1.msra.mxu0 0.0
        %1028 = vmatprep.subr.mxu0 0.0
        %1029 = vmatpush1.msra.mxu0 0.0
        %1030 = vmatprep.subr.mxu0 0.0
        %1031 = vmatpush1.msra.mxu0 0.0
        %1032 = vmatprep.subr.mxu0 0.0
        %1033 = vmatpush1.msra.mxu0 0.0
        %1034 = vmatprep.subr.mxu0 0.0
        %1035 = vmatpush1.msra.mxu0 0.0
        %1036 = vmatprep.subr.mxu0 0.0
        %1037 = vmatpush1.msra.mxu0 0.0
        %1038 = vmatprep.subr.mxu0 0.0
        %1039 = vmatpush1.msra.mxu0 0.0
        %1040 = vmatprep.subr.mxu0 0.0
        %1041 = vmatpush1.msra.mxu0 0.0
        %1042 = vmatprep.subr.mxu0 0.0
        %1043 = vmatpush1.msra.mxu0 0.0
        %1044 = vmatprep.subr.mxu0 0.0
        %1045 = vmatpush1.msra.mxu0 0.0
        %1046 = vmatprep.subr.mxu0 0.0
        %1047 = vmatpush1.msra.mxu0 0.0
        %1048 = vmatprep.subr.mxu0 0.0
        %1049 = vmatpush1.msra.mxu0 0.0
        %1050 = vmatprep.subr.mxu0 0.0
        %1051 = vmatpush1.msra.mxu0 0.0
        %1052 = vmatprep.subr.mxu0 0.0
        %1053 = vmatpush1.msra.mxu0 0.0
        %1054 = vmatprep.subr.mxu0 0.0
        %1055 = vmatpush1.msra.mxu0 0.0
        %1056 = vmatprep.subr.mxu0 0.0
        %1057 = vmatpush1.msra.mxu0 0.0
        %1058 = vmatprep.subr.mxu0 0.0
        %1059 = vmatpush1.msra.mxu0 0.0
        %1060 = vmatprep.subr.mxu0 0.0
        %1061 = vmatpush1.msra.mxu0 0.0
        %1062 = vmatprep.mubr.f32.mxu0 0.0
        %1063 = vmatmul.mubr.f32.gmra.mrb[0].mxu0 %v758
        %v1064 = vpop.f32.mrb[0].mxu0
        %v1065 = vadd.f32 0.0, %v1064
        %v1066 = vpop.f32.mrb[0].mxu0
        %v1067 = vadd.f32 0.0, %v1066
        %1068 = vdwg.mxu0
        %v1069 = vadd.f32 %v306, %v852
        %v1070 = vadd.f32 %v306, %v854
        %v1071 = vadd.f32 %v306, %v923
        %v1072 = vadd.f32 %v306, %v925
        %v1073 = vadd.f32 %v306, %v994
        %v1074 = vadd.f32 %v306, %v996
        %v1075 = vadd.f32 %v306, %v1065
        %v1076 = vadd.f32 %v306, %v1067
        %1077 = vrot.lane.b32.xlu0 %v298, 11
        %v1078 = vpop.permute.xlu0 %1077
        %1079 = vrot.lane.b32.xlu0 %v312, 11
        %v1080 = vpop.permute.xlu0 %1079
        %1081 = vrot.lane.b32.xlu0 %v299, 11
        %v1082 = vpop.permute.xlu0 %1081
        %1083 = vrot.lane.b32.xlu0 %v313, 11
        %v1084 = vpop.permute.xlu0 %1083
        %1085 = vrot.lane.b32.xlu0 %v300, 11
        %v1086 = vpop.permute.xlu0 %1085
        %1087 = vrot.lane.b32.xlu0 %v314, 11
        %v1088 = vpop.permute.xlu0 %1087
        %1089 = vrot.lane.b32.xlu0 %v301, 11
        %v1090 = vpop.permute.xlu0 %1089
        %1091 = vrot.lane.b32.xlu0 %v315, 11
        %v1092 = vpop.permute.xlu0 %1091
        %vm1093 = vcmp.lt.s32.totalorder %v337, 11
        %v1094 = vsel %vm1093, %v1090, %v1092
        %v1095 = vsel %vm1093, %v1088, %v1090
        %v1096 = vsel %vm1093, %v1086, %v1088
        %v1097 = vsel %vm1093, %v1084, %v1086
        %v1098 = vsel %vm1093, %v1082, %v1084
        %v1099 = vsel %vm1093, %v1080, %v1082
        %v1100 = vsel %vm1093, %v1078, %v1080
        %v1101 = vsel %vm1093, %v1092, %v1078
        %1102 = vst [vmem:[#allocation2] sm:$0xf] %v1101
        %1103 = vst [vmem:[#allocation2 + $0x8] sm:$0xf] %v1100
        %1104 = vst [vmem:[#allocation2 + $0x10] sm:$0xf] %v1099
        %1105 = vst [vmem:[#allocation2 + $0x18] sm:$0xf] %v1098
        %1106 = vst [vmem:[#allocation2 + $0x20] sm:$0xf] %v1097
        %1107 = vst [vmem:[#allocation2 + $0x28] sm:$0xf] %v1096
        %1108 = vst [vmem:[#allocation2 + $0x30] sm:$0xf] %v1095
        %1109 = vst [vmem:[#allocation2 + $0x38] sm:$0xf] %v1094
        %1110 = vrot.lane.b32.xlu0 %v298, 10
        %v1111 = vpop.permute.xlu0 %1110
        %1112 = vrot.lane.b32.xlu0 %v312, 10
        %v1113 = vpop.permute.xlu0 %1112
        %1114 = vrot.lane.b32.xlu0 %v299, 10
        %v1115 = vpop.permute.xlu0 %1114
        %1116 = vrot.lane.b32.xlu0 %v313, 10
        %v1117 = vpop.permute.xlu0 %1116
        %1118 = vrot.lane.b32.xlu0 %v300, 10
        %v1119 = vpop.permute.xlu0 %1118
        %1120 = vrot.lane.b32.xlu0 %v314, 10
        %v1121 = vpop.permute.xlu0 %1120
        %1122 = vrot.lane.b32.xlu0 %v301, 10
        %v1123 = vpop.permute.xlu0 %1122
        %1124 = vrot.lane.b32.xlu0 %v315, 10
        %v1125 = vpop.permute.xlu0 %1124
        %vm1126 = vcmp.lt.s32.totalorder %v337, 10
        %v1127 = vsel %vm1126, %v1123, %v1125
        %v1128 = vsel %vm1126, %v1121, %v1123
        %v1129 = vsel %vm1126, %v1119, %v1121
        %v1130 = vsel %vm1126, %v1117, %v1119
        %v1131 = vsel %vm1126, %v1115, %v1117
        %v1132 = vsel %vm1126, %v1113, %v1115
        %v1133 = vsel %vm1126, %v1111, %v1113
        %v1134 = vsel %vm1126, %v1125, %v1111
        %v1143 = vrot.slane %v1134, 4
        %v1144 = vrot.slane %v1133, 4
        %v1145 = vrot.slane %v1132, 4
        %v1146 = vrot.slane %v1131, 4
        %v1147 = vrot.slane %v1130, 4
        %v1148 = vrot.slane %v1129, 4
        %v1149 = vrot.slane %v1128, 4
        %v1150 = vrot.slane %v1127, 4
        %1159 = vst [vmem:[#allocation2] sm:$0xf0] %v1143
        %1160 = vst [vmem:[#allocation2 + $0x8] sm:$0xf0] %v1144
        %1161 = vst [vmem:[#allocation2 + $0x10] sm:$0xf0] %v1145
        %1162 = vst [vmem:[#allocation2 + $0x18] sm:$0xf0] %v1146
        %1163 = vst [vmem:[#allocation2 + $0x20] sm:$0xf0] %v1147
        %1164 = vst [vmem:[#allocation2 + $0x28] sm:$0xf0] %v1148
        %1165 = vst [vmem:[#allocation2 + $0x30] sm:$0xf0] %v1149
        %1166 = vst [vmem:[#allocation2 + $0x38] sm:$0xf0] %v1150
        %1167 = vrot.lane.b32.xlu0 %v298, 9
        %v1168 = vpop.permute.xlu0 %1167
        %1169 = vrot.lane.b32.xlu0 %v312, 9
        %v1170 = vpop.permute.xlu0 %1169
        %1171 = vrot.lane.b32.xlu0 %v299, 9
        %v1172 = vpop.permute.xlu0 %1171
        %1173 = vrot.lane.b32.xlu0 %v313, 9
        %v1174 = vpop.permute.xlu0 %1173
        %1175 = vrot.lane.b32.xlu0 %v300, 9
        %v1176 = vpop.permute.xlu0 %1175
        %1177 = vrot.lane.b32.xlu0 %v314, 9
        %v1178 = vpop.permute.xlu0 %1177
        %1179 = vrot.lane.b32.xlu0 %v301, 9
        %v1180 = vpop.permute.xlu0 %1179
        %1181 = vrot.lane.b32.xlu0 %v315, 9
        %v1182 = vpop.permute.xlu0 %1181
        %vm1183 = vcmp.lt.s32.totalorder %v337, 9
        %v1184 = vsel %vm1183, %v1180, %v1182
        %v1185 = vsel %vm1183, %v1178, %v1180
        %v1186 = vsel %vm1183, %v1176, %v1178
        %v1187 = vsel %vm1183, %v1174, %v1176
        %v1188 = vsel %vm1183, %v1172, %v1174
        %v1189 = vsel %vm1183, %v1170, %v1172
        %v1190 = vsel %vm1183, %v1168, %v1170
        %v1191 = vsel %vm1183, %v1182, %v1168
        %1192 = vst [vmem:[#allocation2 + $0x40] sm:$0xf] %v1191
        %1193 = vst [vmem:[#allocation2 + $0x48] sm:$0xf] %v1190
        %1194 = vst [vmem:[#allocation2 + $0x50] sm:$0xf] %v1189
        %1195 = vst [vmem:[#allocation2 + $0x58] sm:$0xf] %v1188
        %1196 = vst [vmem:[#allocation2 + $0x60] sm:$0xf] %v1187
        %1197 = vst [vmem:[#allocation2 + $0x68] sm:$0xf] %v1186
        %1198 = vst [vmem:[#allocation2 + $0x70] sm:$0xf] %v1185
        %1199 = vst [vmem:[#allocation2 + $0x78] sm:$0xf] %v1184
        %1200 = vrot.lane.b32.xlu0 %v298, 1
        %v1201 = vpop.permute.xlu0 %1200
        %1202 = vrot.lane.b32.xlu0 %v312, 1
        %v1203 = vpop.permute.xlu0 %1202
        %1204 = vrot.lane.b32.xlu0 %v299, 1
        %v1205 = vpop.permute.xlu0 %1204
        %1206 = vrot.lane.b32.xlu0 %v313, 1
        %v1207 = vpop.permute.xlu0 %1206
        %1208 = vrot.lane.b32.xlu0 %v300, 1
        %v1209 = vpop.permute.xlu0 %1208
        %1210 = vrot.lane.b32.xlu0 %v314, 1
        %v1211 = vpop.permute.xlu0 %1210
        %1212 = vrot.lane.b32.xlu0 %v301, 1
        %v1213 = vpop.permute.xlu0 %1212
        %1214 = vrot.lane.b32.xlu0 %v315, 1
        %v1215 = vpop.permute.xlu0 %1214
        %vm1216 = vcmp.lt.s32.totalorder %v337, 1
        %v1217 = vsel %vm1216, %v1213, %v1215
        %v1218 = vsel %vm1216, %v1211, %v1213
        %v1219 = vsel %vm1216, %v1209, %v1211
        %v1220 = vsel %vm1216, %v1207, %v1209
        %v1221 = vsel %vm1216, %v1205, %v1207
        %v1222 = vsel %vm1216, %v1203, %v1205
        %v1223 = vsel %vm1216, %v1201, %v1203
        %v1224 = vsel %vm1216, %v1215, %v1201
        %v1233 = vrot.slane %v1224, 4
        %v1234 = vrot.slane %v1223, 4
        %v1235 = vrot.slane %v1222, 4
        %v1236 = vrot.slane %v1221, 4
        %v1237 = vrot.slane %v1220, 4
        %v1238 = vrot.slane %v1219, 4
        %v1239 = vrot.slane %v1218, 4
        %v1240 = vrot.slane %v1217, 4
        %1249 = vst [vmem:[#allocation2 + $0x40] sm:$0xf0] %v1233
        %1250 = vst [vmem:[#allocation2 + $0x48] sm:$0xf0] %v1234
        %1251 = vst [vmem:[#allocation2 + $0x50] sm:$0xf0] %v1235
        %1252 = vst [vmem:[#allocation2 + $0x58] sm:$0xf0] %v1236
        %1253 = vst [vmem:[#allocation2 + $0x60] sm:$0xf0] %v1237
        %1254 = vst [vmem:[#allocation2 + $0x68] sm:$0xf0] %v1238
        %1255 = vst [vmem:[#allocation2 + $0x70] sm:$0xf0] %v1239
        %1256 = vst [vmem:[#allocation2 + $0x78] sm:$0xf0] %v1240
        %1257 = vst [vmem:[#allocation2 + $0x80] sm:$0xf] %v298
        %1258 = vst [vmem:[#allocation2 + $0x88] sm:$0xf] %v312
        %1259 = vst [vmem:[#allocation2 + $0x90] sm:$0xf] %v299
        %1260 = vst [vmem:[#allocation2 + $0x98] sm:$0xf] %v313
        %1261 = vst [vmem:[#allocation2 + $0xa0] sm:$0xf] %v300
        %1262 = vst [vmem:[#allocation2 + $0xa8] sm:$0xf] %v314
        %1263 = vst [vmem:[#allocation2 + $0xb0] sm:$0xf] %v301
        %1264 = vst [vmem:[#allocation2 + $0xb8] sm:$0xf] %v315
        %1265 = vrot.lane.b32.xlu0 %v298, 127
        %v1266 = vpop.permute.xlu0 %1265
        %1267 = vrot.lane.b32.xlu0 %v312, 127
        %v1268 = vpop.permute.xlu0 %1267
        %1269 = vrot.lane.b32.xlu0 %v299, 127
        %v1270 = vpop.permute.xlu0 %1269
        %1271 = vrot.lane.b32.xlu0 %v313, 127
        %v1272 = vpop.permute.xlu0 %1271
        %1273 = vrot.lane.b32.xlu0 %v300, 127
        %v1274 = vpop.permute.xlu0 %1273
        %1275 = vrot.lane.b32.xlu0 %v314, 127
        %v1276 = vpop.permute.xlu0 %1275
        %1277 = vrot.lane.b32.xlu0 %v301, 127
        %v1278 = vpop.permute.xlu0 %1277
        %1279 = vrot.lane.b32.xlu0 %v315, 127
        %v1280 = vpop.permute.xlu0 %1279
        %vm1281 = vcmp.lt.s32.totalorder %v337, 127
        %v1282 = vsel %vm1281, %v1278, %v1280
        %v1283 = vsel %vm1281, %v1276, %v1278
        %v1284 = vsel %vm1281, %v1274, %v1276
        %v1285 = vsel %vm1281, %v1272, %v1274
        %v1286 = vsel %vm1281, %v1270, %v1272
        %v1287 = vsel %vm1281, %v1268, %v1270
        %v1288 = vsel %vm1281, %v1266, %v1268
        %v1289 = vsel %vm1281, %v1280, %v1266
        %v1298 = vrot.slane %v1288, 4
        %v1299 = vrot.slane %v1287, 4
        %v1300 = vrot.slane %v1286, 4
        %v1301 = vrot.slane %v1285, 4
        %v1302 = vrot.slane %v1284, 4
        %v1303 = vrot.slane %v1283, 4
        %v1304 = vrot.slane %v1282, 4
        %v1305 = vrot.slane %v1289, 4
        %1314 = vst [vmem:[#allocation2 + $0x80] sm:$0xf0] %v1298
        %1315 = vst [vmem:[#allocation2 + $0x88] sm:$0xf0] %v1299
        %1316 = vst [vmem:[#allocation2 + $0x90] sm:$0xf0] %v1300
        %1317 = vst [vmem:[#allocation2 + $0x98] sm:$0xf0] %v1301
        %1318 = vst [vmem:[#allocation2 + $0xa0] sm:$0xf0] %v1302
        %1319 = vst [vmem:[#allocation2 + $0xa8] sm:$0xf0] %v1303
        %1320 = vst [vmem:[#allocation2 + $0xb0] sm:$0xf0] %v1304
        %1321 = vst [vmem:[#allocation2 + $0xb8] sm:$0xf0] %v1305
        %1322 = vrot.lane.b32.xlu0 %v298, 119
        %v1323 = vpop.permute.xlu0 %1322
        %1324 = vrot.lane.b32.xlu0 %v312, 119
        %v1325 = vpop.permute.xlu0 %1324
        %1326 = vrot.lane.b32.xlu0 %v299, 119
        %v1327 = vpop.permute.xlu0 %1326
        %1328 = vrot.lane.b32.xlu0 %v313, 119
        %v1329 = vpop.permute.xlu0 %1328
        %1330 = vrot.lane.b32.xlu0 %v300, 119
        %v1331 = vpop.permute.xlu0 %1330
        %1332 = vrot.lane.b32.xlu0 %v314, 119
        %v1333 = vpop.permute.xlu0 %1332
        %1334 = vrot.lane.b32.xlu0 %v301, 119
        %v1335 = vpop.permute.xlu0 %1334
        %1336 = vrot.lane.b32.xlu0 %v315, 119
        %v1337 = vpop.permute.xlu0 %1336
        %vm1338 = vcmp.lt.s32.totalorder %v337, 119
        %v1339 = vsel %vm1338, %v1335, %v1337
        %v1340 = vsel %vm1338, %v1333, %v1335
        %v1341 = vsel %vm1338, %v1331, %v1333
        %v1342 = vsel %vm1338, %v1329, %v1331
        %v1343 = vsel %vm1338, %v1327, %v1329
        %v1344 = vsel %vm1338, %v1325, %v1327
        %v1345 = vsel %vm1338, %v1323, %v1325
        %v1346 = vsel %vm1338, %v1337, %v1323
        %1347 = vst [vmem:[#allocation2 + $0xc0] sm:$0xf] %v1345
        %1348 = vst [vmem:[#allocation2 + $0xc8] sm:$0xf] %v1344
        %1349 = vst [vmem:[#allocation2 + $0xd0] sm:$0xf] %v1343
        %1350 = vst [vmem:[#allocation2 + $0xd8] sm:$0xf] %v1342
        %1351 = vst [vmem:[#allocation2 + $0xe0] sm:$0xf] %v1341
        %1352 = vst [vmem:[#allocation2 + $0xe8] sm:$0xf] %v1340
        %1353 = vst [vmem:[#allocation2 + $0xf0] sm:$0xf] %v1339
        %1354 = vst [vmem:[#allocation2 + $0xf8] sm:$0xf] %v1346
        %1355 = vrot.lane.b32.xlu0 %v298, 118
        %v1356 = vpop.permute.xlu0 %1355
        %1357 = vrot.lane.b32.xlu0 %v312, 118
        %v1358 = vpop.permute.xlu0 %1357
        %1359 = vrot.lane.b32.xlu0 %v299, 118
        %v1360 = vpop.permute.xlu0 %1359
        %1361 = vrot.lane.b32.xlu0 %v313, 118
        %v1362 = vpop.permute.xlu0 %1361
        %1363 = vrot.lane.b32.xlu0 %v300, 118
        %v1364 = vpop.permute.xlu0 %1363
        %1365 = vrot.lane.b32.xlu0 %v314, 118
        %v1366 = vpop.permute.xlu0 %1365
        %1367 = vrot.lane.b32.xlu0 %v301, 118
        %v1368 = vpop.permute.xlu0 %1367
        %1369 = vrot.lane.b32.xlu0 %v315, 118
        %v1370 = vpop.permute.xlu0 %1369
        %vm1371 = vcmp.lt.s32.totalorder %v337, 118
        %v1372 = vsel %vm1371, %v1368, %v1370
        %v1373 = vsel %vm1371, %v1366, %v1368
        %v1374 = vsel %vm1371, %v1364, %v1366
        %v1375 = vsel %vm1371, %v1362, %v1364
        %v1376 = vsel %vm1371, %v1360, %v1362
        %v1377 = vsel %vm1371, %v1358, %v1360
        %v1378 = vsel %vm1371, %v1356, %v1358
        %v1379 = vsel %vm1371, %v1370, %v1356
        %v1388 = vrot.slane %v1378, 4
        %v1389 = vrot.slane %v1377, 4
        %v1390 = vrot.slane %v1376, 4
        %v1391 = vrot.slane %v1375, 4
        %v1392 = vrot.slane %v1374, 4
        %v1393 = vrot.slane %v1373, 4
        %v1394 = vrot.slane %v1372, 4
        %v1395 = vrot.slane %v1379, 4
        %1404 = vst [vmem:[#allocation2 + $0xc0] sm:$0xf0] %v1388
        %1405 = vst [vmem:[#allocation2 + $0xc8] sm:$0xf0] %v1389
        %1406 = vst [vmem:[#allocation2 + $0xd0] sm:$0xf0] %v1390
        %1407 = vst [vmem:[#allocation2 + $0xd8] sm:$0xf0] %v1391
        %1408 = vst [vmem:[#allocation2 + $0xe0] sm:$0xf0] %v1392
        %1409 = vst [vmem:[#allocation2 + $0xe8] sm:$0xf0] %v1393
        %1410 = vst [vmem:[#allocation2 + $0xf0] sm:$0xf0] %v1394
        %1411 = vst [vmem:[#allocation2 + $0xf8] sm:$0xf0] %v1395
        %1412 = vrot.lane.b32.xlu0 %v298, 117
        %v1413 = vpop.permute.xlu0 %1412
        %1414 = vrot.lane.b32.xlu0 %v312, 117
        %v1415 = vpop.permute.xlu0 %1414
        %1416 = vrot.lane.b32.xlu0 %v299, 117
        %v1417 = vpop.permute.xlu0 %1416
        %1418 = vrot.lane.b32.xlu0 %v313, 117
        %v1419 = vpop.permute.xlu0 %1418
        %1420 = vrot.lane.b32.xlu0 %v300, 117
        %v1421 = vpop.permute.xlu0 %1420
        %1422 = vrot.lane.b32.xlu0 %v314, 117
        %v1423 = vpop.permute.xlu0 %1422
        %1424 = vrot.lane.b32.xlu0 %v301, 117
        %v1425 = vpop.permute.xlu0 %1424
        %1426 = vrot.lane.b32.xlu0 %v315, 117
        %v1427 = vpop.permute.xlu0 %1426
        %vm1428 = vcmp.lt.s32.totalorder %v337, 117
        %v1429 = vsel %vm1428, %v1425, %v1427
        %v1430 = vsel %vm1428, %v1423, %v1425
        %v1431 = vsel %vm1428, %v1421, %v1423
        %v1432 = vsel %vm1428, %v1419, %v1421
        %v1433 = vsel %vm1428, %v1417, %v1419
        %v1434 = vsel %vm1428, %v1415, %v1417
        %v1435 = vsel %vm1428, %v1413, %v1415
        %v1436 = vsel %vm1428, %v1427, %v1413
        %1437 = vst [vmem:[#allocation2 + $0x100] sm:$0xf] %v1435
        %1438 = vst [vmem:[#allocation2 + $0x108] sm:$0xf] %v1434
        %1439 = vst [vmem:[#allocation2 + $0x110] sm:$0xf] %v1433
        %1440 = vst [vmem:[#allocation2 + $0x118] sm:$0xf] %v1432
        %1441 = vst [vmem:[#allocation2 + $0x120] sm:$0xf] %v1431
        %1442 = vst [vmem:[#allocation2 + $0x128] sm:$0xf] %v1430
        %1443 = vst [vmem:[#allocation2 + $0x130] sm:$0xf] %v1429
        %1444 = vst [vmem:[#allocation2 + $0x138] sm:$0xf] %v1436
        %s1445 = scalar_lea.vmem %s1, 4
        %v1446 = vld [vmem:[%s1445] sm:$0xf]
        %v1447 = vld [vmem:[#allocation2] sm:$0xff]
        %v1448 = vld [vmem:[#allocation2 + $0x8] sm:$0xff]
        %v1449 = vld [vmem:[#allocation2 + $0x10] sm:$0xff]
        %v1450 = vld [vmem:[#allocation2 + $0x18] sm:$0xff]
        %v1451 = vld [vmem:[#allocation2 + $0x20] sm:$0xff]
        %v1452 = vld [vmem:[#allocation2 + $0x28] sm:$0xff]
        %v1453 = vld [vmem:[#allocation2 + $0x30] sm:$0xff]
        %v1454 = vld [vmem:[#allocation2 + $0x38] sm:$0xff]
        %v1455 = vld [vmem:[#allocation2 + $0x40] sm:$0xff]
        %v1456 = vld [vmem:[#allocation2 + $0x48] sm:$0xff]
        %v1457 = vld [vmem:[#allocation2 + $0x50] sm:$0xff]
        %v1458 = vld [vmem:[#allocation2 + $0x58] sm:$0xff]
        %v1459 = vld [vmem:[#allocation2 + $0x60] sm:$0xff]
        %v1460 = vld [vmem:[#allocation2 + $0x68] sm:$0xff]
        %v1461 = vld [vmem:[#allocation2 + $0x70] sm:$0xff]
        %v1462 = vld [vmem:[#allocation2 + $0x78] sm:$0xff]
        %v1463 = vld [vmem:[#allocation2 + $0x80] sm:$0xff]
        %v1464 = vld [vmem:[#allocation2 + $0x88] sm:$0xff]
        %v1465 = vld [vmem:[#allocation2 + $0x90] sm:$0xff]
        %v1466 = vld [vmem:[#allocation2 + $0x98] sm:$0xff]
        %v1467 = vld [vmem:[#allocation2 + $0xa0] sm:$0xff]
        %v1468 = vld [vmem:[#allocation2 + $0xa8] sm:$0xff]
        %v1469 = vld [vmem:[#allocation2 + $0xb0] sm:$0xff]
        %v1470 = vld [vmem:[#allocation2 + $0xb8] sm:$0xff]
        %v1471 = vld [vmem:[#allocation2 + $0xc0] sm:$0xff]
        %v1472 = vld [vmem:[#allocation2 + $0xc8] sm:$0xff]
        %v1473 = vld [vmem:[#allocation2 + $0xd0] sm:$0xff]
        %v1474 = vld [vmem:[#allocation2 + $0xd8] sm:$0xff]
        %v1475 = vld [vmem:[#allocation2 + $0xe0] sm:$0xff]
        %v1476 = vld [vmem:[#allocation2 + $0xe8] sm:$0xff]
        %v1477 = vld [vmem:[#allocation2 + $0xf0] sm:$0xff]
        %v1478 = vld [vmem:[#allocation2 + $0xf8] sm:$0xff]
        %v1479 = vld [vmem:[#allocation2 + $0x100] sm:$0xf]
        %v1480 = vld [vmem:[#allocation2 + $0x108] sm:$0xf]
        %v1481 = vld [vmem:[#allocation2 + $0x110] sm:$0xf]
        %v1482 = vld [vmem:[#allocation2 + $0x118] sm:$0xf]
        %v1483 = vld [vmem:[#allocation2 + $0x120] sm:$0xf]
        %v1484 = vld [vmem:[#allocation2 + $0x128] sm:$0xf]
        %v1485 = vld [vmem:[#allocation2 + $0x130] sm:$0xf]
        %v1486 = vld [vmem:[#allocation2 + $0x138] sm:$0xf]
        %v1488 = vsel %vm756, %v1446, 0
        %v1491 = vsel %vm760, %v1479, 0
        %v1494 = vsel %vm760, %v1480, 0
        %v1497 = vsel %vm760, %v1481, 0
        %v1500 = vsel %vm760, %v1482, 0
        %v1503 = vsel %vm760, %v1483, 0
        %v1506 = vsel %vm760, %v1484, 0
        %v1509 = vsel %vm760, %v1485, 0
        %v1512 = vsel %vm760, %v1486, 0
        %1514 = vmatprep.subr.mxu0 %v1448
        %1515 = vmatpush1.msra.mxu0 %v1447
        %1516 = vmatprep.subr.mxu0 %v1456
        %1517 = vmatpush1.msra.mxu0 %v1455
        %1518 = vmatprep.subr.mxu0 %v1464
        %1519 = vmatpush1.msra.mxu0 %v1463
        %1520 = vmatprep.subr.mxu0 %v1472
        %1521 = vmatpush1.msra.mxu0 %v1471
        %1522 = vmatprep.subr.mxu0 %v1494
        %1523 = vmatpush1.msra.mxu0 %v1491
        %1524 = vmatprep.subr.mxu0 0.0
        %1525 = vmatpush1.msra.mxu0 0.0
        %1526 = vmatprep.subr.mxu0 0.0
        %1527 = vmatpush1.msra.mxu0 0.0
        %1528 = vmatprep.subr.mxu0 0.0
        %1529 = vmatpush1.msra.mxu0 0.0
        %1530 = vmatprep.subr.mxu0 0.0
        %1531 = vmatpush1.msra.mxu0 0.0
        %1532 = vmatprep.subr.mxu0 0.0
        %1533 = vmatpush1.msra.mxu0 0.0
        %1534 = vmatprep.subr.mxu0 0.0
        %1535 = vmatpush1.msra.mxu0 0.0
        %1536 = vmatprep.subr.mxu0 0.0
        %1537 = vmatpush1.msra.mxu0 0.0
        %1538 = vmatprep.subr.mxu0 0.0
        %1539 = vmatpush1.msra.mxu0 0.0
        %1540 = vmatprep.subr.mxu0 0.0
        %1541 = vmatpush1.msra.mxu0 0.0
        %1542 = vmatprep.subr.mxu0 0.0
        %1543 = vmatpush1.msra.mxu0 0.0
        %1544 = vmatprep.subr.mxu0 0.0
        %1545 = vmatpush1.msra.mxu0 0.0
        %1546 = vmatprep.subr.mxu0 0.0
        %1547 = vmatpush1.msra.mxu0 0.0
        %1548 = vmatprep.subr.mxu0 0.0
        %1549 = vmatpush1.msra.mxu0 0.0
        %1550 = vmatprep.subr.mxu0 0.0
        %1551 = vmatpush1.msra.mxu0 0.0
        %1552 = vmatprep.subr.mxu0 0.0
        %1553 = vmatpush1.msra.mxu0 0.0
        %1554 = vmatprep.subr.mxu0 0.0
        %1555 = vmatpush1.msra.mxu0 0.0
        %1556 = vmatprep.subr.mxu0 0.0
        %1557 = vmatpush1.msra.mxu0 0.0
        %1558 = vmatprep.subr.mxu0 0.0
        %1559 = vmatpush1.msra.mxu0 0.0
        %1560 = vmatprep.subr.mxu0 0.0
        %1561 = vmatpush1.msra.mxu0 0.0
        %1562 = vmatprep.subr.mxu0 0.0
        %1563 = vmatpush1.msra.mxu0 0.0
        %1564 = vmatprep.subr.mxu0 0.0
        %1565 = vmatpush1.msra.mxu0 0.0
        %1566 = vmatprep.subr.mxu0 0.0
        %1567 = vmatpush1.msra.mxu0 0.0
        %1568 = vmatprep.subr.mxu0 0.0
        %1569 = vmatpush1.msra.mxu0 0.0
        %1570 = vmatprep.subr.mxu0 0.0
        %1571 = vmatpush1.msra.mxu0 0.0
        %1572 = vmatprep.subr.mxu0 0.0
        %1573 = vmatpush1.msra.mxu0 0.0
        %1574 = vmatprep.subr.mxu0 0.0
        %1575 = vmatpush1.msra.mxu0 0.0
        %1576 = vmatprep.subr.mxu0 0.0
        %1577 = vmatpush1.msra.mxu0 0.0
        %1578 = vmatprep.mubr.f32.mxu0 0.0
        %1579 = vmatmul.mubr.f32.gmra.mrb[0].mxu0 %v1488
        %v1580 = vpop.f32.mrb[0].mxu0
        %v1581 = vadd.f32 0.0, %v1580
        %v1582 = vpop.f32.mrb[0].mxu0
        %v1583 = vadd.f32 0.0, %v1582
        %1584 = vdwg.mxu0
        %1585 = vmatprep.subr.mxu0 %v1450
        %1586 = vmatpush1.msra.mxu0 %v1449
        %1587 = vmatprep.subr.mxu0 %v1458
        %1588 = vmatpush1.msra.mxu0 %v1457
        %1589 = vmatprep.subr.mxu0 %v1466
        %1590 = vmatpush1.msra.mxu0 %v1465
        %1591 = vmatprep.subr.mxu0 %v1474
        %1592 = vmatpush1.msra.mxu0 %v1473
        %1593 = vmatprep.subr.mxu0 %v1500
        %1594 = vmatpush1.msra.mxu0 %v1497
        %1595 = vmatprep.subr.mxu0 0.0
        %1596 = vmatpush1.msra.mxu0 0.0
        %1597 = vmatprep.subr.mxu0 0.0
        %1598 = vmatpush1.msra.mxu0 0.0
        %1599 = vmatprep.subr.mxu0 0.0
        %1600 = vmatpush1.msra.mxu0 0.0
        %1601 = vmatprep.subr.mxu0 0.0
        %1602 = vmatpush1.msra.mxu0 0.0
        %1603 = vmatprep.subr.mxu0 0.0
        %1604 = vmatpush1.msra.mxu0 0.0
        %1605 = vmatprep.subr.mxu0 0.0
        %1606 = vmatpush1.msra.mxu0 0.0
        %1607 = vmatprep.subr.mxu0 0.0
        %1608 = vmatpush1.msra.mxu0 0.0
        %1609 = vmatprep.subr.mxu0 0.0
        %1610 = vmatpush1.msra.mxu0 0.0
        %1611 = vmatprep.subr.mxu0 0.0
        %1612 = vmatpush1.msra.mxu0 0.0
        %1613 = vmatprep.subr.mxu0 0.0
        %1614 = vmatpush1.msra.mxu0 0.0
        %1615 = vmatprep.subr.mxu0 0.0
        %1616 = vmatpush1.msra.mxu0 0.0
        %1617 = vmatprep.subr.mxu0 0.0
        %1618 = vmatpush1.msra.mxu0 0.0
        %1619 = vmatprep.subr.mxu0 0.0
        %1620 = vmatpush1.msra.mxu0 0.0
        %1621 = vmatprep.subr.mxu0 0.0
        %1622 = vmatpush1.msra.mxu0 0.0
        %1623 = vmatprep.subr.mxu0 0.0
        %1624 = vmatpush1.msra.mxu0 0.0
        %1625 = vmatprep.subr.mxu0 0.0
        %1626 = vmatpush1.msra.mxu0 0.0
        %1627 = vmatprep.subr.mxu0 0.0
        %1628 = vmatpush1.msra.mxu0 0.0
        %1629 = vmatprep.subr.mxu0 0.0
        %1630 = vmatpush1.msra.mxu0 0.0
        %1631 = vmatprep.subr.mxu0 0.0
        %1632 = vmatpush1.msra.mxu0 0.0
        %1633 = vmatprep.subr.mxu0 0.0
        %1634 = vmatpush1.msra.mxu0 0.0
        %1635 = vmatprep.subr.mxu0 0.0
        %1636 = vmatpush1.msra.mxu0 0.0
        %1637 = vmatprep.subr.mxu0 0.0
        %1638 = vmatpush1.msra.mxu0 0.0
        %1639 = vmatprep.subr.mxu0 0.0
        %1640 = vmatpush1.msra.mxu0 0.0
        %1641 = vmatprep.subr.mxu0 0.0
        %1642 = vmatpush1.msra.mxu0 0.0
        %1643 = vmatprep.subr.mxu0 0.0
        %1644 = vmatpush1.msra.mxu0 0.0
        %1645 = vmatprep.subr.mxu0 0.0
        %1646 = vmatpush1.msra.mxu0 0.0
        %1647 = vmatprep.subr.mxu0 0.0
        %1648 = vmatpush1.msra.mxu0 0.0
        %1649 = vmatprep.mubr.f32.mxu0 0.0
        %1650 = vmatmul.mubr.f32.gmra.mrb[0].mxu0 %v1488
        %v1651 = vpop.f32.mrb[0].mxu0
        %v1652 = vadd.f32 0.0, %v1651
        %v1653 = vpop.f32.mrb[0].mxu0
        %v1654 = vadd.f32 0.0, %v1653
        %1655 = vdwg.mxu0
        %1656 = vmatprep.subr.mxu0 %v1452
        %1657 = vmatpush1.msra.mxu0 %v1451
        %1658 = vmatprep.subr.mxu0 %v1460
        %1659 = vmatpush1.msra.mxu0 %v1459
        %1660 = vmatprep.subr.mxu0 %v1468
        %1661 = vmatpush1.msra.mxu0 %v1467
        %1662 = vmatprep.subr.mxu0 %v1476
        %1663 = vmatpush1.msra.mxu0 %v1475
        %1664 = vmatprep.subr.mxu0 %v1506
        %1665 = vmatpush1.msra.mxu0 %v1503
        %1666 = vmatprep.subr.mxu0 0.0
        %1667 = vmatpush1.msra.mxu0 0.0
        %1668 = vmatprep.subr.mxu0 0.0
        %1669 = vmatpush1.msra.mxu0 0.0
        %1670 = vmatprep.subr.mxu0 0.0
        %1671 = vmatpush1.msra.mxu0 0.0
        %1672 = vmatprep.subr.mxu0 0.0
        %1673 = vmatpush1.msra.mxu0 0.0
        %1674 = vmatprep.subr.mxu0 0.0
        %1675 = vmatpush1.msra.mxu0 0.0
        %1676 = vmatprep.subr.mxu0 0.0
        %1677 = vmatpush1.msra.mxu0 0.0
        %1678 = vmatprep.subr.mxu0 0.0
        %1679 = vmatpush1.msra.mxu0 0.0
        %1680 = vmatprep.subr.mxu0 0.0
        %1681 = vmatpush1.msra.mxu0 0.0
        %1682 = vmatprep.subr.mxu0 0.0
        %1683 = vmatpush1.msra.mxu0 0.0
        %1684 = vmatprep.subr.mxu0 0.0
        %1685 = vmatpush1.msra.mxu0 0.0
        %1686 = vmatprep.subr.mxu0 0.0
        %1687 = vmatpush1.msra.mxu0 0.0
        %1688 = vmatprep.subr.mxu0 0.0
        %1689 = vmatpush1.msra.mxu0 0.0
        %1690 = vmatprep.subr.mxu0 0.0
        %1691 = vmatpush1.msra.mxu0 0.0
        %1692 = vmatprep.subr.mxu0 0.0
        %1693 = vmatpush1.msra.mxu0 0.0
        %1694 = vmatprep.subr.mxu0 0.0
        %1695 = vmatpush1.msra.mxu0 0.0
        %1696 = vmatprep.subr.mxu0 0.0
        %1697 = vmatpush1.msra.mxu0 0.0
        %1698 = vmatprep.subr.mxu0 0.0
        %1699 = vmatpush1.msra.mxu0 0.0
        %1700 = vmatprep.subr.mxu0 0.0
        %1701 = vmatpush1.msra.mxu0 0.0
        %1702 = vmatprep.subr.mxu0 0.0
        %1703 = vmatpush1.msra.mxu0 0.0
        %1704 = vmatprep.subr.mxu0 0.0
        %1705 = vmatpush1.msra.mxu0 0.0
        %1706 = vmatprep.subr.mxu0 0.0
        %1707 = vmatpush1.msra.mxu0 0.0
        %1708 = vmatprep.subr.mxu0 0.0
        %1709 = vmatpush1.msra.mxu0 0.0
        %1710 = vmatprep.subr.mxu0 0.0
        %1711 = vmatpush1.msra.mxu0 0.0
        %1712 = vmatprep.subr.mxu0 0.0
        %1713 = vmatpush1.msra.mxu0 0.0
        %1714 = vmatprep.subr.mxu0 0.0
        %1715 = vmatpush1.msra.mxu0 0.0
        %1716 = vmatprep.subr.mxu0 0.0
        %1717 = vmatpush1.msra.mxu0 0.0
        %1718 = vmatprep.subr.mxu0 0.0
        %1719 = vmatpush1.msra.mxu0 0.0
        %1720 = vmatprep.mubr.f32.mxu0 0.0
        %1721 = vmatmul.mubr.f32.gmra.mrb[0].mxu0 %v1488
        %v1722 = vpop.f32.mrb[0].mxu0
        %v1723 = vadd.f32 0.0, %v1722
        %v1724 = vpop.f32.mrb[0].mxu0
        %v1725 = vadd.f32 0.0, %v1724
        %1726 = vdwg.mxu0
        %1727 = vmatprep.subr.mxu0 %v1454
        %1728 = vmatpush1.msra.mxu0 %v1453
        %1729 = vmatprep.subr.mxu0 %v1462
        %1730 = vmatpush1.msra.mxu0 %v1461
        %1731 = vmatprep.subr.mxu0 %v1470
        %1732 = vmatpush1.msra.mxu0 %v1469
        %1733 = vmatprep.subr.mxu0 %v1478
        %1734 = vmatpush1.msra.mxu0 %v1477
        %1735 = vmatprep.subr.mxu0 %v1512
        %1736 = vmatpush1.msra.mxu0 %v1509
        %1737 = vmatprep.subr.mxu0 0.0
        %1738 = vmatpush1.msra.mxu0 0.0
        %1739 = vmatprep.subr.mxu0 0.0
        %1740 = vmatpush1.msra.mxu0 0.0
        %1741 = vmatprep.subr.mxu0 0.0
        %1742 = vmatpush1.msra.mxu0 0.0
        %1743 = vmatprep.subr.mxu0 0.0
        %1744 = vmatpush1.msra.mxu0 0.0
        %1745 = vmatprep.subr.mxu0 0.0
        %1746 = vmatpush1.msra.mxu0 0.0
        %1747 = vmatprep.subr.mxu0 0.0
        %1748 = vmatpush1.msra.mxu0 0.0
        %1749 = vmatprep.subr.mxu0 0.0
        %1750 = vmatpush1.msra.mxu0 0.0
        %1751 = vmatprep.subr.mxu0 0.0
        %1752 = vmatpush1.msra.mxu0 0.0
        %1753 = vmatprep.subr.mxu0 0.0
        %1754 = vmatpush1.msra.mxu0 0.0
        %1755 = vmatprep.subr.mxu0 0.0
        %1756 = vmatpush1.msra.mxu0 0.0
        %1757 = vmatprep.subr.mxu0 0.0
        %1758 = vmatpush1.msra.mxu0 0.0
        %1759 = vmatprep.subr.mxu0 0.0
        %1760 = vmatpush1.msra.mxu0 0.0
        %1761 = vmatprep.subr.mxu0 0.0
        %1762 = vmatpush1.msra.mxu0 0.0
        %1763 = vmatprep.subr.mxu0 0.0
        %1764 = vmatpush1.msra.mxu0 0.0
        %1765 = vmatprep.subr.mxu0 0.0
        %1766 = vmatpush1.msra.mxu0 0.0
        %1767 = vmatprep.subr.mxu0 0.0
        %1768 = vmatpush1.msra.mxu0 0.0
        %1769 = vmatprep.subr.mxu0 0.0
        %1770 = vmatpush1.msra.mxu0 0.0
        %1771 = vmatprep.subr.mxu0 0.0
        %1772 = vmatpush1.msra.mxu0 0.0
        %1773 = vmatprep.subr.mxu0 0.0
        %1774 = vmatpush1.msra.mxu0 0.0
        %1775 = vmatprep.subr.mxu0 0.0
        %1776 = vmatpush1.msra.mxu0 0.0
        %1777 = vmatprep.subr.mxu0 0.0
        %1778 = vmatpush1.msra.mxu0 0.0
        %1779 = vmatprep.subr.mxu0 0.0
        %1780 = vmatpush1.msra.mxu0 0.0
        %1781 = vmatprep.subr.mxu0 0.0
        %1782 = vmatpush1.msra.mxu0 0.0
        %1783 = vmatprep.subr.mxu0 0.0
        %1784 = vmatpush1.msra.mxu0 0.0
        %1785 = vmatprep.subr.mxu0 0.0
        %1786 = vmatpush1.msra.mxu0 0.0
        %1787 = vmatprep.subr.mxu0 0.0
        %1788 = vmatpush1.msra.mxu0 0.0
        %1789 = vmatprep.subr.mxu0 0.0
        %1790 = vmatpush1.msra.mxu0 0.0
        %1791 = vmatprep.mubr.f32.mxu0 0.0
        %1792 = vmatmul.mubr.f32.gmra.mrb[0].mxu0 %v1488
        %v1793 = vpop.f32.mrb[0].mxu0
        %v1794 = vadd.f32 0.0, %v1793
        %v1795 = vpop.f32.mrb[0].mxu0
        %v1796 = vadd.f32 0.0, %v1795
        %1797 = vdwg.mxu0
        %v1798 = vadd.f32 %v1069, %v1581
        %v1799 = vadd.f32 %v1070, %v1583
        %v1800 = vadd.f32 %v1071, %v1652
        %v1801 = vadd.f32 %v1072, %v1654
        %v1802 = vadd.f32 %v1073, %v1723
        %v1803 = vadd.f32 %v1074, %v1725
        %v1804 = vadd.f32 %v1075, %v1794
        %v1805 = vadd.f32 %v1076, %v1796
        %1806 = vrot.lane.b32.xlu0 %v298, 39
        %v1807 = vpop.permute.xlu0 %1806
        %1808 = vrot.lane.b32.xlu0 %v312, 39
        %v1809 = vpop.permute.xlu0 %1808
        %1810 = vrot.lane.b32.xlu0 %v299, 39
        %v1811 = vpop.permute.xlu0 %1810
        %1812 = vrot.lane.b32.xlu0 %v313, 39
        %v1813 = vpop.permute.xlu0 %1812
        %1814 = vrot.lane.b32.xlu0 %v300, 39
        %v1815 = vpop.permute.xlu0 %1814
        %1816 = vrot.lane.b32.xlu0 %v314, 39
        %v1817 = vpop.permute.xlu0 %1816
        %1818 = vrot.lane.b32.xlu0 %v301, 39
        %v1819 = vpop.permute.xlu0 %1818
        %1820 = vrot.lane.b32.xlu0 %v315, 39
        %v1821 = vpop.permute.xlu0 %1820
        %vm1822 = vcmp.lt.s32.totalorder %v337, 39
        %v1823 = vsel %vm1822, %v1819, %v1821
        %v1824 = vsel %vm1822, %v1817, %v1819
        %v1825 = vsel %vm1822, %v1815, %v1817
        %v1826 = vsel %vm1822, %v1813, %v1815
        %v1827 = vsel %vm1822, %v1811, %v1813
        %v1828 = vsel %vm1822, %v1809, %v1811
        %v1829 = vsel %vm1822, %v1807, %v1809
        %v1830 = vsel %vm1822, %v1821, %v1807
        %1831 = vst [vmem:[#allocation2] sm:$0xf] %v1829
        %1832 = vst [vmem:[#allocation2 + $0x8] sm:$0xf] %v1828
        %1833 = vst [vmem:[#allocation2 + $0x10] sm:$0xf] %v1827
        %1834 = vst [vmem:[#allocation2 + $0x18] sm:$0xf] %v1826
        %1835 = vst [vmem:[#allocation2 + $0x20] sm:$0xf] %v1825
        %1836 = vst [vmem:[#allocation2 + $0x28] sm:$0xf] %v1824
        %1837 = vst [vmem:[#allocation2 + $0x30] sm:$0xf] %v1823
        %1838 = vst [vmem:[#allocation2 + $0x38] sm:$0xf] %v1830
        %1839 = vrot.lane.b32.xlu0 %v298, 38
        %v1840 = vpop.permute.xlu0 %1839
        %1841 = vrot.lane.b32.xlu0 %v312, 38
        %v1842 = vpop.permute.xlu0 %1841
        %1843 = vrot.lane.b32.xlu0 %v299, 38
        %v1844 = vpop.permute.xlu0 %1843
        %1845 = vrot.lane.b32.xlu0 %v313, 38
        %v1846 = vpop.permute.xlu0 %1845
        %1847 = vrot.lane.b32.xlu0 %v300, 38
        %v1848 = vpop.permute.xlu0 %1847
        %1849 = vrot.lane.b32.xlu0 %v314, 38
        %v1850 = vpop.permute.xlu0 %1849
        %1851 = vrot.lane.b32.xlu0 %v301, 38
        %v1852 = vpop.permute.xlu0 %1851
        %1853 = vrot.lane.b32.xlu0 %v315, 38
        %v1854 = vpop.permute.xlu0 %1853
        %vm1855 = vcmp.lt.s32.totalorder %v337, 38
        %v1856 = vsel %vm1855, %v1852, %v1854
        %v1857 = vsel %vm1855, %v1850, %v1852
        %v1858 = vsel %vm1855, %v1848, %v1850
        %v1859 = vsel %vm1855, %v1846, %v1848
        %v1860 = vsel %vm1855, %v1844, %v1846
        %v1861 = vsel %vm1855, %v1842, %v1844
        %v1862 = vsel %vm1855, %v1840, %v1842
        %v1863 = vsel %vm1855, %v1854, %v1840
        %v1872 = vrot.slane %v1862, 4
        %v1873 = vrot.slane %v1861, 4
        %v1874 = vrot.slane %v1860, 4
        %v1875 = vrot.slane %v1859, 4
        %v1876 = vrot.slane %v1858, 4
        %v1877 = vrot.slane %v1857, 4
        %v1878 = vrot.slane %v1856, 4
        %v1879 = vrot.slane %v1863, 4
        %1888 = vst [vmem:[#allocation2] sm:$0xf0] %v1872
        %1889 = vst [vmem:[#allocation2 + $0x8] sm:$0xf0] %v1873
        %1890 = vst [vmem:[#allocation2 + $0x10] sm:$0xf0] %v1874
        %1891 = vst [vmem:[#allocation2 + $0x18] sm:$0xf0] %v1875
        %1892 = vst [vmem:[#allocation2 + $0x20] sm:$0xf0] %v1876
        %1893 = vst [vmem:[#allocation2 + $0x28] sm:$0xf0] %v1877
        %1894 = vst [vmem:[#allocation2 + $0x30] sm:$0xf0] %v1878
        %1895 = vst [vmem:[#allocation2 + $0x38] sm:$0xf0] %v1879
        %1896 = vrot.lane.b32.xlu0 %v298, 37
        %v1897 = vpop.permute.xlu0 %1896
        %1898 = vrot.lane.b32.xlu0 %v312, 37
        %v1899 = vpop.permute.xlu0 %1898
        %1900 = vrot.lane.b32.xlu0 %v299, 37
        %v1901 = vpop.permute.xlu0 %1900
        %1902 = vrot.lane.b32.xlu0 %v313, 37
        %v1903 = vpop.permute.xlu0 %1902
        %1904 = vrot.lane.b32.xlu0 %v300, 37
        %v1905 = vpop.permute.xlu0 %1904
        %1906 = vrot.lane.b32.xlu0 %v314, 37
        %v1907 = vpop.permute.xlu0 %1906
        %1908 = vrot.lane.b32.xlu0 %v301, 37
        %v1909 = vpop.permute.xlu0 %1908
        %1910 = vrot.lane.b32.xlu0 %v315, 37
        %v1911 = vpop.permute.xlu0 %1910
        %vm1912 = vcmp.lt.s32.totalorder %v337, 37
        %v1913 = vsel %vm1912, %v1909, %v1911
        %v1914 = vsel %vm1912, %v1907, %v1909
        %v1915 = vsel %vm1912, %v1905, %v1907
        %v1916 = vsel %vm1912, %v1903, %v1905
        %v1917 = vsel %vm1912, %v1901, %v1903
        %v1918 = vsel %vm1912, %v1899, %v1901
        %v1919 = vsel %vm1912, %v1897, %v1899
        %v1920 = vsel %vm1912, %v1911, %v1897
        %1921 = vst [vmem:[#allocation2 + $0x40] sm:$0xf] %v1919
        %1922 = vst [vmem:[#allocation2 + $0x48] sm:$0xf] %v1918
        %1923 = vst [vmem:[#allocation2 + $0x50] sm:$0xf] %v1917
        %1924 = vst [vmem:[#allocation2 + $0x58] sm:$0xf] %v1916
        %1925 = vst [vmem:[#allocation2 + $0x60] sm:$0xf] %v1915
        %1926 = vst [vmem:[#allocation2 + $0x68] sm:$0xf] %v1914
        %1927 = vst [vmem:[#allocation2 + $0x70] sm:$0xf] %v1913
        %1928 = vst [vmem:[#allocation2 + $0x78] sm:$0xf] %v1920
        %1929 = vrot.lane.b32.xlu0 %v298, 29
        %v1930 = vpop.permute.xlu0 %1929
        %1931 = vrot.lane.b32.xlu0 %v312, 29
        %v1932 = vpop.permute.xlu0 %1931
        %1933 = vrot.lane.b32.xlu0 %v299, 29
        %v1934 = vpop.permute.xlu0 %1933
        %1935 = vrot.lane.b32.xlu0 %v313, 29
        %v1936 = vpop.permute.xlu0 %1935
        %1937 = vrot.lane.b32.xlu0 %v300, 29
        %v1938 = vpop.permute.xlu0 %1937
        %1939 = vrot.lane.b32.xlu0 %v314, 29
        %v1940 = vpop.permute.xlu0 %1939
        %1941 = vrot.lane.b32.xlu0 %v301, 29
        %v1942 = vpop.permute.xlu0 %1941
        %1943 = vrot.lane.b32.xlu0 %v315, 29
        %v1944 = vpop.permute.xlu0 %1943
        %vm1945 = vcmp.lt.s32.totalorder %v337, 29
        %v1946 = vsel %vm1945, %v1942, %v1944
        %v1947 = vsel %vm1945, %v1940, %v1942
        %v1948 = vsel %vm1945, %v1938, %v1940
        %v1949 = vsel %vm1945, %v1936, %v1938
        %v1950 = vsel %vm1945, %v1934, %v1936
        %v1951 = vsel %vm1945, %v1932, %v1934
        %v1952 = vsel %vm1945, %v1930, %v1932
        %v1953 = vsel %vm1945, %v1944, %v1930
        %v1962 = vrot.slane %v1952, 4
        %v1963 = vrot.slane %v1951, 4
        %v1964 = vrot.slane %v1950, 4
        %v1965 = vrot.slane %v1949, 4
        %v1966 = vrot.slane %v1948, 4
        %v1967 = vrot.slane %v1947, 4
        %v1968 = vrot.slane %v1946, 4
        %v1969 = vrot.slane %v1953, 4
        %1978 = vst [vmem:[#allocation2 + $0x40] sm:$0xf0] %v1962
        %1979 = vst [vmem:[#allocation2 + $0x48] sm:$0xf0] %v1963
        %1980 = vst [vmem:[#allocation2 + $0x50] sm:$0xf0] %v1964
        %1981 = vst [vmem:[#allocation2 + $0x58] sm:$0xf0] %v1965
        %1982 = vst [vmem:[#allocation2 + $0x60] sm:$0xf0] %v1966
        %1983 = vst [vmem:[#allocation2 + $0x68] sm:$0xf0] %v1967
        %1984 = vst [vmem:[#allocation2 + $0x70] sm:$0xf0] %v1968
        %1985 = vst [vmem:[#allocation2 + $0x78] sm:$0xf0] %v1969
        %1986 = vrot.lane.b32.xlu0 %v298, 28
        %v1987 = vpop.permute.xlu0 %1986
        %1988 = vrot.lane.b32.xlu0 %v312, 28
        %v1989 = vpop.permute.xlu0 %1988
        %1990 = vrot.lane.b32.xlu0 %v299, 28
        %v1991 = vpop.permute.xlu0 %1990
        %1992 = vrot.lane.b32.xlu0 %v313, 28
        %v1993 = vpop.permute.xlu0 %1992
        %1994 = vrot.lane.b32.xlu0 %v300, 28
        %v1995 = vpop.permute.xlu0 %1994
        %1996 = vrot.lane.b32.xlu0 %v314, 28
        %v1997 = vpop.permute.xlu0 %1996
        %1998 = vrot.lane.b32.xlu0 %v301, 28
        %v1999 = vpop.permute.xlu0 %1998
        %2000 = vrot.lane.b32.xlu0 %v315, 28
        %v2001 = vpop.permute.xlu0 %2000
        %vm2002 = vcmp.lt.s32.totalorder %v337, 28
        %v2003 = vsel %vm2002, %v1999, %v2001
        %v2004 = vsel %vm2002, %v1997, %v1999
        %v2005 = vsel %vm2002, %v1995, %v1997
        %v2006 = vsel %vm2002, %v1993, %v1995
        %v2007 = vsel %vm2002, %v1991, %v1993
        %v2008 = vsel %vm2002, %v1989, %v1991
        %v2009 = vsel %vm2002, %v1987, %v1989
        %v2010 = vsel %vm2002, %v2001, %v1987
        %2011 = vst [vmem:[#allocation2 + $0x80] sm:$0xf] %v2009
        %2012 = vst [vmem:[#allocation2 + $0x88] sm:$0xf] %v2008
        %2013 = vst [vmem:[#allocation2 + $0x90] sm:$0xf] %v2007
        %2014 = vst [vmem:[#allocation2 + $0x98] sm:$0xf] %v2006
        %2015 = vst [vmem:[#allocation2 + $0xa0] sm:$0xf] %v2005
        %2016 = vst [vmem:[#allocation2 + $0xa8] sm:$0xf] %v2004
        %2017 = vst [vmem:[#allocation2 + $0xb0] sm:$0xf] %v2003
        %2018 = vst [vmem:[#allocation2 + $0xb8] sm:$0xf] %v2010
        %2019 = vrot.lane.b32.xlu0 %v298, 27
        %v2020 = vpop.permute.xlu0 %2019
        %2021 = vrot.lane.b32.xlu0 %v312, 27
        %v2022 = vpop.permute.xlu0 %2021
        %2023 = vrot.lane.b32.xlu0 %v299, 27
        %v2024 = vpop.permute.xlu0 %2023
        %2025 = vrot.lane.b32.xlu0 %v313, 27
        %v2026 = vpop.permute.xlu0 %2025
        %2027 = vrot.lane.b32.xlu0 %v300, 27
        %v2028 = vpop.permute.xlu0 %2027
        %2029 = vrot.lane.b32.xlu0 %v314, 27
        %v2030 = vpop.permute.xlu0 %2029
        %2031 = vrot.lane.b32.xlu0 %v301, 27
        %v2032 = vpop.permute.xlu0 %2031
        %2033 = vrot.lane.b32.xlu0 %v315, 27
        %v2034 = vpop.permute.xlu0 %2033
        %vm2035 = vcmp.lt.s32.totalorder %v337, 27
        %v2036 = vsel %vm2035, %v2032, %v2034
        %v2037 = vsel %vm2035, %v2030, %v2032
        %v2038 = vsel %vm2035, %v2028, %v2030
        %v2039 = vsel %vm2035, %v2026, %v2028
        %v2040 = vsel %vm2035, %v2024, %v2026
        %v2041 = vsel %vm2035, %v2022, %v2024
        %v2042 = vsel %vm2035, %v2020, %v2022
        %v2043 = vsel %vm2035, %v2034, %v2020
        %v2052 = vrot.slane %v2042, 4
        %v2053 = vrot.slane %v2041, 4
        %v2054 = vrot.slane %v2040, 4
        %v2055 = vrot.slane %v2039, 4
        %v2056 = vrot.slane %v2038, 4
        %v2057 = vrot.slane %v2037, 4
        %v2058 = vrot.slane %v2036, 4
        %v2059 = vrot.slane %v2043, 4
        %2068 = vst [vmem:[#allocation2 + $0x80] sm:$0xf0] %v2052
        %2069 = vst [vmem:[#allocation2 + $0x88] sm:$0xf0] %v2053
        %2070 = vst [vmem:[#allocation2 + $0x90] sm:$0xf0] %v2054
        %2071 = vst [vmem:[#allocation2 + $0x98] sm:$0xf0] %v2055
        %2072 = vst [vmem:[#allocation2 + $0xa0] sm:$0xf0] %v2056
        %2073 = vst [vmem:[#allocation2 + $0xa8] sm:$0xf0] %v2057
        %2074 = vst [vmem:[#allocation2 + $0xb0] sm:$0xf0] %v2058
        %2075 = vst [vmem:[#allocation2 + $0xb8] sm:$0xf0] %v2059
        %2076 = vrot.lane.b32.xlu0 %v298, 19
        %v2077 = vpop.permute.xlu0 %2076
        %2078 = vrot.lane.b32.xlu0 %v312, 19
        %v2079 = vpop.permute.xlu0 %2078
        %2080 = vrot.lane.b32.xlu0 %v299, 19
        %v2081 = vpop.permute.xlu0 %2080
        %2082 = vrot.lane.b32.xlu0 %v313, 19
        %v2083 = vpop.permute.xlu0 %2082
        %2084 = vrot.lane.b32.xlu0 %v300, 19
        %v2085 = vpop.permute.xlu0 %2084
        %2086 = vrot.lane.b32.xlu0 %v314, 19
        %v2087 = vpop.permute.xlu0 %2086
        %2088 = vrot.lane.b32.xlu0 %v301, 19
        %v2089 = vpop.permute.xlu0 %2088
        %2090 = vrot.lane.b32.xlu0 %v315, 19
        %v2091 = vpop.permute.xlu0 %2090
        %vm2092 = vcmp.lt.s32.totalorder %v337, 19
        %v2093 = vsel %vm2092, %v2089, %v2091
        %v2094 = vsel %vm2092, %v2087, %v2089
        %v2095 = vsel %vm2092, %v2085, %v2087
        %v2096 = vsel %vm2092, %v2083, %v2085
        %v2097 = vsel %vm2092, %v2081, %v2083
        %v2098 = vsel %vm2092, %v2079, %v2081
        %v2099 = vsel %vm2092, %v2077, %v2079
        %v2100 = vsel %vm2092, %v2091, %v2077
        %2101 = vst [vmem:[#allocation2 + $0xc0] sm:$0xf] %v2099
        %2102 = vst [vmem:[#allocation2 + $0xc8] sm:$0xf] %v2098
        %2103 = vst [vmem:[#allocation2 + $0xd0] sm:$0xf] %v2097
        %2104 = vst [vmem:[#allocation2 + $0xd8] sm:$0xf] %v2096
        %2105 = vst [vmem:[#allocation2 + $0xe0] sm:$0xf] %v2095
        %2106 = vst [vmem:[#allocation2 + $0xe8] sm:$0xf] %v2094
        %2107 = vst [vmem:[#allocation2 + $0xf0] sm:$0xf] %v2093
        %2108 = vst [vmem:[#allocation2 + $0xf8] sm:$0xf] %v2100
        %2109 = vrot.lane.b32.xlu0 %v298, 18
        %v2110 = vpop.permute.xlu0 %2109
        %2111 = vrot.lane.b32.xlu0 %v312, 18
        %v2112 = vpop.permute.xlu0 %2111
        %2113 = vrot.lane.b32.xlu0 %v299, 18
        %v2114 = vpop.permute.xlu0 %2113
        %2115 = vrot.lane.b32.xlu0 %v313, 18
        %v2116 = vpop.permute.xlu0 %2115
        %2117 = vrot.lane.b32.xlu0 %v300, 18
        %v2118 = vpop.permute.xlu0 %2117
        %2119 = vrot.lane.b32.xlu0 %v314, 18
        %v2120 = vpop.permute.xlu0 %2119
        %2121 = vrot.lane.b32.xlu0 %v301, 18
        %v2122 = vpop.permute.xlu0 %2121
        %2123 = vrot.lane.b32.xlu0 %v315, 18
        %v2124 = vpop.permute.xlu0 %2123
        %vm2125 = vcmp.lt.s32.totalorder %v337, 18
        %v2126 = vsel %vm2125, %v2122, %v2124
        %v2127 = vsel %vm2125, %v2120, %v2122
        %v2128 = vsel %vm2125, %v2118, %v2120
        %v2129 = vsel %vm2125, %v2116, %v2118
        %v2130 = vsel %vm2125, %v2114, %v2116
        %v2131 = vsel %vm2125, %v2112, %v2114
        %v2132 = vsel %vm2125, %v2110, %v2112
        %v2133 = vsel %vm2125, %v2124, %v2110
        %v2142 = vrot.slane %v2132, 4
        %v2143 = vrot.slane %v2131, 4
        %v2144 = vrot.slane %v2130, 4
        %v2145 = vrot.slane %v2129, 4
        %v2146 = vrot.slane %v2128, 4
        %v2147 = vrot.slane %v2127, 4
        %v2148 = vrot.slane %v2126, 4
        %v2149 = vrot.slane %v2133, 4
        %2158 = vst [vmem:[#allocation2 + $0xc0] sm:$0xf0] %v2142
        %2159 = vst [vmem:[#allocation2 + $0xc8] sm:$0xf0] %v2143
        %2160 = vst [vmem:[#allocation2 + $0xd0] sm:$0xf0] %v2144
        %2161 = vst [vmem:[#allocation2 + $0xd8] sm:$0xf0] %v2145
        %2162 = vst [vmem:[#allocation2 + $0xe0] sm:$0xf0] %v2146
        %2163 = vst [vmem:[#allocation2 + $0xe8] sm:$0xf0] %v2147
        %2164 = vst [vmem:[#allocation2 + $0xf0] sm:$0xf0] %v2148
        %2165 = vst [vmem:[#allocation2 + $0xf8] sm:$0xf0] %v2149
        %2166 = vrot.lane.b32.xlu0 %v298, 17
        %v2167 = vpop.permute.xlu0 %2166
        %2168 = vrot.lane.b32.xlu0 %v312, 17
        %v2169 = vpop.permute.xlu0 %2168
        %2170 = vrot.lane.b32.xlu0 %v299, 17
        %v2171 = vpop.permute.xlu0 %2170
        %2172 = vrot.lane.b32.xlu0 %v313, 17
        %v2173 = vpop.permute.xlu0 %2172
        %2174 = vrot.lane.b32.xlu0 %v300, 17
        %v2175 = vpop.permute.xlu0 %2174
        %2176 = vrot.lane.b32.xlu0 %v314, 17
        %v2177 = vpop.permute.xlu0 %2176
        %2178 = vrot.lane.b32.xlu0 %v301, 17
        %v2179 = vpop.permute.xlu0 %2178
        %2180 = vrot.lane.b32.xlu0 %v315, 17
        %v2181 = vpop.permute.xlu0 %2180
        %vm2182 = vcmp.lt.s32.totalorder %v337, 17
        %v2183 = vsel %vm2182, %v2179, %v2181
        %v2184 = vsel %vm2182, %v2177, %v2179
        %v2185 = vsel %vm2182, %v2175, %v2177
        %v2186 = vsel %vm2182, %v2173, %v2175
        %v2187 = vsel %vm2182, %v2171, %v2173
        %v2188 = vsel %vm2182, %v2169, %v2171
        %v2189 = vsel %vm2182, %v2167, %v2169
        %v2190 = vsel %vm2182, %v2181, %v2167
        %2191 = vst [vmem:[#allocation2 + $0x100] sm:$0xf] %v2189
        %2192 = vst [vmem:[#allocation2 + $0x108] sm:$0xf] %v2188
        %2193 = vst [vmem:[#allocation2 + $0x110] sm:$0xf] %v2187
        %2194 = vst [vmem:[#allocation2 + $0x118] sm:$0xf] %v2186
        %2195 = vst [vmem:[#allocation2 + $0x120] sm:$0xf] %v2185
        %2196 = vst [vmem:[#allocation2 + $0x128] sm:$0xf] %v2184
        %2197 = vst [vmem:[#allocation2 + $0x130] sm:$0xf] %v2183
        %2198 = vst [vmem:[#allocation2 + $0x138] sm:$0xf] %v2190
        %s2199 = scalar_lea.vmem %s1, 8
        %v2200 = vld [vmem:[%s2199] sm:$0xf]
        %v2201 = vld [vmem:[#allocation2] sm:$0xff]
        %v2202 = vld [vmem:[#allocation2 + $0x8] sm:$0xff]
        %v2203 = vld [vmem:[#allocation2 + $0x10] sm:$0xff]
        %v2204 = vld [vmem:[#allocation2 + $0x18] sm:$0xff]
        %v2205 = vld [vmem:[#allocation2 + $0x20] sm:$0xff]
        %v2206 = vld [vmem:[#allocation2 + $0x28] sm:$0xff]
        %v2207 = vld [vmem:[#allocation2 + $0x30] sm:$0xff]
        %v2208 = vld [vmem:[#allocation2 + $0x38] sm:$0xff]
        %v2209 = vld [vmem:[#allocation2 + $0x40] sm:$0xff]
        %v2210 = vld [vmem:[#allocation2 + $0x48] sm:$0xff]
        %v2211 = vld [vmem:[#allocation2 + $0x50] sm:$0xff]
        %v2212 = vld [vmem:[#allocation2 + $0x58] sm:$0xff]
        %v2213 = vld [vmem:[#allocation2 + $0x60] sm:$0xff]
        %v2214 = vld [vmem:[#allocation2 + $0x68] sm:$0xff]
        %v2215 = vld [vmem:[#allocation2 + $0x70] sm:$0xff]
        %v2216 = vld [vmem:[#allocation2 + $0x78] sm:$0xff]
        %v2217 = vld [vmem:[#allocation2 + $0x80] sm:$0xff]
        %v2218 = vld [vmem:[#allocation2 + $0x88] sm:$0xff]
        %v2219 = vld [vmem:[#allocation2 + $0x90] sm:$0xff]
        %v2220 = vld [vmem:[#allocation2 + $0x98] sm:$0xff]
        %v2221 = vld [vmem:[#allocation2 + $0xa0] sm:$0xff]
        %v2222 = vld [vmem:[#allocation2 + $0xa8] sm:$0xff]
        %v2223 = vld [vmem:[#allocation2 + $0xb0] sm:$0xff]
        %v2224 = vld [vmem:[#allocation2 + $0xb8] sm:$0xff]
        %v2225 = vld [vmem:[#allocation2 + $0xc0] sm:$0xff]
        %v2226 = vld [vmem:[#allocation2 + $0xc8] sm:$0xff]
        %v2227 = vld [vmem:[#allocation2 + $0xd0] sm:$0xff]
        %v2228 = vld [vmem:[#allocation2 + $0xd8] sm:$0xff]
        %v2229 = vld [vmem:[#allocation2 + $0xe0] sm:$0xff]
        %v2230 = vld [vmem:[#allocation2 + $0xe8] sm:$0xff]
        %v2231 = vld [vmem:[#allocation2 + $0xf0] sm:$0xff]
        %v2232 = vld [vmem:[#allocation2 + $0xf8] sm:$0xff]
        %v2233 = vld [vmem:[#allocation2 + $0x100] sm:$0xf]
        %v2234 = vld [vmem:[#allocation2 + $0x108] sm:$0xf]
        %v2235 = vld [vmem:[#allocation2 + $0x110] sm:$0xf]
        %v2236 = vld [vmem:[#allocation2 + $0x118] sm:$0xf]
        %v2237 = vld [vmem:[#allocation2 + $0x120] sm:$0xf]
        %v2238 = vld [vmem:[#allocation2 + $0x128] sm:$0xf]
        %v2239 = vld [vmem:[#allocation2 + $0x130] sm:$0xf]
        %v2240 = vld [vmem:[#allocation2 + $0x138] sm:$0xf]
        %v2242 = vsel %vm756, %v2200, 0
        %v2245 = vsel %vm760, %v2233, 0
        %v2248 = vsel %vm760, %v2234, 0
        %v2251 = vsel %vm760, %v2235, 0
        %v2254 = vsel %vm760, %v2236, 0
        %v2257 = vsel %vm760, %v2237, 0
        %v2260 = vsel %vm760, %v2238, 0
        %v2263 = vsel %vm760, %v2239, 0
        %v2266 = vsel %vm760, %v2240, 0
        %2268 = vmatprep.subr.mxu0 %v2202
        %2269 = vmatpush1.msra.mxu0 %v2201
        %2270 = vmatprep.subr.mxu0 %v2210
        %2271 = vmatpush1.msra.mxu0 %v2209
        %2272 = vmatprep.subr.mxu0 %v2218
        %2273 = vmatpush1.msra.mxu0 %v2217
        %2274 = vmatprep.subr.mxu0 %v2226
        %2275 = vmatpush1.msra.mxu0 %v2225
        %2276 = vmatprep.subr.mxu0 %v2248
        %2277 = vmatpush1.msra.mxu0 %v2245
        %2278 = vmatprep.subr.mxu0 0.0
        %2279 = vmatpush1.msra.mxu0 0.0
        %2280 = vmatprep.subr.mxu0 0.0
        %2281 = vmatpush1.msra.mxu0 0.0
        %2282 = vmatprep.subr.mxu0 0.0
        %2283 = vmatpush1.msra.mxu0 0.0
        %2284 = vmatprep.subr.mxu0 0.0
        %2285 = vmatpush1.msra.mxu0 0.0
        %2286 = vmatprep.subr.mxu0 0.0
        %2287 = vmatpush1.msra.mxu0 0.0
        %2288 = vmatprep.subr.mxu0 0.0
        %2289 = vmatpush1.msra.mxu0 0.0
        %2290 = vmatprep.subr.mxu0 0.0
        %2291 = vmatpush1.msra.mxu0 0.0
        %2292 = vmatprep.subr.mxu0 0.0
        %2293 = vmatpush1.msra.mxu0 0.0
        %2294 = vmatprep.subr.mxu0 0.0
        %2295 = vmatpush1.msra.mxu0 0.0
        %2296 = vmatprep.subr.mxu0 0.0
        %2297 = vmatpush1.msra.mxu0 0.0
        %2298 = vmatprep.subr.mxu0 0.0
        %2299 = vmatpush1.msra.mxu0 0.0
        %2300 = vmatprep.subr.mxu0 0.0
        %2301 = vmatpush1.msra.mxu0 0.0
        %2302 = vmatprep.subr.mxu0 0.0
        %2303 = vmatpush1.msra.mxu0 0.0
        %2304 = vmatprep.subr.mxu0 0.0
        %2305 = vmatpush1.msra.mxu0 0.0
        %2306 = vmatprep.subr.mxu0 0.0
        %2307 = vmatpush1.msra.mxu0 0.0
        %2308 = vmatprep.subr.mxu0 0.0
        %2309 = vmatpush1.msra.mxu0 0.0
        %2310 = vmatprep.subr.mxu0 0.0
        %2311 = vmatpush1.msra.mxu0 0.0
        %2312 = vmatprep.subr.mxu0 0.0
        %2313 = vmatpush1.msra.mxu0 0.0
        %2314 = vmatprep.subr.mxu0 0.0
        %2315 = vmatpush1.msra.mxu0 0.0
        %2316 = vmatprep.subr.mxu0 0.0
        %2317 = vmatpush1.msra.mxu0 0.0
        %2318 = vmatprep.subr.mxu0 0.0
        %2319 = vmatpush1.msra.mxu0 0.0
        %2320 = vmatprep.subr.mxu0 0.0
        %2321 = vmatpush1.msra.mxu0 0.0
        %2322 = vmatprep.subr.mxu0 0.0
        %2323 = vmatpush1.msra.mxu0 0.0
        %2324 = vmatprep.subr.mxu0 0.0
        %2325 = vmatpush1.msra.mxu0 0.0
        %2326 = vmatprep.subr.mxu0 0.0
        %2327 = vmatpush1.msra.mxu0 0.0
        %2328 = vmatprep.subr.mxu0 0.0
        %2329 = vmatpush1.msra.mxu0 0.0
        %2330 = vmatprep.subr.mxu0 0.0
        %2331 = vmatpush1.msra.mxu0 0.0
        %2332 = vmatprep.mubr.f32.mxu0 0.0
        %2333 = vmatmul.mubr.f32.gmra.mrb[0].mxu0 %v2242
        %v2334 = vpop.f32.mrb[0].mxu0
        %v2335 = vadd.f32 0.0, %v2334
        %v2336 = vpop.f32.mrb[0].mxu0
        %v2337 = vadd.f32 0.0, %v2336
        %2338 = vdwg.mxu0
        %2339 = vmatprep.subr.mxu0 %v2204
        %2340 = vmatpush1.msra.mxu0 %v2203
        %2341 = vmatprep.subr.mxu0 %v2212
        %2342 = vmatpush1.msra.mxu0 %v2211
        %2343 = vmatprep.subr.mxu0 %v2220
        %2344 = vmatpush1.msra.mxu0 %v2219
        %2345 = vmatprep.subr.mxu0 %v2228
        %2346 = vmatpush1.msra.mxu0 %v2227
        %2347 = vmatprep.subr.mxu0 %v2254
        %2348 = vmatpush1.msra.mxu0 %v2251
        %2349 = vmatprep.subr.mxu0 0.0
        %2350 = vmatpush1.msra.mxu0 0.0
        %2351 = vmatprep.subr.mxu0 0.0
        %2352 = vmatpush1.msra.mxu0 0.0
        %2353 = vmatprep.subr.mxu0 0.0
        %2354 = vmatpush1.msra.mxu0 0.0
        %2355 = vmatprep.subr.mxu0 0.0
        %2356 = vmatpush1.msra.mxu0 0.0
        %2357 = vmatprep.subr.mxu0 0.0
        %2358 = vmatpush1.msra.mxu0 0.0
        %2359 = vmatprep.subr.mxu0 0.0
        %2360 = vmatpush1.msra.mxu0 0.0
        %2361 = vmatprep.subr.mxu0 0.0
        %2362 = vmatpush1.msra.mxu0 0.0
        %2363 = vmatprep.subr.mxu0 0.0
        %2364 = vmatpush1.msra.mxu0 0.0
        %2365 = vmatprep.subr.mxu0 0.0
        %2366 = vmatpush1.msra.mxu0 0.0
        %2367 = vmatprep.subr.mxu0 0.0
        %2368 = vmatpush1.msra.mxu0 0.0
        %2369 = vmatprep.subr.mxu0 0.0
        %2370 = vmatpush1.msra.mxu0 0.0
        %2371 = vmatprep.subr.mxu0 0.0
        %2372 = vmatpush1.msra.mxu0 0.0
        %2373 = vmatprep.subr.mxu0 0.0
        %2374 = vmatpush1.msra.mxu0 0.0
        %2375 = vmatprep.subr.mxu0 0.0
        %2376 = vmatpush1.msra.mxu0 0.0
        %2377 = vmatprep.subr.mxu0 0.0
        %2378 = vmatpush1.msra.mxu0 0.0
        %2379 = vmatprep.subr.mxu0 0.0
        %2380 = vmatpush1.msra.mxu0 0.0
        %2381 = vmatprep.subr.mxu0 0.0
        %2382 = vmatpush1.msra.mxu0 0.0
        %2383 = vmatprep.subr.mxu0 0.0
        %2384 = vmatpush1.msra.mxu0 0.0
        %2385 = vmatprep.subr.mxu0 0.0
        %2386 = vmatpush1.msra.mxu0 0.0
        %2387 = vmatprep.subr.mxu0 0.0
        %2388 = vmatpush1.msra.mxu0 0.0
        %2389 = vmatprep.subr.mxu0 0.0
        %2390 = vmatpush1.msra.mxu0 0.0
        %2391 = vmatprep.subr.mxu0 0.0
        %2392 = vmatpush1.msra.mxu0 0.0
        %2393 = vmatprep.subr.mxu0 0.0
        %2394 = vmatpush1.msra.mxu0 0.0
        %2395 = vmatprep.subr.mxu0 0.0
        %2396 = vmatpush1.msra.mxu0 0.0
        %2397 = vmatprep.subr.mxu0 0.0
        %2398 = vmatpush1.msra.mxu0 0.0
        %2399 = vmatprep.subr.mxu0 0.0
        %2400 = vmatpush1.msra.mxu0 0.0
        %2401 = vmatprep.subr.mxu0 0.0
        %2402 = vmatpush1.msra.mxu0 0.0
        %2403 = vmatprep.mubr.f32.mxu0 0.0
        %2404 = vmatmul.mubr.f32.gmra.mrb[0].mxu0 %v2242
        %v2405 = vpop.f32.mrb[0].mxu0
        %v2406 = vadd.f32 0.0, %v2405
        %v2407 = vpop.f32.mrb[0].mxu0
        %v2408 = vadd.f32 0.0, %v2407
        %2409 = vdwg.mxu0
        %2410 = vmatprep.subr.mxu0 %v2206
        %2411 = vmatpush1.msra.mxu0 %v2205
        %2412 = vmatprep.subr.mxu0 %v2214
        %2413 = vmatpush1.msra.mxu0 %v2213
        %2414 = vmatprep.subr.mxu0 %v2222
        %2415 = vmatpush1.msra.mxu0 %v2221
        %2416 = vmatprep.subr.mxu0 %v2230
        %2417 = vmatpush1.msra.mxu0 %v2229
        %2418 = vmatprep.subr.mxu0 %v2260
        %2419 = vmatpush1.msra.mxu0 %v2257
        %2420 = vmatprep.subr.mxu0 0.0
        %2421 = vmatpush1.msra.mxu0 0.0
        %2422 = vmatprep.subr.mxu0 0.0
        %2423 = vmatpush1.msra.mxu0 0.0
        %2424 = vmatprep.subr.mxu0 0.0
        %2425 = vmatpush1.msra.mxu0 0.0
        %2426 = vmatprep.subr.mxu0 0.0
        %2427 = vmatpush1.msra.mxu0 0.0
        %2428 = vmatprep.subr.mxu0 0.0
        %2429 = vmatpush1.msra.mxu0 0.0
        %2430 = vmatprep.subr.mxu0 0.0
        %2431 = vmatpush1.msra.mxu0 0.0
        %2432 = vmatprep.subr.mxu0 0.0
        %2433 = vmatpush1.msra.mxu0 0.0
        %2434 = vmatprep.subr.mxu0 0.0
        %2435 = vmatpush1.msra.mxu0 0.0
        %2436 = vmatprep.subr.mxu0 0.0
        %2437 = vmatpush1.msra.mxu0 0.0
        %2438 = vmatprep.subr.mxu0 0.0
        %2439 = vmatpush1.msra.mxu0 0.0
        %2440 = vmatprep.subr.mxu0 0.0
        %2441 = vmatpush1.msra.mxu0 0.0
        %2442 = vmatprep.subr.mxu0 0.0
        %2443 = vmatpush1.msra.mxu0 0.0
        %2444 = vmatprep.subr.mxu0 0.0
        %2445 = vmatpush1.msra.mxu0 0.0
        %2446 = vmatprep.subr.mxu0 0.0
        %2447 = vmatpush1.msra.mxu0 0.0
        %2448 = vmatprep.subr.mxu0 0.0
        %2449 = vmatpush1.msra.mxu0 0.0
        %2450 = vmatprep.subr.mxu0 0.0
        %2451 = vmatpush1.msra.mxu0 0.0
        %2452 = vmatprep.subr.mxu0 0.0
        %2453 = vmatpush1.msra.mxu0 0.0
        %2454 = vmatprep.subr.mxu0 0.0
        %2455 = vmatpush1.msra.mxu0 0.0
        %2456 = vmatprep.subr.mxu0 0.0
        %2457 = vmatpush1.msra.mxu0 0.0
        %2458 = vmatprep.subr.mxu0 0.0
        %2459 = vmatpush1.msra.mxu0 0.0
        %2460 = vmatprep.subr.mxu0 0.0
        %2461 = vmatpush1.msra.mxu0 0.0
        %2462 = vmatprep.subr.mxu0 0.0
        %2463 = vmatpush1.msra.mxu0 0.0
        %2464 = vmatprep.subr.mxu0 0.0
        %2465 = vmatpush1.msra.mxu0 0.0
        %2466 = vmatprep.subr.mxu0 0.0
        %2467 = vmatpush1.msra.mxu0 0.0
        %2468 = vmatprep.subr.mxu0 0.0
        %2469 = vmatpush1.msra.mxu0 0.0
        %2470 = vmatprep.subr.mxu0 0.0
        %2471 = vmatpush1.msra.mxu0 0.0
        %2472 = vmatprep.subr.mxu0 0.0
        %2473 = vmatpush1.msra.mxu0 0.0
        %2474 = vmatprep.mubr.f32.mxu0 0.0
        %2475 = vmatmul.mubr.f32.gmra.mrb[0].mxu0 %v2242
        %v2476 = vpop.f32.mrb[0].mxu0
        %v2477 = vadd.f32 0.0, %v2476
        %v2478 = vpop.f32.mrb[0].mxu0
        %v2479 = vadd.f32 0.0, %v2478
        %2480 = vdwg.mxu0
        %2481 = vmatprep.subr.mxu0 %v2208
        %2482 = vmatpush1.msra.mxu0 %v2207
        %2483 = vmatprep.subr.mxu0 %v2216
        %2484 = vmatpush1.msra.mxu0 %v2215
        %2485 = vmatprep.subr.mxu0 %v2224
        %2486 = vmatpush1.msra.mxu0 %v2223
        %2487 = vmatprep.subr.mxu0 %v2232
        %2488 = vmatpush1.msra.mxu0 %v2231
        %2489 = vmatprep.subr.mxu0 %v2266
        %2490 = vmatpush1.msra.mxu0 %v2263
        %2491 = vmatprep.subr.mxu0 0.0
        %2492 = vmatpush1.msra.mxu0 0.0
        %2493 = vmatprep.subr.mxu0 0.0
        %2494 = vmatpush1.msra.mxu0 0.0
        %2495 = vmatprep.subr.mxu0 0.0
        %2496 = vmatpush1.msra.mxu0 0.0
        %2497 = vmatprep.subr.mxu0 0.0
        %2498 = vmatpush1.msra.mxu0 0.0
        %2499 = vmatprep.subr.mxu0 0.0
        %2500 = vmatpush1.msra.mxu0 0.0
        %2501 = vmatprep.subr.mxu0 0.0
        %2502 = vmatpush1.msra.mxu0 0.0
        %2503 = vmatprep.subr.mxu0 0.0
        %2504 = vmatpush1.msra.mxu0 0.0
        %2505 = vmatprep.subr.mxu0 0.0
        %2506 = vmatpush1.msra.mxu0 0.0
        %2507 = vmatprep.subr.mxu0 0.0
        %2508 = vmatpush1.msra.mxu0 0.0
        %2509 = vmatprep.subr.mxu0 0.0
        %2510 = vmatpush1.msra.mxu0 0.0
        %2511 = vmatprep.subr.mxu0 0.0
        %2512 = vmatpush1.msra.mxu0 0.0
        %2513 = vmatprep.subr.mxu0 0.0
        %2514 = vmatpush1.msra.mxu0 0.0
        %2515 = vmatprep.subr.mxu0 0.0
        %2516 = vmatpush1.msra.mxu0 0.0
        %2517 = vmatprep.subr.mxu0 0.0
        %2518 = vmatpush1.msra.mxu0 0.0
        %2519 = vmatprep.subr.mxu0 0.0
        %2520 = vmatpush1.msra.mxu0 0.0
        %2521 = vmatprep.subr.mxu0 0.0
        %2522 = vmatpush1.msra.mxu0 0.0
        %2523 = vmatprep.subr.mxu0 0.0
        %2524 = vmatpush1.msra.mxu0 0.0
        %2525 = vmatprep.subr.mxu0 0.0
        %2526 = vmatpush1.msra.mxu0 0.0
        %2527 = vmatprep.subr.mxu0 0.0
        %2528 = vmatpush1.msra.mxu0 0.0
        %2529 = vmatprep.subr.mxu0 0.0
        %2530 = vmatpush1.msra.mxu0 0.0
        %2531 = vmatprep.subr.mxu0 0.0
        %2532 = vmatpush1.msra.mxu0 0.0
        %2533 = vmatprep.subr.mxu0 0.0
        %2534 = vmatpush1.msra.mxu0 0.0
        %2535 = vmatprep.subr.mxu0 0.0
        %2536 = vmatpush1.msra.mxu0 0.0
        %2537 = vmatprep.subr.mxu0 0.0
        %2538 = vmatpush1.msra.mxu0 0.0
        %2539 = vmatprep.subr.mxu0 0.0
        %2540 = vmatpush1.msra.mxu0 0.0
        %2541 = vmatprep.subr.mxu0 0.0
        %2542 = vmatpush1.msra.mxu0 0.0
        %2543 = vmatprep.subr.mxu0 0.0
        %2544 = vmatpush1.msra.mxu0 0.0
        %2545 = vmatprep.mubr.f32.mxu0 0.0
        %2546 = vmatmul.mubr.f32.gmra.mrb[0].mxu0 %v2242
        %v2547 = vpop.f32.mrb[0].mxu0
        %v2548 = vadd.f32 0.0, %v2547
        %v2549 = vpop.f32.mrb[0].mxu0
        %v2550 = vadd.f32 0.0, %v2549
        %2551 = vdwg.mxu0
        %v2552 = vadd.f32 %v1798, %v2335
        %v2553 = vadd.f32 %v1799, %v2337
        %v2554 = vadd.f32 %v1800, %v2406
        %v2555 = vadd.f32 %v1801, %v2408
        %v2556 = vadd.f32 %v1802, %v2477
        %v2557 = vadd.f32 %v1803, %v2479
        %v2558 = vadd.f32 %v1804, %v2548
        %v2559 = vadd.f32 %v1805, %v2550
        %v2561 = vlaneseq
        %v2562 = vshrl.u32 %v2561, 7
        %v2563 = vsub.s32 0, %v2562
        %v2564 = vrot.slane %v297, %v2563
        %v2565 = vlaneseq
        %v2566 = vshrl.u32 %v2565, 7
        %v2567 = vsub.s32 1, %v2566
        %v2568 = vrot.slane %v297, %v2567
        %v2569 = vlaneseq
        %v2570 = vshrl.u32 %v2569, 7
        %v2571 = vsub.s32 2, %v2570
        %v2572 = vrot.slane %v297, %v2571
        %v2573 = vlaneseq
        %v2574 = vshrl.u32 %v2573, 7
        %v2575 = vsub.s32 3, %v2574
        %v2576 = vrot.slane %v297, %v2575
        %v2577 = vlaneseq
        %v2578 = vshrl.u32 %v2577, 7
        %v2579 = vsub.s32 4, %v2578
        %v2580 = vrot.slane %v297, %v2579
        %v2581 = vlaneseq
        %v2582 = vshrl.u32 %v2581, 7
        %v2583 = vsub.s32 5, %v2582
        %v2584 = vrot.slane %v297, %v2583
        %v2585 = vlaneseq
        %v2586 = vshrl.u32 %v2585, 7
        %v2587 = vsub.s32 6, %v2586
        %v2588 = vrot.slane %v297, %v2587
        %v2589 = vlaneseq
        %v2590 = vshrl.u32 %v2589, 7
        %v2591 = vsub.s32 7, %v2590
        %v2592 = vrot.slane %v297, %v2591
        %v2601 = vmul.f32 %v2552, %v2564
        %v2602 = vmul.f32 %v2553, %v2568
        %v2603 = vmul.f32 %v2554, %v2572
        %v2604 = vmul.f32 %v2555, %v2576
        %v2605 = vmul.f32 %v2556, %v2580
        %v2606 = vmul.f32 %v2557, %v2584
        %v2607 = vmul.f32 %v2558, %v2588
        %v2608 = vmul.f32 %v2559, %v2592
        %v2609 = vsel %vm760, %v2601, 0.0
        %v2610 = vsel %vm760, %v2602, 0.0
        %v2611 = vadd.f32 %v2609, %v2610
        %v2612 = vsel %vm760, %v2603, 0.0
        %v2613 = vadd.f32 %v2611, %v2612
        %v2614 = vsel %vm760, %v2604, 0.0
        %v2615 = vadd.f32 %v2613, %v2614
        %v2616 = vsel %vm760, %v2605, 0.0
        %v2617 = vadd.f32 %v2615, %v2616
        %v2618 = vsel %vm760, %v2606, 0.0
        %v2619 = vadd.f32 %v2617, %v2618
        %v2620 = vsel %vm760, %v2607, 0.0
        %v2621 = vadd.f32 %v2619, %v2620
        %v2622 = vsel %vm760, %v2608, 0.0
        %v2623 = vadd.f32 %v2621, %v2622
        %2624 = vadd.xlane.f32.xlu0 %v2623
        %v2625 = vpop.xlane.xlu0 %2624
        %v2626 = vmul.f32 %v2601, %v2552
        %v2627 = vmul.f32 %v2602, %v2553
        %v2628 = vmul.f32 %v2603, %v2554
        %v2629 = vmul.f32 %v2604, %v2555
        %v2630 = vmul.f32 %v2605, %v2556
        %v2631 = vmul.f32 %v2606, %v2557
        %v2632 = vmul.f32 %v2607, %v2558
        %v2633 = vmul.f32 %v2608, %v2559
        %v2634 = vsel %vm760, %v2626, 0.0
        %v2635 = vsel %vm760, %v2627, 0.0
        %v2636 = vadd.f32 %v2634, %v2635
        %v2637 = vsel %vm760, %v2628, 0.0
        %v2638 = vadd.f32 %v2636, %v2637
        %v2639 = vsel %vm760, %v2629, 0.0
        %v2640 = vadd.f32 %v2638, %v2639
        %v2641 = vsel %vm760, %v2630, 0.0
        %v2642 = vadd.f32 %v2640, %v2641
        %v2643 = vsel %vm760, %v2631, 0.0
        %v2644 = vadd.f32 %v2642, %v2643
        %v2645 = vsel %vm760, %v2632, 0.0
        %v2646 = vadd.f32 %v2644, %v2645
        %v2647 = vsel %vm760, %v2633, 0.0
        %v2648 = vadd.f32 %v2646, %v2647
        %2649 = vadd.xlane.f32.xlu0 %v2648
        %v2650 = vpop.xlane.xlu0 %2649
        %v2651 = vmul.f32 %v2625, 0.001953125
        %v2652 = vmul.f32 %v2650, 0.001953125
        %v2653 = vmul.f32 %v2651, %v2651
        %v2654 = vsub.f32 %v2652, %v2653
        %v2655 = vmax.f32 %v2654, 0.0
        %v2656 = vsub.f32 %v2552, %v2651
        %v2657 = vsub.f32 %v2553, %v2651
        %v2658 = vsub.f32 %v2554, %v2651
        %v2659 = vsub.f32 %v2555, %v2651
        %v2660 = vsub.f32 %v2556, %v2651
        %v2661 = vsub.f32 %v2557, %v2651
        %v2662 = vsub.f32 %v2558, %v2651
        %v2663 = vsub.f32 %v2559, %v2651
        %v2664 = vadd.f32 %v2655, 1e-05
        %v2665 = vrsqrt.pop %v2664
        %v2666 = vmul.f32 %v2656, %v2665
        %v2667 = vmul.f32 %v2657, %v2665
        %v2668 = vmul.f32 %v2658, %v2665
        %v2669 = vmul.f32 %v2659, %v2665
        %v2670 = vmul.f32 %v2660, %v2665
        %v2671 = vmul.f32 %v2661, %v2665
        %v2672 = vmul.f32 %v2662, %v2665
        %v2673 = vmul.f32 %v2663, %v2665
        %v2674 = vmax.f32 %v2666, 0.0
        %v2675 = vmax.f32 %v2667, 0.0
        %v2676 = vmax.f32 %v2668, 0.0
        %v2677 = vmax.f32 %v2669, 0.0
        %v2678 = vmax.f32 %v2670, 0.0
        %v2679 = vmax.f32 %v2671, 0.0
        %v2680 = vmax.f32 %v2672, 0.0
        %v2681 = vmax.f32 %v2673, 0.0
        %s2682 = scalar_lea.vmem [#allocation8], 1
        %v2683 = vld [vmem:[%s2682] ss:$8 sm:$0xf]
        %v2684 = vld [vmem:[%s2682] ss:$8 sm:$0xf0]
        %v2685 = vor.u32 %v2683, %v2684
        %2686 = vrot.lane.b32.xlu0 %v2674, 56
        %v2687 = vpop.permute.xlu0 %2686
        %2688 = vrot.lane.b32.xlu0 %v2675, 56
        %v2689 = vpop.permute.xlu0 %2688
        %2690 = vrot.lane.b32.xlu0 %v2676, 56
        %v2691 = vpop.permute.xlu0 %2690
        %2692 = vrot.lane.b32.xlu0 %v2677, 56
        %v2693 = vpop.permute.xlu0 %2692
        %2694 = vrot.lane.b32.xlu0 %v2678, 56
        %v2695 = vpop.permute.xlu0 %2694
        %2696 = vrot.lane.b32.xlu0 %v2679, 56
        %v2697 = vpop.permute.xlu0 %2696
        %2698 = vrot.lane.b32.xlu0 %v2680, 56
        %v2699 = vpop.permute.xlu0 %2698
        %2700 = vrot.lane.b32.xlu0 %v2681, 56
        %v2701 = vpop.permute.xlu0 %2700
        %vm2702 = vcmp.lt.s32.totalorder %v337, 56
        %v2703 = vsel %vm2702, %v2699, %v2701
        %v2704 = vsel %vm2702, %v2697, %v2699
        %v2705 = vsel %vm2702, %v2695, %v2697
        %v2706 = vsel %vm2702, %v2693, %v2695
        %v2707 = vsel %vm2702, %v2691, %v2693
        %v2708 = vsel %vm2702, %v2689, %v2691
        %v2709 = vsel %vm2702, %v2687, %v2689
        %v2710 = vsel %vm2702, %v2701, %v2687
        %v2711 = vsub.f32 %v2708, %v2674
        %v2712 = vsub.f32 %v2707, %v2675
        %v2713 = vsub.f32 %v2706, %v2676
        %v2714 = vsub.f32 %v2705, %v2677
        %v2715 = vsub.f32 %v2704, %v2678
        %v2716 = vsub.f32 %v2703, %v2679
        %v2717 = vsub.f32 %v2710, %v2680
        %v2718 = vsub.f32 %v2709, %v2681
        %v2720 = vlaneseq
        %v2721 = vshrl.u32 %v2720, 7
        %v2722 = vsub.s32 0, %v2721
        %v2723 = vrot.slane %v2685, %v2722
        %v2724 = vlaneseq
        %v2725 = vshrl.u32 %v2724, 7
        %v2726 = vsub.s32 1, %v2725
        %v2727 = vrot.slane %v2685, %v2726
        %v2728 = vlaneseq
        %v2729 = vshrl.u32 %v2728, 7
        %v2730 = vsub.s32 2, %v2729
        %v2731 = vrot.slane %v2685, %v2730
        %v2732 = vlaneseq
        %v2733 = vshrl.u32 %v2732, 7
        %v2734 = vsub.s32 3, %v2733
        %v2735 = vrot.slane %v2685, %v2734
        %v2736 = vlaneseq
        %v2737 = vshrl.u32 %v2736, 7
        %v2738 = vsub.s32 4, %v2737
        %v2739 = vrot.slane %v2685, %v2738
        %v2740 = vlaneseq
        %v2741 = vshrl.u32 %v2740, 7
        %v2742 = vsub.s32 5, %v2741
        %v2743 = vrot.slane %v2685, %v2742
        %v2744 = vlaneseq
        %v2745 = vshrl.u32 %v2744, 7
        %v2746 = vsub.s32 6, %v2745
        %v2747 = vrot.slane %v2685, %v2746
        %v2748 = vlaneseq
        %v2749 = vshrl.u32 %v2748, 7
        %v2750 = vsub.s32 7, %v2749
        %v2751 = vrot.slane %v2685, %v2750
        %v2760 = vmul.f32 %v2723, %v2711
        %v2761 = vmul.f32 %v2727, %v2712
        %v2762 = vmul.f32 %v2731, %v2713
        %v2763 = vmul.f32 %v2735, %v2714
        %v2764 = vmul.f32 %v2739, %v2715
        %v2765 = vmul.f32 %v2743, %v2716
        %v2766 = vmul.f32 %v2747, %v2717
        %v2767 = vmul.f32 %v2751, %v2718
        %v2768 = vadd.f32 %v2674, %v2760
        %v2769 = vadd.f32 %v2675, %v2761
        %v2770 = vadd.f32 %v2676, %v2762
        %v2771 = vadd.f32 %v2677, %v2763
        %v2772 = vadd.f32 %v2678, %v2764
        %v2773 = vadd.f32 %v2679, %v2765
        %v2774 = vadd.f32 %v2680, %v2766
        %v2775 = vadd.f32 %v2681, %v2767
        %s2776 = scalar_lea.vmem [#allocation8], 2
        %v2777 = vld [vmem:[%s2776] ss:$8 sm:$0xf]
        %v2778 = vld [vmem:[%s2776] ss:$8 sm:$0xf0]
        %v2779 = vor.u32 %v2777, %v2778
        %2780 = vrot.lane.b32.xlu0 %v2768, 72
        %v2781 = vpop.permute.xlu0 %2780
        %2782 = vrot.lane.b32.xlu0 %v2769, 72
        %v2783 = vpop.permute.xlu0 %2782
        %2784 = vrot.lane.b32.xlu0 %v2770, 72
        %v2785 = vpop.permute.xlu0 %2784
        %2786 = vrot.lane.b32.xlu0 %v2771, 72
        %v2787 = vpop.permute.xlu0 %2786
        %2788 = vrot.lane.b32.xlu0 %v2772, 72
        %v2789 = vpop.permute.xlu0 %2788
        %2790 = vrot.lane.b32.xlu0 %v2773, 72
        %v2791 = vpop.permute.xlu0 %2790
        %2792 = vrot.lane.b32.xlu0 %v2774, 72
        %v2793 = vpop.permute.xlu0 %2792
        %2794 = vrot.lane.b32.xlu0 %v2775, 72
        %v2795 = vpop.permute.xlu0 %2794
        %vm2796 = vcmp.lt.s32.totalorder %v337, 72
        %v2797 = vsel %vm2796, %v2793, %v2795
        %v2798 = vsel %vm2796, %v2791, %v2793
        %v2799 = vsel %vm2796, %v2789, %v2791
        %v2800 = vsel %vm2796, %v2787, %v2789
        %v2801 = vsel %vm2796, %v2785, %v2787
        %v2802 = vsel %vm2796, %v2783, %v2785
        %v2803 = vsel %vm2796, %v2781, %v2783
        %v2804 = vsel %vm2796, %v2795, %v2781
        %v2805 = vsub.f32 %v2797, %v2768
        %v2806 = vsub.f32 %v2804, %v2769
        %v2807 = vsub.f32 %v2803, %v2770
        %v2808 = vsub.f32 %v2802, %v2771
        %v2809 = vsub.f32 %v2801, %v2772
        %v2810 = vsub.f32 %v2800, %v2773
        %v2811 = vsub.f32 %v2799, %v2774
        %v2812 = vsub.f32 %v2798, %v2775
        %v2814 = vlaneseq
        %v2815 = vshrl.u32 %v2814, 7
        %v2816 = vsub.s32 0, %v2815
        %v2817 = vrot.slane %v2779, %v2816
        %v2818 = vlaneseq
        %v2819 = vshrl.u32 %v2818, 7
        %v2820 = vsub.s32 1, %v2819
        %v2821 = vrot.slane %v2779, %v2820
        %v2822 = vlaneseq
        %v2823 = vshrl.u32 %v2822, 7
        %v2824 = vsub.s32 2, %v2823
        %v2825 = vrot.slane %v2779, %v2824
        %v2826 = vlaneseq
        %v2827 = vshrl.u32 %v2826, 7
        %v2828 = vsub.s32 3, %v2827
        %v2829 = vrot.slane %v2779, %v2828
        %v2830 = vlaneseq
        %v2831 = vshrl.u32 %v2830, 7
        %v2832 = vsub.s32 4, %v2831
        %v2833 = vrot.slane %v2779, %v2832
        %v2834 = vlaneseq
        %v2835 = vshrl.u32 %v2834, 7
        %v2836 = vsub.s32 5, %v2835
        %v2837 = vrot.slane %v2779, %v2836
        %v2838 = vlaneseq
        %v2839 = vshrl.u32 %v2838, 7
        %v2840 = vsub.s32 6, %v2839
        %v2841 = vrot.slane %v2779, %v2840
        %v2842 = vlaneseq
        %v2843 = vshrl.u32 %v2842, 7
        %v2844 = vsub.s32 7, %v2843
        %v2845 = vrot.slane %v2779, %v2844
        %v2854 = vmul.f32 %v2817, %v2805
        %v2855 = vmul.f32 %v2821, %v2806
        %v2856 = vmul.f32 %v2825, %v2807
        %v2857 = vmul.f32 %v2829, %v2808
        %v2858 = vmul.f32 %v2833, %v2809
        %v2859 = vmul.f32 %v2837, %v2810
        %v2860 = vmul.f32 %v2841, %v2811
        %v2861 = vmul.f32 %v2845, %v2812
        %v2862 = vadd.f32 %v2768, %v2854
        %v2863 = vadd.f32 %v2769, %v2855
        %v2864 = vadd.f32 %v2770, %v2856
        %v2865 = vadd.f32 %v2771, %v2857
        %v2866 = vadd.f32 %v2772, %v2858
        %v2867 = vadd.f32 %v2773, %v2859
        %v2868 = vadd.f32 %v2774, %v2860
        %v2869 = vadd.f32 %v2775, %v2861
        %s2870 = scalar_lea.vmem [#allocation8], 3
        %v2871 = vld [vmem:[%s2870] ss:$8 sm:$0xf]
        %v2872 = vld [vmem:[%s2870] ss:$8 sm:$0xf0]
        %v2873 = vor.u32 %v2871, %v2872
        %2874 = vrot.lane.b32.xlu0 %v2862, 108
        %v2875 = vpop.permute.xlu0 %2874
        %2876 = vrot.lane.b32.xlu0 %v2863, 108
        %v2877 = vpop.permute.xlu0 %2876
        %2878 = vrot.lane.b32.xlu0 %v2864, 108
        %v2879 = vpop.permute.xlu0 %2878
        %2880 = vrot.lane.b32.xlu0 %v2865, 108
        %v2881 = vpop.permute.xlu0 %2880
        %2882 = vrot.lane.b32.xlu0 %v2866, 108
        %v2883 = vpop.permute.xlu0 %2882
        %2884 = vrot.lane.b32.xlu0 %v2867, 108
        %v2885 = vpop.permute.xlu0 %2884
        %2886 = vrot.lane.b32.xlu0 %v2868, 108
        %v2887 = vpop.permute.xlu0 %2886
        %2888 = vrot.lane.b32.xlu0 %v2869, 108
        %v2889 = vpop.permute.xlu0 %2888
        %vm2890 = vcmp.lt.s32.totalorder %v337, 108
        %v2891 = vsel %vm2890, %v2887, %v2889
        %v2892 = vsel %vm2890, %v2885, %v2887
        %v2893 = vsel %vm2890, %v2883, %v2885
        %v2894 = vsel %vm2890, %v2881, %v2883
        %v2895 = vsel %vm2890, %v2879, %v2881
        %v2896 = vsel %vm2890, %v2877, %v2879
        %v2897 = vsel %vm2890, %v2875, %v2877
        %v2898 = vsel %vm2890, %v2889, %v2875
        %v2899 = vsub.f32 %v2897, %v2862
        %v2900 = vsub.f32 %v2896, %v2863
        %v2901 = vsub.f32 %v2895, %v2864
        %v2902 = vsub.f32 %v2894, %v2865
        %v2903 = vsub.f32 %v2893, %v2866
        %v2904 = vsub.f32 %v2892, %v2867
        %v2905 = vsub.f32 %v2891, %v2868
        %v2906 = vsub.f32 %v2898, %v2869
        %v2908 = vlaneseq
        %v2909 = vshrl.u32 %v2908, 7
        %v2910 = vsub.s32 0, %v2909
        %v2911 = vrot.slane %v2873, %v2910
        %v2912 = vlaneseq
        %v2913 = vshrl.u32 %v2912, 7
        %v2914 = vsub.s32 1, %v2913
        %v2915 = vrot.slane %v2873, %v2914
        %v2916 = vlaneseq
        %v2917 = vshrl.u32 %v2916, 7
        %v2918 = vsub.s32 2, %v2917
        %v2919 = vrot.slane %v2873, %v2918
        %v2920 = vlaneseq
        %v2921 = vshrl.u32 %v2920, 7
        %v2922 = vsub.s32 3, %v2921
        %v2923 = vrot.slane %v2873, %v2922
        %v2924 = vlaneseq
        %v2925 = vshrl.u32 %v2924, 7
        %v2926 = vsub.s32 4, %v2925
        %v2927 = vrot.slane %v2873, %v2926
        %v2928 = vlaneseq
        %v2929 = vshrl.u32 %v2928, 7
        %v2930 = vsub.s32 5, %v2929
        %v2931 = vrot.slane %v2873, %v2930
        %v2932 = vlaneseq
        %v2933 = vshrl.u32 %v2932, 7
        %v2934 = vsub.s32 6, %v2933
        %v2935 = vrot.slane %v2873, %v2934
        %v2936 = vlaneseq
        %v2937 = vshrl.u32 %v2936, 7
        %v2938 = vsub.s32 7, %v2937
        %v2939 = vrot.slane %v2873, %v2938
        %v2948 = vmul.f32 %v2911, %v2899
        %v2949 = vmul.f32 %v2915, %v2900
        %v2950 = vmul.f32 %v2919, %v2901
        %v2951 = vmul.f32 %v2923, %v2902
        %v2952 = vmul.f32 %v2927, %v2903
        %v2953 = vmul.f32 %v2931, %v2904
        %v2954 = vmul.f32 %v2935, %v2905
        %v2955 = vmul.f32 %v2939, %v2906
        %v2956 = vadd.f32 %v2862, %v2948
        %v2957 = vadd.f32 %v2863, %v2949
        %v2958 = vadd.f32 %v2864, %v2950
        %v2959 = vadd.f32 %v2865, %v2951
        %v2960 = vadd.f32 %v2866, %v2952
        %v2961 = vadd.f32 %v2867, %v2953
        %v2962 = vadd.f32 %v2868, %v2954
        %v2963 = vadd.f32 %v2869, %v2955
        %s2964 = scalar_lea.vmem [#allocation8], 4
        %v2965 = vld [vmem:[%s2964] ss:$8 sm:$0xf]
        %v2966 = vld [vmem:[%s2964] ss:$8 sm:$0xf0]
        %v2967 = vor.u32 %v2965, %v2966
        %2968 = vrot.lane.b32.xlu0 %v2956, 20
        %v2969 = vpop.permute.xlu0 %2968
        %2970 = vrot.lane.b32.xlu0 %v2957, 20
        %v2971 = vpop.permute.xlu0 %2970
        %2972 = vrot.lane.b32.xlu0 %v2958, 20
        %v2973 = vpop.permute.xlu0 %2972
        %2974 = vrot.lane.b32.xlu0 %v2959, 20
        %v2975 = vpop.permute.xlu0 %2974
        %2976 = vrot.lane.b32.xlu0 %v2960, 20
        %v2977 = vpop.permute.xlu0 %2976
        %2978 = vrot.lane.b32.xlu0 %v2961, 20
        %v2979 = vpop.permute.xlu0 %2978
        %2980 = vrot.lane.b32.xlu0 %v2962, 20
        %v2981 = vpop.permute.xlu0 %2980
        %2982 = vrot.lane.b32.xlu0 %v2963, 20
        %v2983 = vpop.permute.xlu0 %2982
        %vm2984 = vcmp.lt.s32.totalorder %v337, 20
        %v2985 = vsel %vm2984, %v2981, %v2983
        %v2986 = vsel %vm2984, %v2979, %v2981
        %v2987 = vsel %vm2984, %v2977, %v2979
        %v2988 = vsel %vm2984, %v2975, %v2977
        %v2989 = vsel %vm2984, %v2973, %v2975
        %v2990 = vsel %vm2984, %v2971, %v2973
        %v2991 = vsel %vm2984, %v2969, %v2971
        %v2992 = vsel %vm2984, %v2983, %v2969
        %v2993 = vsub.f32 %v2992, %v2956
        %v2994 = vsub.f32 %v2991, %v2957
        %v2995 = vsub.f32 %v2990, %v2958
        %v2996 = vsub.f32 %v2989, %v2959
        %v2997 = vsub.f32 %v2988, %v2960
        %v2998 = vsub.f32 %v2987, %v2961
        %v2999 = vsub.f32 %v2986, %v2962
        %v3000 = vsub.f32 %v2985, %v2963
        %v3002 = vlaneseq
        %v3003 = vshrl.u32 %v3002, 7
        %v3004 = vsub.s32 0, %v3003
        %v3005 = vrot.slane %v2967, %v3004
        %v3006 = vlaneseq
        %v3007 = vshrl.u32 %v3006, 7
        %v3008 = vsub.s32 1, %v3007
        %v3009 = vrot.slane %v2967, %v3008
        %v3010 = vlaneseq
        %v3011 = vshrl.u32 %v3010, 7
        %v3012 = vsub.s32 2, %v3011
        %v3013 = vrot.slane %v2967, %v3012
        %v3014 = vlaneseq
        %v3015 = vshrl.u32 %v3014, 7
        %v3016 = vsub.s32 3, %v3015
        %v3017 = vrot.slane %v2967, %v3016
        %v3018 = vlaneseq
        %v3019 = vshrl.u32 %v3018, 7
        %v3020 = vsub.s32 4, %v3019
        %v3021 = vrot.slane %v2967, %v3020
        %v3022 = vlaneseq
        %v3023 = vshrl.u32 %v3022, 7
        %v3024 = vsub.s32 5, %v3023
        %v3025 = vrot.slane %v2967, %v3024
        %v3026 = vlaneseq
        %v3027 = vshrl.u32 %v3026, 7
        %v3028 = vsub.s32 6, %v3027
        %v3029 = vrot.slane %v2967, %v3028
        %v3030 = vlaneseq
        %v3031 = vshrl.u32 %v3030, 7
        %v3032 = vsub.s32 7, %v3031
        %v3033 = vrot.slane %v2967, %v3032
        %v3042 = vmul.f32 %v3005, %v2993
        %v3043 = vmul.f32 %v3009, %v2994
        %v3044 = vmul.f32 %v3013, %v2995
        %v3045 = vmul.f32 %v3017, %v2996
        %v3046 = vmul.f32 %v3021, %v2997
        %v3047 = vmul.f32 %v3025, %v2998
        %v3048 = vmul.f32 %v3029, %v2999
        %v3049 = vmul.f32 %v3033, %v3000
        %v3050 = vadd.f32 %v2956, %v3042
        %v3051 = vadd.f32 %v2957, %v3043
        %v3052 = vadd.f32 %v2958, %v3044
        %v3053 = vadd.f32 %v2959, %v3045
        %v3054 = vadd.f32 %v2960, %v3046
        %v3055 = vadd.f32 %v2961, %v3047
        %v3056 = vadd.f32 %v2962, %v3048
        %v3057 = vadd.f32 %v2963, %v3049
        %s3058 = scalar_lea.vmem [#allocation8], 5
        %v3059 = vld [vmem:[%s3058] ss:$8 sm:$0xf]
        %v3060 = vld [vmem:[%s3058] ss:$8 sm:$0xf0]
        %v3061 = vor.u32 %v3059, %v3060
        %3062 = vrot.lane.b32.xlu0 %v3050, 126
        %v3063 = vpop.permute.xlu0 %3062
        %3064 = vrot.lane.b32.xlu0 %v3051, 126
        %v3065 = vpop.permute.xlu0 %3064
        %3066 = vrot.lane.b32.xlu0 %v3052, 126
        %v3067 = vpop.permute.xlu0 %3066
        %3068 = vrot.lane.b32.xlu0 %v3053, 126
        %v3069 = vpop.permute.xlu0 %3068
        %3070 = vrot.lane.b32.xlu0 %v3054, 126
        %v3071 = vpop.permute.xlu0 %3070
        %3072 = vrot.lane.b32.xlu0 %v3055, 126
        %v3073 = vpop.permute.xlu0 %3072
        %3074 = vrot.lane.b32.xlu0 %v3056, 126
        %v3075 = vpop.permute.xlu0 %3074
        %3076 = vrot.lane.b32.xlu0 %v3057, 126
        %v3077 = vpop.permute.xlu0 %3076
        %vm3078 = vcmp.lt.s32.totalorder %v337, 126
        %v3079 = vsel %vm3078, %v3075, %v3077
        %v3080 = vsel %vm3078, %v3073, %v3075
        %v3081 = vsel %vm3078, %v3071, %v3073
        %v3082 = vsel %vm3078, %v3069, %v3071
        %v3083 = vsel %vm3078, %v3067, %v3069
        %v3084 = vsel %vm3078, %v3065, %v3067
        %v3085 = vsel %vm3078, %v3063, %v3065
        %v3086 = vsel %vm3078, %v3077, %v3063
        %v3087 = vsub.f32 %v3085, %v3050
        %v3088 = vsub.f32 %v3084, %v3051
        %v3089 = vsub.f32 %v3083, %v3052
        %v3090 = vsub.f32 %v3082, %v3053
        %v3091 = vsub.f32 %v3081, %v3054
        %v3092 = vsub.f32 %v3080, %v3055
        %v3093 = vsub.f32 %v3079, %v3056
        %v3094 = vsub.f32 %v3086, %v3057
        %v3096 = vlaneseq
        %v3097 = vshrl.u32 %v3096, 7
        %v3098 = vsub.s32 0, %v3097
        %v3099 = vrot.slane %v3061, %v3098
        %v3100 = vlaneseq
        %v3101 = vshrl.u32 %v3100, 7
        %v3102 = vsub.s32 1, %v3101
        %v3103 = vrot.slane %v3061, %v3102
        %v3104 = vlaneseq
        %v3105 = vshrl.u32 %v3104, 7
        %v3106 = vsub.s32 2, %v3105
        %v3107 = vrot.slane %v3061, %v3106
        %v3108 = vlaneseq
        %v3109 = vshrl.u32 %v3108, 7
        %v3110 = vsub.s32 3, %v3109
        %v3111 = vrot.slane %v3061, %v3110
        %v3112 = vlaneseq
        %v3113 = vshrl.u32 %v3112, 7
        %v3114 = vsub.s32 4, %v3113
        %v3115 = vrot.slane %v3061, %v3114
        %v3116 = vlaneseq
        %v3117 = vshrl.u32 %v3116, 7
        %v3118 = vsub.s32 5, %v3117
        %v3119 = vrot.slane %v3061, %v3118
        %v3120 = vlaneseq
        %v3121 = vshrl.u32 %v3120, 7
        %v3122 = vsub.s32 6, %v3121
        %v3123 = vrot.slane %v3061, %v3122
        %v3124 = vlaneseq
        %v3125 = vshrl.u32 %v3124, 7
        %v3126 = vsub.s32 7, %v3125
        %v3127 = vrot.slane %v3061, %v3126
        %v3136 = vmul.f32 %v3099, %v3087
        %v3137 = vmul.f32 %v3103, %v3088
        %v3138 = vmul.f32 %v3107, %v3089
        %v3139 = vmul.f32 %v3111, %v3090
        %v3140 = vmul.f32 %v3115, %v3091
        %v3141 = vmul.f32 %v3119, %v3092
        %v3142 = vmul.f32 %v3123, %v3093
        %v3143 = vmul.f32 %v3127, %v3094
        %v3144 = vadd.f32 %v3050, %v3136
        %v3145 = vadd.f32 %v3051, %v3137
        %v3146 = vadd.f32 %v3052, %v3138
        %v3147 = vadd.f32 %v3053, %v3139
        %v3148 = vadd.f32 %v3054, %v3140
        %v3149 = vadd.f32 %v3055, %v3141
        %v3150 = vadd.f32 %v3056, %v3142
        %v3151 = vadd.f32 %v3057, %v3143
        %s3152 = scalar_lea.vmem [#allocation8], 6
        %v3153 = vld [vmem:[%s3152] ss:$8 sm:$0xf]
        %v3154 = vld [vmem:[%s3152] ss:$8 sm:$0xf0]
        %v3155 = vor.u32 %v3153, %v3154
        %3156 = vrot.lane.b32.xlu0 %v3144, 2
        %v3157 = vpop.permute.xlu0 %3156
        %3158 = vrot.lane.b32.xlu0 %v3145, 2
        %v3159 = vpop.permute.xlu0 %3158
        %3160 = vrot.lane.b32.xlu0 %v3146, 2
        %v3161 = vpop.permute.xlu0 %3160
        %3162 = vrot.lane.b32.xlu0 %v3147, 2
        %v3163 = vpop.permute.xlu0 %3162
        %3164 = vrot.lane.b32.xlu0 %v3148, 2
        %v3165 = vpop.permute.xlu0 %3164
        %3166 = vrot.lane.b32.xlu0 %v3149, 2
        %v3167 = vpop.permute.xlu0 %3166
        %3168 = vrot.lane.b32.xlu0 %v3150, 2
        %v3169 = vpop.permute.xlu0 %3168
        %3170 = vrot.lane.b32.xlu0 %v3151, 2
        %v3171 = vpop.permute.xlu0 %3170
        %vm3172 = vcmp.lt.s32.totalorder %v337, 2
        %v3173 = vsel %vm3172, %v3169, %v3171
        %v3174 = vsel %vm3172, %v3167, %v3169
        %v3175 = vsel %vm3172, %v3165, %v3167
        %v3176 = vsel %vm3172, %v3163, %v3165
        %v3177 = vsel %vm3172, %v3161, %v3163
        %v3178 = vsel %vm3172, %v3159, %v3161
        %v3179 = vsel %vm3172, %v3157, %v3159
        %v3180 = vsel %vm3172, %v3171, %v3157
        %v3181 = vsub.f32 %v3180, %v3144
        %v3182 = vsub.f32 %v3179, %v3145
        %v3183 = vsub.f32 %v3178, %v3146
        %v3184 = vsub.f32 %v3177, %v3147
        %v3185 = vsub.f32 %v3176, %v3148
        %v3186 = vsub.f32 %v3175, %v3149
        %v3187 = vsub.f32 %v3174, %v3150
        %v3188 = vsub.f32 %v3173, %v3151
        %v3190 = vlaneseq
        %v3191 = vshrl.u32 %v3190, 7
        %v3192 = vsub.s32 0, %v3191
        %v3193 = vrot.slane %v3155, %v3192
        %v3194 = vlaneseq
        %v3195 = vshrl.u32 %v3194, 7
        %v3196 = vsub.s32 1, %v3195
        %v3197 = vrot.slane %v3155, %v3196
        %v3198 = vlaneseq
        %v3199 = vshrl.u32 %v3198, 7
        %v3200 = vsub.s32 2, %v3199
        %v3201 = vrot.slane %v3155, %v3200
        %v3202 = vlaneseq
        %v3203 = vshrl.u32 %v3202, 7
        %v3204 = vsub.s32 3, %v3203
        %v3205 = vrot.slane %v3155, %v3204
        %v3206 = vlaneseq
        %v3207 = vshrl.u32 %v3206, 7
        %v3208 = vsub.s32 4, %v3207
        %v3209 = vrot.slane %v3155, %v3208
        %v3210 = vlaneseq
        %v3211 = vshrl.u32 %v3210, 7
        %v3212 = vsub.s32 5, %v3211
        %v3213 = vrot.slane %v3155, %v3212
        %v3214 = vlaneseq
        %v3215 = vshrl.u32 %v3214, 7
        %v3216 = vsub.s32 6, %v3215
        %v3217 = vrot.slane %v3155, %v3216
        %v3218 = vlaneseq
        %v3219 = vshrl.u32 %v3218, 7
        %v3220 = vsub.s32 7, %v3219
        %v3221 = vrot.slane %v3155, %v3220
        %v3230 = vmul.f32 %v3193, %v3181
        %v3231 = vmul.f32 %v3197, %v3182
        %v3232 = vmul.f32 %v3201, %v3183
        %v3233 = vmul.f32 %v3205, %v3184
        %v3234 = vmul.f32 %v3209, %v3185
        %v3235 = vmul.f32 %v3213, %v3186
        %v3236 = vmul.f32 %v3217, %v3187
        %v3237 = vmul.f32 %v3221, %v3188
        %v3238 = vadd.f32 %v3144, %v3230
        %v3239 = vadd.f32 %v3145, %v3231
        %v3240 = vadd.f32 %v3146, %v3232
        %v3241 = vadd.f32 %v3147, %v3233
        %v3242 = vadd.f32 %v3148, %v3234
        %v3243 = vadd.f32 %v3149, %v3235
        %v3244 = vadd.f32 %v3150, %v3236
        %v3245 = vadd.f32 %v3151, %v3237
        %v3246 = vld [vmem:[%s4] sm:$0xf]
        %3248 = vset.pattern.permute.xlu0 0
        %3249 = vperm.xlu0 %3248, %v3246
        %v3250 = vpop.permute.xlu0 %3249
        %3252 = vrot.lane.b32.xlu0 %v3238, 111
        %v3253 = vpop.permute.xlu0 %3252
        %3254 = vrot.lane.b32.xlu0 %v3239, 111
        %v3255 = vpop.permute.xlu0 %3254
        %3256 = vrot.lane.b32.xlu0 %v3240, 111
        %v3257 = vpop.permute.xlu0 %3256
        %3258 = vrot.lane.b32.xlu0 %v3241, 111
        %v3259 = vpop.permute.xlu0 %3258
        %3260 = vrot.lane.b32.xlu0 %v3242, 111
        %v3261 = vpop.permute.xlu0 %3260
        %3262 = vrot.lane.b32.xlu0 %v3243, 111
        %v3263 = vpop.permute.xlu0 %3262
        %3264 = vrot.lane.b32.xlu0 %v3244, 111
        %v3265 = vpop.permute.xlu0 %3264
        %3266 = vrot.lane.b32.xlu0 %v3245, 111
        %v3267 = vpop.permute.xlu0 %3266
        %v3268 = vsel %vm338, %v3265, %v3267
        %v3269 = vsel %vm338, %v3263, %v3265
        %v3270 = vsel %vm338, %v3261, %v3263
        %v3271 = vsel %vm338, %v3259, %v3261
        %v3272 = vsel %vm338, %v3257, %v3259
        %v3273 = vsel %vm338, %v3255, %v3257
        %v3274 = vsel %vm338, %v3253, %v3255
        %v3275 = vsel %vm338, %v3267, %v3253
        %3276 = vst [vmem:[#allocation2] sm:$0xf] %v3275
        %3277 = vst [vmem:[#allocation2 + $0x8] sm:$0xf] %v3274
        %3278 = vst [vmem:[#allocation2 + $0x10] sm:$0xf] %v3273
        %3279 = vst [vmem:[#allocation2 + $0x18] sm:$0xf] %v3272
        %3280 = vst [vmem:[#allocation2 + $0x20] sm:$0xf] %v3271
        %3281 = vst [vmem:[#allocation2 + $0x28] sm:$0xf] %v3270
        %3282 = vst [vmem:[#allocation2 + $0x30] sm:$0xf] %v3269
        %3283 = vst [vmem:[#allocation2 + $0x38] sm:$0xf] %v3268
        %3284 = vrot.lane.b32.xlu0 %v3238, 110
        %v3285 = vpop.permute.xlu0 %3284
        %3286 = vrot.lane.b32.xlu0 %v3239, 110
        %v3287 = vpop.permute.xlu0 %3286
        %3288 = vrot.lane.b32.xlu0 %v3240, 110
        %v3289 = vpop.permute.xlu0 %3288
        %3290 = vrot.lane.b32.xlu0 %v3241, 110
        %v3291 = vpop.permute.xlu0 %3290
        %3292 = vrot.lane.b32.xlu0 %v3242, 110
        %v3293 = vpop.permute.xlu0 %3292
        %3294 = vrot.lane.b32.xlu0 %v3243, 110
        %v3295 = vpop.permute.xlu0 %3294
        %3296 = vrot.lane.b32.xlu0 %v3244, 110
        %v3297 = vpop.permute.xlu0 %3296
        %3298 = vrot.lane.b32.xlu0 %v3245, 110
        %v3299 = vpop.permute.xlu0 %3298
        %v3300 = vsel %vm371, %v3297, %v3299
        %v3301 = vsel %vm371, %v3295, %v3297
        %v3302 = vsel %vm371, %v3293, %v3295
        %v3303 = vsel %vm371, %v3291, %v3293
        %v3304 = vsel %vm371, %v3289, %v3291
        %v3305 = vsel %vm371, %v3287, %v3289
        %v3306 = vsel %vm371, %v3285, %v3287
        %v3307 = vsel %vm371, %v3299, %v3285
        %v3316 = vrot.slane %v3307, 4
        %v3317 = vrot.slane %v3306, 4
        %v3318 = vrot.slane %v3305, 4
        %v3319 = vrot.slane %v3304, 4
        %v3320 = vrot.slane %v3303, 4
        %v3321 = vrot.slane %v3302, 4
        %v3322 = vrot.slane %v3301, 4
        %v3323 = vrot.slane %v3300, 4
        %3332 = vst [vmem:[#allocation2] sm:$0xf0] %v3316
        %3333 = vst [vmem:[#allocation2 + $0x8] sm:$0xf0] %v3317
        %3334 = vst [vmem:[#allocation2 + $0x10] sm:$0xf0] %v3318
        %3335 = vst [vmem:[#allocation2 + $0x18] sm:$0xf0] %v3319
        %3336 = vst [vmem:[#allocation2 + $0x20] sm:$0xf0] %v3320
        %3337 = vst [vmem:[#allocation2 + $0x28] sm:$0xf0] %v3321
        %3338 = vst [vmem:[#allocation2 + $0x30] sm:$0xf0] %v3322
        %3339 = vst [vmem:[#allocation2 + $0x38] sm:$0xf0] %v3323
        %3340 = vrot.lane.b32.xlu0 %v3238, 109
        %v3341 = vpop.permute.xlu0 %3340
        %3342 = vrot.lane.b32.xlu0 %v3239, 109
        %v3343 = vpop.permute.xlu0 %3342
        %3344 = vrot.lane.b32.xlu0 %v3240, 109
        %v3345 = vpop.permute.xlu0 %3344
        %3346 = vrot.lane.b32.xlu0 %v3241, 109
        %v3347 = vpop.permute.xlu0 %3346
        %3348 = vrot.lane.b32.xlu0 %v3242, 109
        %v3349 = vpop.permute.xlu0 %3348
        %3350 = vrot.lane.b32.xlu0 %v3243, 109
        %v3351 = vpop.permute.xlu0 %3350
        %3352 = vrot.lane.b32.xlu0 %v3244, 109
        %v3353 = vpop.permute.xlu0 %3352
        %3354 = vrot.lane.b32.xlu0 %v3245, 109
        %v3355 = vpop.permute.xlu0 %3354
        %v3356 = vsel %vm428, %v3353, %v3355
        %v3357 = vsel %vm428, %v3351, %v3353
        %v3358 = vsel %vm428, %v3349, %v3351
        %v3359 = vsel %vm428, %v3347, %v3349
        %v3360 = vsel %vm428, %v3345, %v3347
        %v3361 = vsel %vm428, %v3343, %v3345
        %v3362 = vsel %vm428, %v3341, %v3343
        %v3363 = vsel %vm428, %v3355, %v3341
        %3364 = vst [vmem:[#allocation2 + $0x40] sm:$0xf] %v3363
        %3365 = vst [vmem:[#allocation2 + $0x48] sm:$0xf] %v3362
        %3366 = vst [vmem:[#allocation2 + $0x50] sm:$0xf] %v3361
        %3367 = vst [vmem:[#allocation2 + $0x58] sm:$0xf] %v3360
        %3368 = vst [vmem:[#allocation2 + $0x60] sm:$0xf] %v3359
        %3369 = vst [vmem:[#allocation2 + $0x68] sm:$0xf] %v3358
        %3370 = vst [vmem:[#allocation2 + $0x70] sm:$0xf] %v3357
        %3371 = vst [vmem:[#allocation2 + $0x78] sm:$0xf] %v3356
        %3372 = vrot.lane.b32.xlu0 %v3238, 101
        %v3373 = vpop.permute.xlu0 %3372
        %3374 = vrot.lane.b32.xlu0 %v3239, 101
        %v3375 = vpop.permute.xlu0 %3374
        %3376 = vrot.lane.b32.xlu0 %v3240, 101
        %v3377 = vpop.permute.xlu0 %3376
        %3378 = vrot.lane.b32.xlu0 %v3241, 101
        %v3379 = vpop.permute.xlu0 %3378
        %3380 = vrot.lane.b32.xlu0 %v3242, 101
        %v3381 = vpop.permute.xlu0 %3380
        %3382 = vrot.lane.b32.xlu0 %v3243, 101
        %v3383 = vpop.permute.xlu0 %3382
        %3384 = vrot.lane.b32.xlu0 %v3244, 101
        %v3385 = vpop.permute.xlu0 %3384
        %3386 = vrot.lane.b32.xlu0 %v3245, 101
        %v3387 = vpop.permute.xlu0 %3386
        %v3388 = vsel %vm461, %v3385, %v3387
        %v3389 = vsel %vm461, %v3383, %v3385
        %v3390 = vsel %vm461, %v3381, %v3383
        %v3391 = vsel %vm461, %v3379, %v3381
        %v3392 = vsel %vm461, %v3377, %v3379
        %v3393 = vsel %vm461, %v3375, %v3377
        %v3394 = vsel %vm461, %v3373, %v3375
        %v3395 = vsel %vm461, %v3387, %v3373
        %v3404 = vrot.slane %v3395, 4
        %v3405 = vrot.slane %v3394, 4
        %v3406 = vrot.slane %v3393, 4
        %v3407 = vrot.slane %v3392, 4
        %v3408 = vrot.slane %v3391, 4
        %v3409 = vrot.slane %v3390, 4
        %v3410 = vrot.slane %v3389, 4
        %v3411 = vrot.slane %v3388, 4
        %3420 = vst [vmem:[#allocation2 + $0x40] sm:$0xf0] %v3404
        %3421 = vst [vmem:[#allocation2 + $0x48] sm:$0xf0] %v3405
        %3422 = vst [vmem:[#allocation2 + $0x50] sm:$0xf0] %v3406
        %3423 = vst [vmem:[#allocation2 + $0x58] sm:$0xf0] %v3407
        %3424 = vst [vmem:[#allocation2 + $0x60] sm:$0xf0] %v3408
        %3425 = vst [vmem:[#allocation2 + $0x68] sm:$0xf0] %v3409
        %3426 = vst [vmem:[#allocation2 + $0x70] sm:$0xf0] %v3410
        %3427 = vst [vmem:[#allocation2 + $0x78] sm:$0xf0] %v3411
        %3428 = vrot.lane.b32.xlu0 %v3238, 100
        %v3429 = vpop.permute.xlu0 %3428
        %3430 = vrot.lane.b32.xlu0 %v3239, 100
        %v3431 = vpop.permute.xlu0 %3430
        %3432 = vrot.lane.b32.xlu0 %v3240, 100
        %v3433 = vpop.permute.xlu0 %3432
        %3434 = vrot.lane.b32.xlu0 %v3241, 100
        %v3435 = vpop.permute.xlu0 %3434
        %3436 = vrot.lane.b32.xlu0 %v3242, 100
        %v3437 = vpop.permute.xlu0 %3436
        %3438 = vrot.lane.b32.xlu0 %v3243, 100
        %v3439 = vpop.permute.xlu0 %3438
        %3440 = vrot.lane.b32.xlu0 %v3244, 100
        %v3441 = vpop.permute.xlu0 %3440
        %3442 = vrot.lane.b32.xlu0 %v3245, 100
        %v3443 = vpop.permute.xlu0 %3442
        %v3444 = vsel %vm518, %v3441, %v3443
        %v3445 = vsel %vm518, %v3439, %v3441
        %v3446 = vsel %vm518, %v3437, %v3439
        %v3447 = vsel %vm518, %v3435, %v3437
        %v3448 = vsel %vm518, %v3433, %v3435
        %v3449 = vsel %vm518, %v3431, %v3433
        %v3450 = vsel %vm518, %v3429, %v3431
        %v3451 = vsel %vm518, %v3443, %v3429
        %3452 = vst [vmem:[#allocation2 + $0x80] sm:$0xf] %v3451
        %3453 = vst [vmem:[#allocation2 + $0x88] sm:$0xf] %v3450
        %3454 = vst [vmem:[#allocation2 + $0x90] sm:$0xf] %v3449
        %3455 = vst [vmem:[#allocation2 + $0x98] sm:$0xf] %v3448
        %3456 = vst [vmem:[#allocation2 + $0xa0] sm:$0xf] %v3447
        %3457 = vst [vmem:[#allocation2 + $0xa8] sm:$0xf] %v3446
        %3458 = vst [vmem:[#allocation2 + $0xb0] sm:$0xf] %v3445
        %3459 = vst [vmem:[#allocation2 + $0xb8] sm:$0xf] %v3444
        %3460 = vrot.lane.b32.xlu0 %v3238, 99
        %v3461 = vpop.permute.xlu0 %3460
        %3462 = vrot.lane.b32.xlu0 %v3239, 99
        %v3463 = vpop.permute.xlu0 %3462
        %3464 = vrot.lane.b32.xlu0 %v3240, 99
        %v3465 = vpop.permute.xlu0 %3464
        %3466 = vrot.lane.b32.xlu0 %v3241, 99
        %v3467 = vpop.permute.xlu0 %3466
        %3468 = vrot.lane.b32.xlu0 %v3242, 99
        %v3469 = vpop.permute.xlu0 %3468
        %3470 = vrot.lane.b32.xlu0 %v3243, 99
        %v3471 = vpop.permute.xlu0 %3470
        %3472 = vrot.lane.b32.xlu0 %v3244, 99
        %v3473 = vpop.permute.xlu0 %3472
        %3474 = vrot.lane.b32.xlu0 %v3245, 99
        %v3475 = vpop.permute.xlu0 %3474
        %v3476 = vsel %vm551, %v3473, %v3475
        %v3477 = vsel %vm551, %v3471, %v3473
        %v3478 = vsel %vm551, %v3469, %v3471
        %v3479 = vsel %vm551, %v3467, %v3469
        %v3480 = vsel %vm551, %v3465, %v3467
        %v3481 = vsel %vm551, %v3463, %v3465
        %v3482 = vsel %vm551, %v3461, %v3463
        %v3483 = vsel %vm551, %v3475, %v3461
        %v3492 = vrot.slane %v3483, 4
        %v3493 = vrot.slane %v3482, 4
        %v3494 = vrot.slane %v3481, 4
        %v3495 = vrot.slane %v3480, 4
        %v3496 = vrot.slane %v3479, 4
        %v3497 = vrot.slane %v3478, 4
        %v3498 = vrot.slane %v3477, 4
        %v3499 = vrot.slane %v3476, 4
        %3508 = vst [vmem:[#allocation2 + $0x80] sm:$0xf0] %v3492
        %3509 = vst [vmem:[#allocation2 + $0x88] sm:$0xf0] %v3493
        %3510 = vst [vmem:[#allocation2 + $0x90] sm:$0xf0] %v3494
        %3511 = vst [vmem:[#allocation2 + $0x98] sm:$0xf0] %v3495
        %3512 = vst [vmem:[#allocation2 + $0xa0] sm:$0xf0] %v3496
        %3513 = vst [vmem:[#allocation2 + $0xa8] sm:$0xf0] %v3497
        %3514 = vst [vmem:[#allocation2 + $0xb0] sm:$0xf0] %v3498
        %3515 = vst [vmem:[#allocation2 + $0xb8] sm:$0xf0] %v3499
        %3516 = vrot.lane.b32.xlu0 %v3238, 91
        %v3517 = vpop.permute.xlu0 %3516
        %3518 = vrot.lane.b32.xlu0 %v3239, 91
        %v3519 = vpop.permute.xlu0 %3518
        %3520 = vrot.lane.b32.xlu0 %v3240, 91
        %v3521 = vpop.permute.xlu0 %3520
        %3522 = vrot.lane.b32.xlu0 %v3241, 91
        %v3523 = vpop.permute.xlu0 %3522
        %3524 = vrot.lane.b32.xlu0 %v3242, 91
        %v3525 = vpop.permute.xlu0 %3524
        %3526 = vrot.lane.b32.xlu0 %v3243, 91
        %v3527 = vpop.permute.xlu0 %3526
        %3528 = vrot.lane.b32.xlu0 %v3244, 91
        %v3529 = vpop.permute.xlu0 %3528
        %3530 = vrot.lane.b32.xlu0 %v3245, 91
        %v3531 = vpop.permute.xlu0 %3530
        %v3532 = vsel %vm608, %v3529, %v3531
        %v3533 = vsel %vm608, %v3527, %v3529
        %v3534 = vsel %vm608, %v3525, %v3527
        %v3535 = vsel %vm608, %v3523, %v3525
        %v3536 = vsel %vm608, %v3521, %v3523
        %v3537 = vsel %vm608, %v3519, %v3521
        %v3538 = vsel %vm608, %v3517, %v3519
        %v3539 = vsel %vm608, %v3531, %v3517
        %3540 = vst [vmem:[#allocation2 + $0xc0] sm:$0xf] %v3539
        %3541 = vst [vmem:[#allocation2 + $0xc8] sm:$0xf] %v3538
        %3542 = vst [vmem:[#allocation2 + $0xd0] sm:$0xf] %v3537
        %3543 = vst [vmem:[#allocation2 + $0xd8] sm:$0xf] %v3536
        %3544 = vst [vmem:[#allocation2 + $0xe0] sm:$0xf] %v3535
        %3545 = vst [vmem:[#allocation2 + $0xe8] sm:$0xf] %v3534
        %3546 = vst [vmem:[#allocation2 + $0xf0] sm:$0xf] %v3533
        %3547 = vst [vmem:[#allocation2 + $0xf8] sm:$0xf] %v3532
        %3548 = vrot.lane.b32.xlu0 %v3238, 90
        %v3549 = vpop.permute.xlu0 %3548
        %3550 = vrot.lane.b32.xlu0 %v3239, 90
        %v3551 = vpop.permute.xlu0 %3550
        %3552 = vrot.lane.b32.xlu0 %v3240, 90
        %v3553 = vpop.permute.xlu0 %3552
        %3554 = vrot.lane.b32.xlu0 %v3241, 90
        %v3555 = vpop.permute.xlu0 %3554
        %3556 = vrot.lane.b32.xlu0 %v3242, 90
        %v3557 = vpop.permute.xlu0 %3556
        %3558 = vrot.lane.b32.xlu0 %v3243, 90
        %v3559 = vpop.permute.xlu0 %3558
        %3560 = vrot.lane.b32.xlu0 %v3244, 90
        %v3561 = vpop.permute.xlu0 %3560
        %3562 = vrot.lane.b32.xlu0 %v3245, 90
        %v3563 = vpop.permute.xlu0 %3562
        %v3564 = vsel %vm641, %v3561, %v3563
        %v3565 = vsel %vm641, %v3559, %v3561
        %v3566 = vsel %vm641, %v3557, %v3559
        %v3567 = vsel %vm641, %v3555, %v3557
        %v3568 = vsel %vm641, %v3553, %v3555
        %v3569 = vsel %vm641, %v3551, %v3553
        %v3570 = vsel %vm641, %v3549, %v3551
        %v3571 = vsel %vm641, %v3563, %v3549
        %v3580 = vrot.slane %v3571, 4
        %v3581 = vrot.slane %v3570, 4
        %v3582 = vrot.slane %v3569, 4
        %v3583 = vrot.slane %v3568, 4
        %v3584 = vrot.slane %v3567, 4
        %v3585 = vrot.slane %v3566, 4
        %v3586 = vrot.slane %v3565, 4
        %v3587 = vrot.slane %v3564, 4
        %3596 = vst [vmem:[#allocation2 + $0xc0] sm:$0xf0] %v3580
        %3597 = vst [vmem:[#allocation2 + $0xc8] sm:$0xf0] %v3581
        %3598 = vst [vmem:[#allocation2 + $0xd0] sm:$0xf0] %v3582
        %3599 = vst [vmem:[#allocation2 + $0xd8] sm:$0xf0] %v3583
        %3600 = vst [vmem:[#allocation2 + $0xe0] sm:$0xf0] %v3584
        %3601 = vst [vmem:[#allocation2 + $0xe8] sm:$0xf0] %v3585
        %3602 = vst [vmem:[#allocation2 + $0xf0] sm:$0xf0] %v3586
        %3603 = vst [vmem:[#allocation2 + $0xf8] sm:$0xf0] %v3587
        %3604 = vrot.lane.b32.xlu0 %v3238, 89
        %v3605 = vpop.permute.xlu0 %3604
        %3606 = vrot.lane.b32.xlu0 %v3239, 89
        %v3607 = vpop.permute.xlu0 %3606
        %3608 = vrot.lane.b32.xlu0 %v3240, 89
        %v3609 = vpop.permute.xlu0 %3608
        %3610 = vrot.lane.b32.xlu0 %v3241, 89
        %v3611 = vpop.permute.xlu0 %3610
        %3612 = vrot.lane.b32.xlu0 %v3242, 89
        %v3613 = vpop.permute.xlu0 %3612
        %3614 = vrot.lane.b32.xlu0 %v3243, 89
        %v3615 = vpop.permute.xlu0 %3614
        %3616 = vrot.lane.b32.xlu0 %v3244, 89
        %v3617 = vpop.permute.xlu0 %3616
        %3618 = vrot.lane.b32.xlu0 %v3245, 89
        %v3619 = vpop.permute.xlu0 %3618
        %v3620 = vsel %vm698, %v3617, %v3619
        %v3621 = vsel %vm698, %v3615, %v3617
        %v3622 = vsel %vm698, %v3613, %v3615
        %v3623 = vsel %vm698, %v3611, %v3613
        %v3624 = vsel %vm698, %v3609, %v3611
        %v3625 = vsel %vm698, %v3607, %v3609
        %v3626 = vsel %vm698, %v3605, %v3607
        %v3627 = vsel %vm698, %v3619, %v3605
        %3628 = vst [vmem:[#allocation2 + $0x100] sm:$0xf] %v3627
        %3629 = vst [vmem:[#allocation2 + $0x108] sm:$0xf] %v3626
        %3630 = vst [vmem:[#allocation2 + $0x110] sm:$0xf] %v3625
        %3631 = vst [vmem:[#allocation2 + $0x118] sm:$0xf] %v3624
        %3632 = vst [vmem:[#allocation2 + $0x120] sm:$0xf] %v3623
        %3633 = vst [vmem:[#allocation2 + $0x128] sm:$0xf] %v3622
        %3634 = vst [vmem:[#allocation2 + $0x130] sm:$0xf] %v3621
        %3635 = vst [vmem:[#allocation2 + $0x138] sm:$0xf] %v3620
        %v3636 = vld [vmem:[#allocation6] sm:$0xf]
        %v3637 = vld [vmem:[#allocation2] sm:$0xff]
        %v3638 = vld [vmem:[#allocation2 + $0x8] sm:$0xff]
        %v3639 = vld [vmem:[#allocation2 + $0x10] sm:$0xff]
        %v3640 = vld [vmem:[#allocation2 + $0x18] sm:$0xff]
        %v3641 = vld [vmem:[#allocation2 + $0x20] sm:$0xff]
        %v3642 = vld [vmem:[#allocation2 + $0x28] sm:$0xff]
        %v3643 = vld [vmem:[#allocation2 + $0x30] sm:$0xff]
        %v3644 = vld [vmem:[#allocation2 + $0x38] sm:$0xff]
        %v3645 = vld [vmem:[#allocation2 + $0x40] sm:$0xff]
        %v3646 = vld [vmem:[#allocation2 + $0x48] sm:$0xff]
        %v3647 = vld [vmem:[#allocation2 + $0x50] sm:$0xff]
        %v3648 = vld [vmem:[#allocation2 + $0x58] sm:$0xff]
        %v3649 = vld [vmem:[#allocation2 + $0x60] sm:$0xff]
        %v3650 = vld [vmem:[#allocation2 + $0x68] sm:$0xff]
        %v3651 = vld [vmem:[#allocation2 + $0x70] sm:$0xff]
        %v3652 = vld [vmem:[#allocation2 + $0x78] sm:$0xff]
        %v3653 = vld [vmem:[#allocation2 + $0x80] sm:$0xff]
        %v3654 = vld [vmem:[#allocation2 + $0x88] sm:$0xff]
        %v3655 = vld [vmem:[#allocation2 + $0x90] sm:$0xff]
        %v3656 = vld [vmem:[#allocation2 + $0x98] sm:$0xff]
        %v3657 = vld [vmem:[#allocation2 + $0xa0] sm:$0xff]
        %v3658 = vld [vmem:[#allocation2 + $0xa8] sm:$0xff]
        %v3659 = vld [vmem:[#allocation2 + $0xb0] sm:$0xff]
        %v3660 = vld [vmem:[#allocation2 + $0xb8] sm:$0xff]
        %v3661 = vld [vmem:[#allocation2 + $0xc0] sm:$0xff]
        %v3662 = vld [vmem:[#allocation2 + $0xc8] sm:$0xff]
        %v3663 = vld [vmem:[#allocation2 + $0xd0] sm:$0xff]
        %v3664 = vld [vmem:[#allocation2 + $0xd8] sm:$0xff]
        %v3665 = vld [vmem:[#allocation2 + $0xe0] sm:$0xff]
        %v3666 = vld [vmem:[#allocation2 + $0xe8] sm:$0xff]
        %v3667 = vld [vmem:[#allocation2 + $0xf0] sm:$0xff]
        %v3668 = vld [vmem:[#allocation2 + $0xf8] sm:$0xff]
        %v3669 = vld [vmem:[#allocation2 + $0x100] sm:$0xf]
        %v3670 = vld [vmem:[#allocation2 + $0x108] sm:$0xf]
        %v3671 = vld [vmem:[#allocation2 + $0x110] sm:$0xf]
        %v3672 = vld [vmem:[#allocation2 + $0x118] sm:$0xf]
        %v3673 = vld [vmem:[#allocation2 + $0x120] sm:$0xf]
        %v3674 = vld [vmem:[#allocation2 + $0x128] sm:$0xf]
        %v3675 = vld [vmem:[#allocation2 + $0x130] sm:$0xf]
        %v3676 = vld [vmem:[#allocation2 + $0x138] sm:$0xf]
        %v3678 = vsel %vm756, %v3636, 0
        %v3681 = vsel %vm760, %v3669, 0
        %v3684 = vsel %vm760, %v3670, 0
        %v3687 = vsel %vm760, %v3671, 0
        %v3690 = vsel %vm760, %v3672, 0
        %v3693 = vsel %vm760, %v3673, 0
        %v3696 = vsel %vm760, %v3674, 0
        %v3699 = vsel %vm760, %v3675, 0
        %v3702 = vsel %vm760, %v3676, 0
        %3704 = vmatprep.subr.mxu0 %v3638
        %3705 = vmatpush1.msra.mxu0 %v3637
        %3706 = vmatprep.subr.mxu0 %v3646
        %3707 = vmatpush1.msra.mxu0 %v3645
        %3708 = vmatprep.subr.mxu0 %v3654
        %3709 = vmatpush1.msra.mxu0 %v3653
        %3710 = vmatprep.subr.mxu0 %v3662
        %3711 = vmatpush1.msra.mxu0 %v3661
        %3712 = vmatprep.subr.mxu0 %v3684
        %3713 = vmatpush1.msra.mxu0 %v3681
        %3714 = vmatprep.subr.mxu0 0.0
        %3715 = vmatpush1.msra.mxu0 0.0
        %3716 = vmatprep.subr.mxu0 0.0
        %3717 = vmatpush1.msra.mxu0 0.0
        %3718 = vmatprep.subr.mxu0 0.0
        %3719 = vmatpush1.msra.mxu0 0.0
        %3720 = vmatprep.subr.mxu0 0.0
        %3721 = vmatpush1.msra.mxu0 0.0
        %3722 = vmatprep.subr.mxu0 0.0
        %3723 = vmatpush1.msra.mxu0 0.0
        %3724 = vmatprep.subr.mxu0 0.0
        %3725 = vmatpush1.msra.mxu0 0.0
        %3726 = vmatprep.subr.mxu0 0.0
        %3727 = vmatpush1.msra.mxu0 0.0
        %3728 = vmatprep.subr.mxu0 0.0
        %3729 = vmatpush1.msra.mxu0 0.0
        %3730 = vmatprep.subr.mxu0 0.0
        %3731 = vmatpush1.msra.mxu0 0.0
        %3732 = vmatprep.subr.mxu0 0.0
        %3733 = vmatpush1.msra.mxu0 0.0
        %3734 = vmatprep.subr.mxu0 0.0
        %3735 = vmatpush1.msra.mxu0 0.0
        %3736 = vmatprep.subr.mxu0 0.0
        %3737 = vmatpush1.msra.mxu0 0.0
        %3738 = vmatprep.subr.mxu0 0.0
        %3739 = vmatpush1.msra.mxu0 0.0
        %3740 = vmatprep.subr.mxu0 0.0
        %3741 = vmatpush1.msra.mxu0 0.0
        %3742 = vmatprep.subr.mxu0 0.0
        %3743 = vmatpush1.msra.mxu0 0.0
        %3744 = vmatprep.subr.mxu0 0.0
        %3745 = vmatpush1.msra.mxu0 0.0
        %3746 = vmatprep.subr.mxu0 0.0
        %3747 = vmatpush1.msra.mxu0 0.0
        %3748 = vmatprep.subr.mxu0 0.0
        %3749 = vmatpush1.msra.mxu0 0.0
        %3750 = vmatprep.subr.mxu0 0.0
        %3751 = vmatpush1.msra.mxu0 0.0
        %3752 = vmatprep.subr.mxu0 0.0
        %3753 = vmatpush1.msra.mxu0 0.0
        %3754 = vmatprep.subr.mxu0 0.0
        %3755 = vmatpush1.msra.mxu0 0.0
        %3756 = vmatprep.subr.mxu0 0.0
        %3757 = vmatpush1.msra.mxu0 0.0
        %3758 = vmatprep.subr.mxu0 0.0
        %3759 = vmatpush1.msra.mxu0 0.0
        %3760 = vmatprep.subr.mxu0 0.0
        %3761 = vmatpush1.msra.mxu0 0.0
        %3762 = vmatprep.subr.mxu0 0.0
        %3763 = vmatpush1.msra.mxu0 0.0
        %3764 = vmatprep.subr.mxu0 0.0
        %3765 = vmatpush1.msra.mxu0 0.0
        %3766 = vmatprep.subr.mxu0 0.0
        %3767 = vmatpush1.msra.mxu0 0.0
        %3768 = vmatprep.mubr.f32.mxu0 0.0
        %3769 = vmatmul.mubr.f32.gmra.mrb[0].mxu0 %v3678
        %v3770 = vpop.f32.mrb[0].mxu0
        %v3771 = vadd.f32 0.0, %v3770
        %v3772 = vpop.f32.mrb[0].mxu0
        %v3773 = vadd.f32 0.0, %v3772
        %3774 = vdwg.mxu0
        %3775 = vmatprep.subr.mxu0 %v3640
        %3776 = vmatpush1.msra.mxu0 %v3639
        %3777 = vmatprep.subr.mxu0 %v3648
        %3778 = vmatpush1.msra.mxu0 %v3647
        %3779 = vmatprep.subr.mxu0 %v3656
        %3780 = vmatpush1.msra.mxu0 %v3655
        %3781 = vmatprep.subr.mxu0 %v3664
        %3782 = vmatpush1.msra.mxu0 %v3663
        %3783 = vmatprep.subr.mxu0 %v3690
        %3784 = vmatpush1.msra.mxu0 %v3687
        %3785 = vmatprep.subr.mxu0 0.0
        %3786 = vmatpush1.msra.mxu0 0.0
        %3787 = vmatprep.subr.mxu0 0.0
        %3788 = vmatpush1.msra.mxu0 0.0
        %3789 = vmatprep.subr.mxu0 0.0
        %3790 = vmatpush1.msra.mxu0 0.0
        %3791 = vmatprep.subr.mxu0 0.0
        %3792 = vmatpush1.msra.mxu0 0.0
        %3793 = vmatprep.subr.mxu0 0.0
        %3794 = vmatpush1.msra.mxu0 0.0
        %3795 = vmatprep.subr.mxu0 0.0
        %3796 = vmatpush1.msra.mxu0 0.0
        %3797 = vmatprep.subr.mxu0 0.0
        %3798 = vmatpush1.msra.mxu0 0.0
        %3799 = vmatprep.subr.mxu0 0.0
        %3800 = vmatpush1.msra.mxu0 0.0
        %3801 = vmatprep.subr.mxu0 0.0
        %3802 = vmatpush1.msra.mxu0 0.0
        %3803 = vmatprep.subr.mxu0 0.0
        %3804 = vmatpush1.msra.mxu0 0.0
        %3805 = vmatprep.subr.mxu0 0.0
        %3806 = vmatpush1.msra.mxu0 0.0
        %3807 = vmatprep.subr.mxu0 0.0
        %3808 = vmatpush1.msra.mxu0 0.0
        %3809 = vmatprep.subr.mxu0 0.0
        %3810 = vmatpush1.msra.mxu0 0.0
        %3811 = vmatprep.subr.mxu0 0.0
        %3812 = vmatpush1.msra.mxu0 0.0
        %3813 = vmatprep.subr.mxu0 0.0
        %3814 = vmatpush1.msra.mxu0 0.0
        %3815 = vmatprep.subr.mxu0 0.0
        %3816 = vmatpush1.msra.mxu0 0.0
        %3817 = vmatprep.subr.mxu0 0.0
        %3818 = vmatpush1.msra.mxu0 0.0
        %3819 = vmatprep.subr.mxu0 0.0
        %3820 = vmatpush1.msra.mxu0 0.0
        %3821 = vmatprep.subr.mxu0 0.0
        %3822 = vmatpush1.msra.mxu0 0.0
        %3823 = vmatprep.subr.mxu0 0.0
        %3824 = vmatpush1.msra.mxu0 0.0
        %3825 = vmatprep.subr.mxu0 0.0
        %3826 = vmatpush1.msra.mxu0 0.0
        %3827 = vmatprep.subr.mxu0 0.0
        %3828 = vmatpush1.msra.mxu0 0.0
        %3829 = vmatprep.subr.mxu0 0.0
        %3830 = vmatpush1.msra.mxu0 0.0
        %3831 = vmatprep.subr.mxu0 0.0
        %3832 = vmatpush1.msra.mxu0 0.0
        %3833 = vmatprep.subr.mxu0 0.0
        %3834 = vmatpush1.msra.mxu0 0.0
        %3835 = vmatprep.subr.mxu0 0.0
        %3836 = vmatpush1.msra.mxu0 0.0
        %3837 = vmatprep.subr.mxu0 0.0
        %3838 = vmatpush1.msra.mxu0 0.0
        %3839 = vmatprep.mubr.f32.mxu0 0.0
        %3840 = vmatmul.mubr.f32.gmra.mrb[0].mxu0 %v3678
        %v3841 = vpop.f32.mrb[0].mxu0
        %v3842 = vadd.f32 0.0, %v3841
        %v3843 = vpop.f32.mrb[0].mxu0
        %v3844 = vadd.f32 0.0, %v3843
        %3845 = vdwg.mxu0
        %3846 = vmatprep.subr.mxu0 %v3642
        %3847 = vmatpush1.msra.mxu0 %v3641
        %3848 = vmatprep.subr.mxu0 %v3650
        %3849 = vmatpush1.msra.mxu0 %v3649
        %3850 = vmatprep.subr.mxu0 %v3658
        %3851 = vmatpush1.msra.mxu0 %v3657
        %3852 = vmatprep.subr.mxu0 %v3666
        %3853 = vmatpush1.msra.mxu0 %v3665
        %3854 = vmatprep.subr.mxu0 %v3696
        %3855 = vmatpush1.msra.mxu0 %v3693
        %3856 = vmatprep.subr.mxu0 0.0
        %3857 = vmatpush1.msra.mxu0 0.0
        %3858 = vmatprep.subr.mxu0 0.0
        %3859 = vmatpush1.msra.mxu0 0.0
        %3860 = vmatprep.subr.mxu0 0.0
        %3861 = vmatpush1.msra.mxu0 0.0
        %3862 = vmatprep.subr.mxu0 0.0
        %3863 = vmatpush1.msra.mxu0 0.0
        %3864 = vmatprep.subr.mxu0 0.0
        %3865 = vmatpush1.msra.mxu0 0.0
        %3866 = vmatprep.subr.mxu0 0.0
        %3867 = vmatpush1.msra.mxu0 0.0
        %3868 = vmatprep.subr.mxu0 0.0
        %3869 = vmatpush1.msra.mxu0 0.0
        %3870 = vmatprep.subr.mxu0 0.0
        %3871 = vmatpush1.msra.mxu0 0.0
        %3872 = vmatprep.subr.mxu0 0.0
        %3873 = vmatpush1.msra.mxu0 0.0
        %3874 = vmatprep.subr.mxu0 0.0
        %3875 = vmatpush1.msra.mxu0 0.0
        %3876 = vmatprep.subr.mxu0 0.0
        %3877 = vmatpush1.msra.mxu0 0.0
        %3878 = vmatprep.subr.mxu0 0.0
        %3879 = vmatpush1.msra.mxu0 0.0
        %3880 = vmatprep.subr.mxu0 0.0
        %3881 = vmatpush1.msra.mxu0 0.0
        %3882 = vmatprep.subr.mxu0 0.0
        %3883 = vmatpush1.msra.mxu0 0.0
        %3884 = vmatprep.subr.mxu0 0.0
        %3885 = vmatpush1.msra.mxu0 0.0
        %3886 = vmatprep.subr.mxu0 0.0
        %3887 = vmatpush1.msra.mxu0 0.0
        %3888 = vmatprep.subr.mxu0 0.0
        %3889 = vmatpush1.msra.mxu0 0.0
        %3890 = vmatprep.subr.mxu0 0.0
        %3891 = vmatpush1.msra.mxu0 0.0
        %3892 = vmatprep.subr.mxu0 0.0
        %3893 = vmatpush1.msra.mxu0 0.0
        %3894 = vmatprep.subr.mxu0 0.0
        %3895 = vmatpush1.msra.mxu0 0.0
        %3896 = vmatprep.subr.mxu0 0.0
        %3897 = vmatpush1.msra.mxu0 0.0
        %3898 = vmatprep.subr.mxu0 0.0
        %3899 = vmatpush1.msra.mxu0 0.0
        %3900 = vmatprep.subr.mxu0 0.0
        %3901 = vmatpush1.msra.mxu0 0.0
        %3902 = vmatprep.subr.mxu0 0.0
        %3903 = vmatpush1.msra.mxu0 0.0
        %3904 = vmatprep.subr.mxu0 0.0
        %3905 = vmatpush1.msra.mxu0 0.0
        %3906 = vmatprep.subr.mxu0 0.0
        %3907 = vmatpush1.msra.mxu0 0.0
        %3908 = vmatprep.subr.mxu0 0.0
        %3909 = vmatpush1.msra.mxu0 0.0
        %3910 = vmatprep.mubr.f32.mxu0 0.0
        %3911 = vmatmul.mubr.f32.gmra.mrb[0].mxu0 %v3678
        %v3912 = vpop.f32.mrb[0].mxu0
        %v3913 = vadd.f32 0.0, %v3912
        %v3914 = vpop.f32.mrb[0].mxu0
        %v3915 = vadd.f32 0.0, %v3914
        %3916 = vdwg.mxu0
        %3917 = vmatprep.subr.mxu0 %v3644
        %3918 = vmatpush1.msra.mxu0 %v3643
        %3919 = vmatprep.subr.mxu0 %v3652
        %3920 = vmatpush1.msra.mxu0 %v3651
        %3921 = vmatprep.subr.mxu0 %v3660
        %3922 = vmatpush1.msra.mxu0 %v3659
        %3923 = vmatprep.subr.mxu0 %v3668
        %3924 = vmatpush1.msra.mxu0 %v3667
        %3925 = vmatprep.subr.mxu0 %v3702
        %3926 = vmatpush1.msra.mxu0 %v3699
        %3927 = vmatprep.subr.mxu0 0.0
        %3928 = vmatpush1.msra.mxu0 0.0
        %3929 = vmatprep.subr.mxu0 0.0
        %3930 = vmatpush1.msra.mxu0 0.0
        %3931 = vmatprep.subr.mxu0 0.0
        %3932 = vmatpush1.msra.mxu0 0.0
        %3933 = vmatprep.subr.mxu0 0.0
        %3934 = vmatpush1.msra.mxu0 0.0
        %3935 = vmatprep.subr.mxu0 0.0
        %3936 = vmatpush1.msra.mxu0 0.0
        %3937 = vmatprep.subr.mxu0 0.0
        %3938 = vmatpush1.msra.mxu0 0.0
        %3939 = vmatprep.subr.mxu0 0.0
        %3940 = vmatpush1.msra.mxu0 0.0
        %3941 = vmatprep.subr.mxu0 0.0
        %3942 = vmatpush1.msra.mxu0 0.0
        %3943 = vmatprep.subr.mxu0 0.0
        %3944 = vmatpush1.msra.mxu0 0.0
        %3945 = vmatprep.subr.mxu0 0.0
        %3946 = vmatpush1.msra.mxu0 0.0
        %3947 = vmatprep.subr.mxu0 0.0
        %3948 = vmatpush1.msra.mxu0 0.0
        %3949 = vmatprep.subr.mxu0 0.0
        %3950 = vmatpush1.msra.mxu0 0.0
        %3951 = vmatprep.subr.mxu0 0.0
        %3952 = vmatpush1.msra.mxu0 0.0
        %3953 = vmatprep.subr.mxu0 0.0
        %3954 = vmatpush1.msra.mxu0 0.0
        %3955 = vmatprep.subr.mxu0 0.0
        %3956 = vmatpush1.msra.mxu0 0.0
        %3957 = vmatprep.subr.mxu0 0.0
        %3958 = vmatpush1.msra.mxu0 0.0
        %3959 = vmatprep.subr.mxu0 0.0
        %3960 = vmatpush1.msra.mxu0 0.0
        %3961 = vmatprep.subr.mxu0 0.0
        %3962 = vmatpush1.msra.mxu0 0.0
        %3963 = vmatprep.subr.mxu0 0.0
        %3964 = vmatpush1.msra.mxu0 0.0
        %3965 = vmatprep.subr.mxu0 0.0
        %3966 = vmatpush1.msra.mxu0 0.0
        %3967 = vmatprep.subr.mxu0 0.0
        %3968 = vmatpush1.msra.mxu0 0.0
        %3969 = vmatprep.subr.mxu0 0.0
        %3970 = vmatpush1.msra.mxu0 0.0
        %3971 = vmatprep.subr.mxu0 0.0
        %3972 = vmatpush1.msra.mxu0 0.0
        %3973 = vmatprep.subr.mxu0 0.0
        %3974 = vmatpush1.msra.mxu0 0.0
        %3975 = vmatprep.subr.mxu0 0.0
        %3976 = vmatpush1.msra.mxu0 0.0
        %3977 = vmatprep.subr.mxu0 0.0
        %3978 = vmatpush1.msra.mxu0 0.0
        %3979 = vmatprep.subr.mxu0 0.0
        %3980 = vmatpush1.msra.mxu0 0.0
        %3981 = vmatprep.mubr.f32.mxu0 0.0
        %3982 = vmatmul.mubr.f32.gmra.mrb[0].mxu0 %v3678
        %v3983 = vpop.f32.mrb[0].mxu0
        %v3984 = vadd.f32 0.0, %v3983
        %v3985 = vpop.f32.mrb[0].mxu0
        %v3986 = vadd.f32 0.0, %v3985
        %3987 = vdwg.mxu0
        %v3988 = vadd.f32 %v3250, %v3771
        %v3989 = vadd.f32 %v3250, %v3773
        %v3990 = vadd.f32 %v3250, %v3842
        %v3991 = vadd.f32 %v3250, %v3844
        %v3992 = vadd.f32 %v3250, %v3913
        %v3993 = vadd.f32 %v3250, %v3915
        %v3994 = vadd.f32 %v3250, %v3984
        %v3995 = vadd.f32 %v3250, %v3986
        %3996 = vrot.lane.b32.xlu0 %v3238, 11
        %v3997 = vpop.permute.xlu0 %3996
        %3998 = vrot.lane.b32.xlu0 %v3239, 11
        %v3999 = vpop.permute.xlu0 %3998
        %4000 = vrot.lane.b32.xlu0 %v3240, 11
        %v4001 = vpop.permute.xlu0 %4000
        %4002 = vrot.lane.b32.xlu0 %v3241, 11
        %v4003 = vpop.permute.xlu0 %4002
        %4004 = vrot.lane.b32.xlu0 %v3242, 11
        %v4005 = vpop.permute.xlu0 %4004
        %4006 = vrot.lane.b32.xlu0 %v3243, 11
        %v4007 = vpop.permute.xlu0 %4006
        %4008 = vrot.lane.b32.xlu0 %v3244, 11
        %v4009 = vpop.permute.xlu0 %4008
        %4010 = vrot.lane.b32.xlu0 %v3245, 11
        %v4011 = vpop.permute.xlu0 %4010
        %v4012 = vsel %vm1093, %v4009, %v4011
        %v4013 = vsel %vm1093, %v4007, %v4009
        %v4014 = vsel %vm1093, %v4005, %v4007
        %v4015 = vsel %vm1093, %v4003, %v4005
        %v4016 = vsel %vm1093, %v4001, %v4003
        %v4017 = vsel %vm1093, %v3999, %v4001
        %v4018 = vsel %vm1093, %v3997, %v3999
        %v4019 = vsel %vm1093, %v4011, %v3997
        %4020 = vst [vmem:[#allocation2] sm:$0xf] %v4019
        %4021 = vst [vmem:[#allocation2 + $0x8] sm:$0xf] %v4018
        %4022 = vst [vmem:[#allocation2 + $0x10] sm:$0xf] %v4017
        %4023 = vst [vmem:[#allocation2 + $0x18] sm:$0xf] %v4016
        %4024 = vst [vmem:[#allocation2 + $0x20] sm:$0xf] %v4015
        %4025 = vst [vmem:[#allocation2 + $0x28] sm:$0xf] %v4014
        %4026 = vst [vmem:[#allocation2 + $0x30] sm:$0xf] %v4013
        %4027 = vst [vmem:[#allocation2 + $0x38] sm:$0xf] %v4012
        %4028 = vrot.lane.b32.xlu0 %v3238, 10
        %v4029 = vpop.permute.xlu0 %4028
        %4030 = vrot.lane.b32.xlu0 %v3239, 10
        %v4031 = vpop.permute.xlu0 %4030
        %4032 = vrot.lane.b32.xlu0 %v3240, 10
        %v4033 = vpop.permute.xlu0 %4032
        %4034 = vrot.lane.b32.xlu0 %v3241, 10
        %v4035 = vpop.permute.xlu0 %4034
        %4036 = vrot.lane.b32.xlu0 %v3242, 10
        %v4037 = vpop.permute.xlu0 %4036
        %4038 = vrot.lane.b32.xlu0 %v3243, 10
        %v4039 = vpop.permute.xlu0 %4038
        %4040 = vrot.lane.b32.xlu0 %v3244, 10
        %v4041 = vpop.permute.xlu0 %4040
        %4042 = vrot.lane.b32.xlu0 %v3245, 10
        %v4043 = vpop.permute.xlu0 %4042
        %v4044 = vsel %vm1126, %v4041, %v4043
        %v4045 = vsel %vm1126, %v4039, %v4041
        %v4046 = vsel %vm1126, %v4037, %v4039
        %v4047 = vsel %vm1126, %v4035, %v4037
        %v4048 = vsel %vm1126, %v4033, %v4035
        %v4049 = vsel %vm1126, %v4031, %v4033
        %v4050 = vsel %vm1126, %v4029, %v4031
        %v4051 = vsel %vm1126, %v4043, %v4029
        %v4060 = vrot.slane %v4051, 4
        %v4061 = vrot.slane %v4050, 4
        %v4062 = vrot.slane %v4049, 4
        %v4063 = vrot.slane %v4048, 4
        %v4064 = vrot.slane %v4047, 4
        %v4065 = vrot.slane %v4046, 4
        %v4066 = vrot.slane %v4045, 4
        %v4067 = vrot.slane %v4044, 4
        %4076 = vst [vmem:[#allocation2] sm:$0xf0] %v4060
        %4077 = vst [vmem:[#allocation2 + $0x8] sm:$0xf0] %v4061
        %4078 = vst [vmem:[#allocation2 + $0x10] sm:$0xf0] %v4062
        %4079 = vst [vmem:[#allocation2 + $0x18] sm:$0xf0] %v4063
        %4080 = vst [vmem:[#allocation2 + $0x20] sm:$0xf0] %v4064
        %4081 = vst [vmem:[#allocation2 + $0x28] sm:$0xf0] %v4065
        %4082 = vst [vmem:[#allocation2 + $0x30] sm:$0xf0] %v4066
        %4083 = vst [vmem:[#allocation2 + $0x38] sm:$0xf0] %v4067
        %4084 = vrot.lane.b32.xlu0 %v3238, 9
        %v4085 = vpop.permute.xlu0 %4084
        %4086 = vrot.lane.b32.xlu0 %v3239, 9
        %v4087 = vpop.permute.xlu0 %4086
        %4088 = vrot.lane.b32.xlu0 %v3240, 9
        %v4089 = vpop.permute.xlu0 %4088
        %4090 = vrot.lane.b32.xlu0 %v3241, 9
        %v4091 = vpop.permute.xlu0 %4090
        %4092 = vrot.lane.b32.xlu0 %v3242, 9
        %v4093 = vpop.permute.xlu0 %4092
        %4094 = vrot.lane.b32.xlu0 %v3243, 9
        %v4095 = vpop.permute.xlu0 %4094
        %4096 = vrot.lane.b32.xlu0 %v3244, 9
        %v4097 = vpop.permute.xlu0 %4096
        %4098 = vrot.lane.b32.xlu0 %v3245, 9
        %v4099 = vpop.permute.xlu0 %4098
        %v4100 = vsel %vm1183, %v4097, %v4099
        %v4101 = vsel %vm1183, %v4095, %v4097
        %v4102 = vsel %vm1183, %v4093, %v4095
        %v4103 = vsel %vm1183, %v4091, %v4093
        %v4104 = vsel %vm1183, %v4089, %v4091
        %v4105 = vsel %vm1183, %v4087, %v4089
        %v4106 = vsel %vm1183, %v4085, %v4087
        %v4107 = vsel %vm1183, %v4099, %v4085
        %4108 = vst [vmem:[#allocation2 + $0x40] sm:$0xf] %v4107
        %4109 = vst [vmem:[#allocation2 + $0x48] sm:$0xf] %v4106
        %4110 = vst [vmem:[#allocation2 + $0x50] sm:$0xf] %v4105
        %4111 = vst [vmem:[#allocation2 + $0x58] sm:$0xf] %v4104
        %4112 = vst [vmem:[#allocation2 + $0x60] sm:$0xf] %v4103
        %4113 = vst [vmem:[#allocation2 + $0x68] sm:$0xf] %v4102
        %4114 = vst [vmem:[#allocation2 + $0x70] sm:$0xf] %v4101
        %4115 = vst [vmem:[#allocation2 + $0x78] sm:$0xf] %v4100
        %4116 = vrot.lane.b32.xlu0 %v3238, 1
        %v4117 = vpop.permute.xlu0 %4116
        %4118 = vrot.lane.b32.xlu0 %v3239, 1
        %v4119 = vpop.permute.xlu0 %4118
        %4120 = vrot.lane.b32.xlu0 %v3240, 1
        %v4121 = vpop.permute.xlu0 %4120
        %4122 = vrot.lane.b32.xlu0 %v3241, 1
        %v4123 = vpop.permute.xlu0 %4122
        %4124 = vrot.lane.b32.xlu0 %v3242, 1
        %v4125 = vpop.permute.xlu0 %4124
        %4126 = vrot.lane.b32.xlu0 %v3243, 1
        %v4127 = vpop.permute.xlu0 %4126
        %4128 = vrot.lane.b32.xlu0 %v3244, 1
        %v4129 = vpop.permute.xlu0 %4128
        %4130 = vrot.lane.b32.xlu0 %v3245, 1
        %v4131 = vpop.permute.xlu0 %4130
        %v4132 = vsel %vm1216, %v4129, %v4131
        %v4133 = vsel %vm1216, %v4127, %v4129
        %v4134 = vsel %vm1216, %v4125, %v4127
        %v4135 = vsel %vm1216, %v4123, %v4125
        %v4136 = vsel %vm1216, %v4121, %v4123
        %v4137 = vsel %vm1216, %v4119, %v4121
        %v4138 = vsel %vm1216, %v4117, %v4119
        %v4139 = vsel %vm1216, %v4131, %v4117
        %v4148 = vrot.slane %v4139, 4
        %v4149 = vrot.slane %v4138, 4
        %v4150 = vrot.slane %v4137, 4
        %v4151 = vrot.slane %v4136, 4
        %v4152 = vrot.slane %v4135, 4
        %v4153 = vrot.slane %v4134, 4
        %v4154 = vrot.slane %v4133, 4
        %v4155 = vrot.slane %v4132, 4
        %4164 = vst [vmem:[#allocation2 + $0x40] sm:$0xf0] %v4148
        %4165 = vst [vmem:[#allocation2 + $0x48] sm:$0xf0] %v4149
        %4166 = vst [vmem:[#allocation2 + $0x50] sm:$0xf0] %v4150
        %4167 = vst [vmem:[#allocation2 + $0x58] sm:$0xf0] %v4151
        %4168 = vst [vmem:[#allocation2 + $0x60] sm:$0xf0] %v4152
        %4169 = vst [vmem:[#allocation2 + $0x68] sm:$0xf0] %v4153
        %4170 = vst [vmem:[#allocation2 + $0x70] sm:$0xf0] %v4154
        %4171 = vst [vmem:[#allocation2 + $0x78] sm:$0xf0] %v4155
        %4172 = vst [vmem:[#allocation2 + $0x80] sm:$0xf] %v3238
        %4173 = vst [vmem:[#allocation2 + $0x88] sm:$0xf] %v3239
        %4174 = vst [vmem:[#allocation2 + $0x90] sm:$0xf] %v3240
        %4175 = vst [vmem:[#allocation2 + $0x98] sm:$0xf] %v3241
        %4176 = vst [vmem:[#allocation2 + $0xa0] sm:$0xf] %v3242
        %4177 = vst [vmem:[#allocation2 + $0xa8] sm:$0xf] %v3243
        %4178 = vst [vmem:[#allocation2 + $0xb0] sm:$0xf] %v3244
        %4179 = vst [vmem:[#allocation2 + $0xb8] sm:$0xf] %v3245
        %4180 = vrot.lane.b32.xlu0 %v3238, 127
        %v4181 = vpop.permute.xlu0 %4180
        %4182 = vrot.lane.b32.xlu0 %v3239, 127
        %v4183 = vpop.permute.xlu0 %4182
        %4184 = vrot.lane.b32.xlu0 %v3240, 127
        %v4185 = vpop.permute.xlu0 %4184
        %4186 = vrot.lane.b32.xlu0 %v3241, 127
        %v4187 = vpop.permute.xlu0 %4186
        %4188 = vrot.lane.b32.xlu0 %v3242, 127
        %v4189 = vpop.permute.xlu0 %4188
        %4190 = vrot.lane.b32.xlu0 %v3243, 127
        %v4191 = vpop.permute.xlu0 %4190
        %4192 = vrot.lane.b32.xlu0 %v3244, 127
        %v4193 = vpop.permute.xlu0 %4192
        %4194 = vrot.lane.b32.xlu0 %v3245, 127
        %v4195 = vpop.permute.xlu0 %4194
        %v4196 = vsel %vm1281, %v4193, %v4195
        %v4197 = vsel %vm1281, %v4191, %v4193
        %v4198 = vsel %vm1281, %v4189, %v4191
        %v4199 = vsel %vm1281, %v4187, %v4189
        %v4200 = vsel %vm1281, %v4185, %v4187
        %v4201 = vsel %vm1281, %v4183, %v4185
        %v4202 = vsel %vm1281, %v4181, %v4183
        %v4203 = vsel %vm1281, %v4195, %v4181
        %v4212 = vrot.slane %v4202, 4
        %v4213 = vrot.slane %v4201, 4
        %v4214 = vrot.slane %v4200, 4
        %v4215 = vrot.slane %v4199, 4
        %v4216 = vrot.slane %v4198, 4
        %v4217 = vrot.slane %v4197, 4
        %v4218 = vrot.slane %v4196, 4
        %v4219 = vrot.slane %v4203, 4
        %4228 = vst [vmem:[#allocation2 + $0x80] sm:$0xf0] %v4212
        %4229 = vst [vmem:[#allocation2 + $0x88] sm:$0xf0] %v4213
        %4230 = vst [vmem:[#allocation2 + $0x90] sm:$0xf0] %v4214
        %4231 = vst [vmem:[#allocation2 + $0x98] sm:$0xf0] %v4215
        %4232 = vst [vmem:[#allocation2 + $0xa0] sm:$0xf0] %v4216
        %4233 = vst [vmem:[#allocation2 + $0xa8] sm:$0xf0] %v4217
        %4234 = vst [vmem:[#allocation2 + $0xb0] sm:$0xf0] %v4218
        %4235 = vst [vmem:[#allocation2 + $0xb8] sm:$0xf0] %v4219
        %4236 = vrot.lane.b32.xlu0 %v3238, 119
        %v4237 = vpop.permute.xlu0 %4236
        %4238 = vrot.lane.b32.xlu0 %v3239, 119
        %v4239 = vpop.permute.xlu0 %4238
        %4240 = vrot.lane.b32.xlu0 %v3240, 119
        %v4241 = vpop.permute.xlu0 %4240
        %4242 = vrot.lane.b32.xlu0 %v3241, 119
        %v4243 = vpop.permute.xlu0 %4242
        %4244 = vrot.lane.b32.xlu0 %v3242, 119
        %v4245 = vpop.permute.xlu0 %4244
        %4246 = vrot.lane.b32.xlu0 %v3243, 119
        %v4247 = vpop.permute.xlu0 %4246
        %4248 = vrot.lane.b32.xlu0 %v3244, 119
        %v4249 = vpop.permute.xlu0 %4248
        %4250 = vrot.lane.b32.xlu0 %v3245, 119
        %v4251 = vpop.permute.xlu0 %4250
        %v4252 = vsel %vm1338, %v4249, %v4251
        %v4253 = vsel %vm1338, %v4247, %v4249
        %v4254 = vsel %vm1338, %v4245, %v4247
        %v4255 = vsel %vm1338, %v4243, %v4245
        %v4256 = vsel %vm1338, %v4241, %v4243
        %v4257 = vsel %vm1338, %v4239, %v4241
        %v4258 = vsel %vm1338, %v4237, %v4239
        %v4259 = vsel %vm1338, %v4251, %v4237
        %4260 = vst [vmem:[#allocation2 + $0xc0] sm:$0xf] %v4258
        %4261 = vst [vmem:[#allocation2 + $0xc8] sm:$0xf] %v4257
        %4262 = vst [vmem:[#allocation2 + $0xd0] sm:$0xf] %v4256
        %4263 = vst [vmem:[#allocation2 + $0xd8] sm:$0xf] %v4255
        %4264 = vst [vmem:[#allocation2 + $0xe0] sm:$0xf] %v4254
        %4265 = vst [vmem:[#allocation2 + $0xe8] sm:$0xf] %v4253
        %4266 = vst [vmem:[#allocation2 + $0xf0] sm:$0xf] %v4252
        %4267 = vst [vmem:[#allocation2 + $0xf8] sm:$0xf] %v4259
        %4268 = vrot.lane.b32.xlu0 %v3238, 118
        %v4269 = vpop.permute.xlu0 %4268
        %4270 = vrot.lane.b32.xlu0 %v3239, 118
        %v4271 = vpop.permute.xlu0 %4270
        %4272 = vrot.lane.b32.xlu0 %v3240, 118
        %v4273 = vpop.permute.xlu0 %4272
        %4274 = vrot.lane.b32.xlu0 %v3241, 118
        %v4275 = vpop.permute.xlu0 %4274
        %4276 = vrot.lane.b32.xlu0 %v3242, 118
        %v4277 = vpop.permute.xlu0 %4276
        %4278 = vrot.lane.b32.xlu0 %v3243, 118
        %v4279 = vpop.permute.xlu0 %4278
        %4280 = vrot.lane.b32.xlu0 %v3244, 118
        %v4281 = vpop.permute.xlu0 %4280
        %4282 = vrot.lane.b32.xlu0 %v3245, 118
        %v4283 = vpop.permute.xlu0 %4282
        %v4284 = vsel %vm1371, %v4281, %v4283
        %v4285 = vsel %vm1371, %v4279, %v4281
        %v4286 = vsel %vm1371, %v4277, %v4279
        %v4287 = vsel %vm1371, %v4275, %v4277
        %v4288 = vsel %vm1371, %v4273, %v4275
        %v4289 = vsel %vm1371, %v4271, %v4273
        %v4290 = vsel %vm1371, %v4269, %v4271
        %v4291 = vsel %vm1371, %v4283, %v4269
        %v4300 = vrot.slane %v4290, 4
        %v4301 = vrot.slane %v4289, 4
        %v4302 = vrot.slane %v4288, 4
        %v4303 = vrot.slane %v4287, 4
        %v4304 = vrot.slane %v4286, 4
        %v4305 = vrot.slane %v4285, 4
        %v4306 = vrot.slane %v4284, 4
        %v4307 = vrot.slane %v4291, 4
        %4316 = vst [vmem:[#allocation2 + $0xc0] sm:$0xf0] %v4300
        %4317 = vst [vmem:[#allocation2 + $0xc8] sm:$0xf0] %v4301
        %4318 = vst [vmem:[#allocation2 + $0xd0] sm:$0xf0] %v4302
        %4319 = vst [vmem:[#allocation2 + $0xd8] sm:$0xf0] %v4303
        %4320 = vst [vmem:[#allocation2 + $0xe0] sm:$0xf0] %v4304
        %4321 = vst [vmem:[#allocation2 + $0xe8] sm:$0xf0] %v4305
        %4322 = vst [vmem:[#allocation2 + $0xf0] sm:$0xf0] %v4306
        %4323 = vst [vmem:[#allocation2 + $0xf8] sm:$0xf0] %v4307
        %4324 = vrot.lane.b32.xlu0 %v3238, 117
        %v4325 = vpop.permute.xlu0 %4324
        %4326 = vrot.lane.b32.xlu0 %v3239, 117
        %v4327 = vpop.permute.xlu0 %4326
        %4328 = vrot.lane.b32.xlu0 %v3240, 117
        %v4329 = vpop.permute.xlu0 %4328
        %4330 = vrot.lane.b32.xlu0 %v3241, 117
        %v4331 = vpop.permute.xlu0 %4330
        %4332 = vrot.lane.b32.xlu0 %v3242, 117
        %v4333 = vpop.permute.xlu0 %4332
        %4334 = vrot.lane.b32.xlu0 %v3243, 117
        %v4335 = vpop.permute.xlu0 %4334
        %4336 = vrot.lane.b32.xlu0 %v3244, 117
        %v4337 = vpop.permute.xlu0 %4336
        %4338 = vrot.lane.b32.xlu0 %v3245, 117
        %v4339 = vpop.permute.xlu0 %4338
        %v4340 = vsel %vm1428, %v4337, %v4339
        %v4341 = vsel %vm1428, %v4335, %v4337
        %v4342 = vsel %vm1428, %v4333, %v4335
        %v4343 = vsel %vm1428, %v4331, %v4333
        %v4344 = vsel %vm1428, %v4329, %v4331
        %v4345 = vsel %vm1428, %v4327, %v4329
        %v4346 = vsel %vm1428, %v4325, %v4327
        %v4347 = vsel %vm1428, %v4339, %v4325
        %4348 = vst [vmem:[#allocation2 + $0x100] sm:$0xf] %v4346
        %4349 = vst [vmem:[#allocation2 + $0x108] sm:$0xf] %v4345
        %4350 = vst [vmem:[#allocation2 + $0x110] sm:$0xf] %v4344
        %4351 = vst [vmem:[#allocation2 + $0x118] sm:$0xf] %v4343
        %4352 = vst [vmem:[#allocation2 + $0x120] sm:$0xf] %v4342
        %4353 = vst [vmem:[#allocation2 + $0x128] sm:$0xf] %v4341
        %4354 = vst [vmem:[#allocation2 + $0x130] sm:$0xf] %v4340
        %4355 = vst [vmem:[#allocation2 + $0x138] sm:$0xf] %v4347
        %s4356 = scalar_lea.vmem [#allocation6], 4
        %v4357 = vld [vmem:[%s4356] sm:$0xf]
        %v4358 = vld [vmem:[#allocation2] sm:$0xff]
        %v4359 = vld [vmem:[#allocation2 + $0x8] sm:$0xff]
        %v4360 = vld [vmem:[#allocation2 + $0x10] sm:$0xff]
        %v4361 = vld [vmem:[#allocation2 + $0x18] sm:$0xff]
        %v4362 = vld [vmem:[#allocation2 + $0x20] sm:$0xff]
        %v4363 = vld [vmem:[#allocation2 + $0x28] sm:$0xff]
        %v4364 = vld [vmem:[#allocation2 + $0x30] sm:$0xff]
        %v4365 = vld [vmem:[#allocation2 + $0x38] sm:$0xff]
        %v4366 = vld [vmem:[#allocation2 + $0x40] sm:$0xff]
        %v4367 = vld [vmem:[#allocation2 + $0x48] sm:$0xff]
        %v4368 = vld [vmem:[#allocation2 + $0x50] sm:$0xff]
        %v4369 = vld [vmem:[#allocation2 + $0x58] sm:$0xff]
        %v4370 = vld [vmem:[#allocation2 + $0x60] sm:$0xff]
        %v4371 = vld [vmem:[#allocation2 + $0x68] sm:$0xff]
        %v4372 = vld [vmem:[#allocation2 + $0x70] sm:$0xff]
        %v4373 = vld [vmem:[#allocation2 + $0x78] sm:$0xff]
        %v4374 = vld [vmem:[#allocation2 + $0x80] sm:$0xff]
        %v4375 = vld [vmem:[#allocation2 + $0x88] sm:$0xff]
        %v4376 = vld [vmem:[#allocation2 + $0x90] sm:$0xff]
        %v4377 = vld [vmem:[#allocation2 + $0x98] sm:$0xff]
        %v4378 = vld [vmem:[#allocation2 + $0xa0] sm:$0xff]
        %v4379 = vld [vmem:[#allocation2 + $0xa8] sm:$0xff]
        %v4380 = vld [vmem:[#allocation2 + $0xb0] sm:$0xff]
        %v4381 = vld [vmem:[#allocation2 + $0xb8] sm:$0xff]
        %v4382 = vld [vmem:[#allocation2 + $0xc0] sm:$0xff]
        %v4383 = vld [vmem:[#allocation2 + $0xc8] sm:$0xff]
        %v4384 = vld [vmem:[#allocation2 + $0xd0] sm:$0xff]
        %v4385 = vld [vmem:[#allocation2 + $0xd8] sm:$0xff]
        %v4386 = vld [vmem:[#allocation2 + $0xe0] sm:$0xff]
        %v4387 = vld [vmem:[#allocation2 + $0xe8] sm:$0xff]
        %v4388 = vld [vmem:[#allocation2 + $0xf0] sm:$0xff]
        %v4389 = vld [vmem:[#allocation2 + $0xf8] sm:$0xff]
        %v4390 = vld [vmem:[#allocation2 + $0x100] sm:$0xf]
        %v4391 = vld [vmem:[#allocation2 + $0x108] sm:$0xf]
        %v4392 = vld [vmem:[#allocation2 + $0x110] sm:$0xf]
        %v4393 = vld [vmem:[#allocation2 + $0x118] sm:$0xf]
        %v4394 = vld [vmem:[#allocation2 + $0x120] sm:$0xf]
        %v4395 = vld [vmem:[#allocation2 + $0x128] sm:$0xf]
        %v4396 = vld [vmem:[#allocation2 + $0x130] sm:$0xf]
        %v4397 = vld [vmem:[#allocation2 + $0x138] sm:$0xf]
        %v4399 = vsel %vm756, %v4357, 0
        %v4402 = vsel %vm760, %v4390, 0
        %v4405 = vsel %vm760, %v4391, 0
        %v4408 = vsel %vm760, %v4392, 0
        %v4411 = vsel %vm760, %v4393, 0
        %v4414 = vsel %vm760, %v4394, 0
        %v4417 = vsel %vm760, %v4395, 0
        %v4420 = vsel %vm760, %v4396, 0
        %v4423 = vsel %vm760, %v4397, 0
        %4425 = vmatprep.subr.mxu0 %v4359
        %4426 = vmatpush1.msra.mxu0 %v4358
        %4427 = vmatprep.subr.mxu0 %v4367
        %4428 = vmatpush1.msra.mxu0 %v4366
        %4429 = vmatprep.subr.mxu0 %v4375
        %4430 = vmatpush1.msra.mxu0 %v4374
        %4431 = vmatprep.subr.mxu0 %v4383
        %4432 = vmatpush1.msra.mxu0 %v4382
        %4433 = vmatprep.subr.mxu0 %v4405
        %4434 = vmatpush1.msra.mxu0 %v4402
        %4435 = vmatprep.subr.mxu0 0.0
        %4436 = vmatpush1.msra.mxu0 0.0
        %4437 = vmatprep.subr.mxu0 0.0
        %4438 = vmatpush1.msra.mxu0 0.0
        %4439 = vmatprep.subr.mxu0 0.0
        %4440 = vmatpush1.msra.mxu0 0.0
        %4441 = vmatprep.subr.mxu0 0.0
        %4442 = vmatpush1.msra.mxu0 0.0
        %4443 = vmatprep.subr.mxu0 0.0
        %4444 = vmatpush1.msra.mxu0 0.0
        %4445 = vmatprep.subr.mxu0 0.0
        %4446 = vmatpush1.msra.mxu0 0.0
        %4447 = vmatprep.subr.mxu0 0.0
        %4448 = vmatpush1.msra.mxu0 0.0
        %4449 = vmatprep.subr.mxu0 0.0
        %4450 = vmatpush1.msra.mxu0 0.0
        %4451 = vmatprep.subr.mxu0 0.0
        %4452 = vmatpush1.msra.mxu0 0.0
        %4453 = vmatprep.subr.mxu0 0.0
        %4454 = vmatpush1.msra.mxu0 0.0
        %4455 = vmatprep.subr.mxu0 0.0
        %4456 = vmatpush1.msra.mxu0 0.0
        %4457 = vmatprep.subr.mxu0 0.0
        %4458 = vmatpush1.msra.mxu0 0.0
        %4459 = vmatprep.subr.mxu0 0.0
        %4460 = vmatpush1.msra.mxu0 0.0
        %4461 = vmatprep.subr.mxu0 0.0
        %4462 = vmatpush1.msra.mxu0 0.0
        %4463 = vmatprep.subr.mxu0 0.0
        %4464 = vmatpush1.msra.mxu0 0.0
        %4465 = vmatprep.subr.mxu0 0.0
        %4466 = vmatpush1.msra.mxu0 0.0
        %4467 = vmatprep.subr.mxu0 0.0
        %4468 = vmatpush1.msra.mxu0 0.0
        %4469 = vmatprep.subr.mxu0 0.0
        %4470 = vmatpush1.msra.mxu0 0.0
        %4471 = vmatprep.subr.mxu0 0.0
        %4472 = vmatpush1.msra.mxu0 0.0
        %4473 = vmatprep.subr.mxu0 0.0
        %4474 = vmatpush1.msra.mxu0 0.0
        %4475 = vmatprep.subr.mxu0 0.0
        %4476 = vmatpush1.msra.mxu0 0.0
        %4477 = vmatprep.subr.mxu0 0.0
        %4478 = vmatpush1.msra.mxu0 0.0
        %4479 = vmatprep.subr.mxu0 0.0
        %4480 = vmatpush1.msra.mxu0 0.0
        %4481 = vmatprep.subr.mxu0 0.0
        %4482 = vmatpush1.msra.mxu0 0.0
        %4483 = vmatprep.subr.mxu0 0.0
        %4484 = vmatpush1.msra.mxu0 0.0
        %4485 = vmatprep.subr.mxu0 0.0
        %4486 = vmatpush1.msra.mxu0 0.0
        %4487 = vmatprep.subr.mxu0 0.0
        %4488 = vmatpush1.msra.mxu0 0.0
        %4489 = vmatprep.mubr.f32.mxu0 0.0
        %4490 = vmatmul.mubr.f32.gmra.mrb[0].mxu0 %v4399
        %v4491 = vpop.f32.mrb[0].mxu0
        %v4492 = vadd.f32 0.0, %v4491
        %v4493 = vpop.f32.mrb[0].mxu0
        %v4494 = vadd.f32 0.0, %v4493
        %4495 = vdwg.mxu0
        %4496 = vmatprep.subr.mxu0 %v4361
        %4497 = vmatpush1.msra.mxu0 %v4360
        %4498 = vmatprep.subr.mxu0 %v4369
        %4499 = vmatpush1.msra.mxu0 %v4368
        %4500 = vmatprep.subr.mxu0 %v4377
        %4501 = vmatpush1.msra.mxu0 %v4376
        %4502 = vmatprep.subr.mxu0 %v4385
        %4503 = vmatpush1.msra.mxu0 %v4384
        %4504 = vmatprep.subr.mxu0 %v4411
        %4505 = vmatpush1.msra.mxu0 %v4408
        %4506 = vmatprep.subr.mxu0 0.0
        %4507 = vmatpush1.msra.mxu0 0.0
        %4508 = vmatprep.subr.mxu0 0.0
        %4509 = vmatpush1.msra.mxu0 0.0
        %4510 = vmatprep.subr.mxu0 0.0
        %4511 = vmatpush1.msra.mxu0 0.0
        %4512 = vmatprep.subr.mxu0 0.0
        %4513 = vmatpush1.msra.mxu0 0.0
        %4514 = vmatprep.subr.mxu0 0.0
        %4515 = vmatpush1.msra.mxu0 0.0
        %4516 = vmatprep.subr.mxu0 0.0
        %4517 = vmatpush1.msra.mxu0 0.0
        %4518 = vmatprep.subr.mxu0 0.0
        %4519 = vmatpush1.msra.mxu0 0.0
        %4520 = vmatprep.subr.mxu0 0.0
        %4521 = vmatpush1.msra.mxu0 0.0
        %4522 = vmatprep.subr.mxu0 0.0
        %4523 = vmatpush1.msra.mxu0 0.0
        %4524 = vmatprep.subr.mxu0 0.0
        %4525 = vmatpush1.msra.mxu0 0.0
        %4526 = vmatprep.subr.mxu0 0.0
        %4527 = vmatpush1.msra.mxu0 0.0
        %4528 = vmatprep.subr.mxu0 0.0
        %4529 = vmatpush1.msra.mxu0 0.0
        %4530 = vmatprep.subr.mxu0 0.0
        %4531 = vmatpush1.msra.mxu0 0.0
        %4532 = vmatprep.subr.mxu0 0.0
        %4533 = vmatpush1.msra.mxu0 0.0
        %4534 = vmatprep.subr.mxu0 0.0
        %4535 = vmatpush1.msra.mxu0 0.0
        %4536 = vmatprep.subr.mxu0 0.0
        %4537 = vmatpush1.msra.mxu0 0.0
        %4538 = vmatprep.subr.mxu0 0.0
        %4539 = vmatpush1.msra.mxu0 0.0
        %4540 = vmatprep.subr.mxu0 0.0
        %4541 = vmatpush1.msra.mxu0 0.0
        %4542 = vmatprep.subr.mxu0 0.0
        %4543 = vmatpush1.msra.mxu0 0.0
        %4544 = vmatprep.subr.mxu0 0.0
        %4545 = vmatpush1.msra.mxu0 0.0
        %4546 = vmatprep.subr.mxu0 0.0
        %4547 = vmatpush1.msra.mxu0 0.0
        %4548 = vmatprep.subr.mxu0 0.0
        %4549 = vmatpush1.msra.mxu0 0.0
        %4550 = vmatprep.subr.mxu0 0.0
        %4551 = vmatpush1.msra.mxu0 0.0
        %4552 = vmatprep.subr.mxu0 0.0
        %4553 = vmatpush1.msra.mxu0 0.0
        %4554 = vmatprep.subr.mxu0 0.0
        %4555 = vmatpush1.msra.mxu0 0.0
        %4556 = vmatprep.subr.mxu0 0.0
        %4557 = vmatpush1.msra.mxu0 0.0
        %4558 = vmatprep.subr.mxu0 0.0
        %4559 = vmatpush1.msra.mxu0 0.0
        %4560 = vmatprep.mubr.f32.mxu0 0.0
        %4561 = vmatmul.mubr.f32.gmra.mrb[0].mxu0 %v4399
        %v4562 = vpop.f32.mrb[0].mxu0
        %v4563 = vadd.f32 0.0, %v4562
        %v4564 = vpop.f32.mrb[0].mxu0
        %v4565 = vadd.f32 0.0, %v4564
        %4566 = vdwg.mxu0
        %4567 = vmatprep.subr.mxu0 %v4363
        %4568 = vmatpush1.msra.mxu0 %v4362
        %4569 = vmatprep.subr.mxu0 %v4371
        %4570 = vmatpush1.msra.mxu0 %v4370
        %4571 = vmatprep.subr.mxu0 %v4379
        %4572 = vmatpush1.msra.mxu0 %v4378
        %4573 = vmatprep.subr.mxu0 %v4387
        %4574 = vmatpush1.msra.mxu0 %v4386
        %4575 = vmatprep.subr.mxu0 %v4417
        %4576 = vmatpush1.msra.mxu0 %v4414
        %4577 = vmatprep.subr.mxu0 0.0
        %4578 = vmatpush1.msra.mxu0 0.0
        %4579 = vmatprep.subr.mxu0 0.0
        %4580 = vmatpush1.msra.mxu0 0.0
        %4581 = vmatprep.subr.mxu0 0.0
        %4582 = vmatpush1.msra.mxu0 0.0
        %4583 = vmatprep.subr.mxu0 0.0
        %4584 = vmatpush1.msra.mxu0 0.0
        %4585 = vmatprep.subr.mxu0 0.0
        %4586 = vmatpush1.msra.mxu0 0.0
        %4587 = vmatprep.subr.mxu0 0.0
        %4588 = vmatpush1.msra.mxu0 0.0
        %4589 = vmatprep.subr.mxu0 0.0
        %4590 = vmatpush1.msra.mxu0 0.0
        %4591 = vmatprep.subr.mxu0 0.0
        %4592 = vmatpush1.msra.mxu0 0.0
        %4593 = vmatprep.subr.mxu0 0.0
        %4594 = vmatpush1.msra.mxu0 0.0
        %4595 = vmatprep.subr.mxu0 0.0
        %4596 = vmatpush1.msra.mxu0 0.0
        %4597 = vmatprep.subr.mxu0 0.0
        %4598 = vmatpush1.msra.mxu0 0.0
        %4599 = vmatprep.subr.mxu0 0.0
        %4600 = vmatpush1.msra.mxu0 0.0
        %4601 = vmatprep.subr.mxu0 0.0
        %4602 = vmatpush1.msra.mxu0 0.0
        %4603 = vmatprep.subr.mxu0 0.0
        %4604 = vmatpush1.msra.mxu0 0.0
        %4605 = vmatprep.subr.mxu0 0.0
        %4606 = vmatpush1.msra.mxu0 0.0
        %4607 = vmatprep.subr.mxu0 0.0
        %4608 = vmatpush1.msra.mxu0 0.0
        %4609 = vmatprep.subr.mxu0 0.0
        %4610 = vmatpush1.msra.mxu0 0.0
        %4611 = vmatprep.subr.mxu0 0.0
        %4612 = vmatpush1.msra.mxu0 0.0
        %4613 = vmatprep.subr.mxu0 0.0
        %4614 = vmatpush1.msra.mxu0 0.0
        %4615 = vmatprep.subr.mxu0 0.0
        %4616 = vmatpush1.msra.mxu0 0.0
        %4617 = vmatprep.subr.mxu0 0.0
        %4618 = vmatpush1.msra.mxu0 0.0
        %4619 = vmatprep.subr.mxu0 0.0
        %4620 = vmatpush1.msra.mxu0 0.0
        %4621 = vmatprep.subr.mxu0 0.0
        %4622 = vmatpush1.msra.mxu0 0.0
        %4623 = vmatprep.subr.mxu0 0.0
        %4624 = vmatpush1.msra.mxu0 0.0
        %4625 = vmatprep.subr.mxu0 0.0
        %4626 = vmatpush1.msra.mxu0 0.0
        %4627 = vmatprep.subr.mxu0 0.0
        %4628 = vmatpush1.msra.mxu0 0.0
        %4629 = vmatprep.subr.mxu0 0.0
        %4630 = vmatpush1.msra.mxu0 0.0
        %4631 = vmatprep.mubr.f32.mxu0 0.0
        %4632 = vmatmul.mubr.f32.gmra.mrb[0].mxu0 %v4399
        %v4633 = vpop.f32.mrb[0].mxu0
        %v4634 = vadd.f32 0.0, %v4633
        %v4635 = vpop.f32.mrb[0].mxu0
        %v4636 = vadd.f32 0.0, %v4635
        %4637 = vdwg.mxu0
        %4638 = vmatprep.subr.mxu0 %v4365
        %4639 = vmatpush1.msra.mxu0 %v4364
        %4640 = vmatprep.subr.mxu0 %v4373
        %4641 = vmatpush1.msra.mxu0 %v4372
        %4642 = vmatprep.subr.mxu0 %v4381
        %4643 = vmatpush1.msra.mxu0 %v4380
        %4644 = vmatprep.subr.mxu0 %v4389
        %4645 = vmatpush1.msra.mxu0 %v4388
        %4646 = vmatprep.subr.mxu0 %v4423
        %4647 = vmatpush1.msra.mxu0 %v4420
        %4648 = vmatprep.subr.mxu0 0.0
        %4649 = vmatpush1.msra.mxu0 0.0
        %4650 = vmatprep.subr.mxu0 0.0
        %4651 = vmatpush1.msra.mxu0 0.0
        %4652 = vmatprep.subr.mxu0 0.0
        %4653 = vmatpush1.msra.mxu0 0.0
        %4654 = vmatprep.subr.mxu0 0.0
        %4655 = vmatpush1.msra.mxu0 0.0
        %4656 = vmatprep.subr.mxu0 0.0
        %4657 = vmatpush1.msra.mxu0 0.0
        %4658 = vmatprep.subr.mxu0 0.0
        %4659 = vmatpush1.msra.mxu0 0.0
        %4660 = vmatprep.subr.mxu0 0.0
        %4661 = vmatpush1.msra.mxu0 0.0
        %4662 = vmatprep.subr.mxu0 0.0
        %4663 = vmatpush1.msra.mxu0 0.0
        %4664 = vmatprep.subr.mxu0 0.0
        %4665 = vmatpush1.msra.mxu0 0.0
        %4666 = vmatprep.subr.mxu0 0.0
        %4667 = vmatpush1.msra.mxu0 0.0
        %4668 = vmatprep.subr.mxu0 0.0
        %4669 = vmatpush1.msra.mxu0 0.0
        %4670 = vmatprep.subr.mxu0 0.0
        %4671 = vmatpush1.msra.mxu0 0.0
        %4672 = vmatprep.subr.mxu0 0.0
        %4673 = vmatpush1.msra.mxu0 0.0
        %4674 = vmatprep.subr.mxu0 0.0
        %4675 = vmatpush1.msra.mxu0 0.0
        %4676 = vmatprep.subr.mxu0 0.0
        %4677 = vmatpush1.msra.mxu0 0.0
        %4678 = vmatprep.subr.mxu0 0.0
        %4679 = vmatpush1.msra.mxu0 0.0
        %4680 = vmatprep.subr.mxu0 0.0
        %4681 = vmatpush1.msra.mxu0 0.0
        %4682 = vmatprep.subr.mxu0 0.0
        %4683 = vmatpush1.msra.mxu0 0.0
        %4684 = vmatprep.subr.mxu0 0.0
        %4685 = vmatpush1.msra.mxu0 0.0
        %4686 = vmatprep.subr.mxu0 0.0
        %4687 = vmatpush1.msra.mxu0 0.0
        %4688 = vmatprep.subr.mxu0 0.0
        %4689 = vmatpush1.msra.mxu0 0.0
        %4690 = vmatprep.subr.mxu0 0.0
        %4691 = vmatpush1.msra.mxu0 0.0
        %4692 = vmatprep.subr.mxu0 0.0
        %4693 = vmatpush1.msra.mxu0 0.0
        %4694 = vmatprep.subr.mxu0 0.0
        %4695 = vmatpush1.msra.mxu0 0.0
        %4696 = vmatprep.subr.mxu0 0.0
        %4697 = vmatpush1.msra.mxu0 0.0
        %4698 = vmatprep.subr.mxu0 0.0
        %4699 = vmatpush1.msra.mxu0 0.0
        %4700 = vmatprep.subr.mxu0 0.0
        %4701 = vmatpush1.msra.mxu0 0.0
        %4702 = vmatprep.mubr.f32.mxu0 0.0
        %4703 = vmatmul.mubr.f32.gmra.mrb[0].mxu0 %v4399
        %v4704 = vpop.f32.mrb[0].mxu0
        %v4705 = vadd.f32 0.0, %v4704
        %v4706 = vpop.f32.mrb[0].mxu0
        %v4707 = vadd.f32 0.0, %v4706
        %4708 = vdwg.mxu0
        %v4709 = vadd.f32 %v3988, %v4492
        %v4710 = vadd.f32 %v3989, %v4494
        %v4711 = vadd.f32 %v3990, %v4563
        %v4712 = vadd.f32 %v3991, %v4565
        %v4713 = vadd.f32 %v3992, %v4634
        %v4714 = vadd.f32 %v3993, %v4636
        %v4715 = vadd.f32 %v3994, %v4705
        %v4716 = vadd.f32 %v3995, %v4707
        %4717 = vrot.lane.b32.xlu0 %v3238, 39
        %v4718 = vpop.permute.xlu0 %4717
        %4719 = vrot.lane.b32.xlu0 %v3239, 39
        %v4720 = vpop.permute.xlu0 %4719
        %4721 = vrot.lane.b32.xlu0 %v3240, 39
        %v4722 = vpop.permute.xlu0 %4721
        %4723 = vrot.lane.b32.xlu0 %v3241, 39
        %v4724 = vpop.permute.xlu0 %4723
        %4725 = vrot.lane.b32.xlu0 %v3242, 39
        %v4726 = vpop.permute.xlu0 %4725
        %4727 = vrot.lane.b32.xlu0 %v3243, 39
        %v4728 = vpop.permute.xlu0 %4727
        %4729 = vrot.lane.b32.xlu0 %v3244, 39
        %v4730 = vpop.permute.xlu0 %4729
        %4731 = vrot.lane.b32.xlu0 %v3245, 39
        %v4732 = vpop.permute.xlu0 %4731
        %v4733 = vsel %vm1822, %v4730, %v4732
        %v4734 = vsel %vm1822, %v4728, %v4730
        %v4735 = vsel %vm1822, %v4726, %v4728
        %v4736 = vsel %vm1822, %v4724, %v4726
        %v4737 = vsel %vm1822, %v4722, %v4724
        %v4738 = vsel %vm1822, %v4720, %v4722
        %v4739 = vsel %vm1822, %v4718, %v4720
        %v4740 = vsel %vm1822, %v4732, %v4718
        %4741 = vst [vmem:[#allocation2] sm:$0xf] %v4739
        %4742 = vst [vmem:[#allocation2 + $0x8] sm:$0xf] %v4738
        %4743 = vst [vmem:[#allocation2 + $0x10] sm:$0xf] %v4737
        %4744 = vst [vmem:[#allocation2 + $0x18] sm:$0xf] %v4736
        %4745 = vst [vmem:[#allocation2 + $0x20] sm:$0xf] %v4735
        %4746 = vst [vmem:[#allocation2 + $0x28] sm:$0xf] %v4734
        %4747 = vst [vmem:[#allocation2 + $0x30] sm:$0xf] %v4733
        %4748 = vst [vmem:[#allocation2 + $0x38] sm:$0xf] %v4740
        %4749 = vrot.lane.b32.xlu0 %v3238, 38
        %v4750 = vpop.permute.xlu0 %4749
        %4751 = vrot.lane.b32.xlu0 %v3239, 38
        %v4752 = vpop.permute.xlu0 %4751
        %4753 = vrot.lane.b32.xlu0 %v3240, 38
        %v4754 = vpop.permute.xlu0 %4753
        %4755 = vrot.lane.b32.xlu0 %v3241, 38
        %v4756 = vpop.permute.xlu0 %4755
        %4757 = vrot.lane.b32.xlu0 %v3242, 38
        %v4758 = vpop.permute.xlu0 %4757
        %4759 = vrot.lane.b32.xlu0 %v3243, 38
        %v4760 = vpop.permute.xlu0 %4759
        %4761 = vrot.lane.b32.xlu0 %v3244, 38
        %v4762 = vpop.permute.xlu0 %4761
        %4763 = vrot.lane.b32.xlu0 %v3245, 38
        %v4764 = vpop.permute.xlu0 %4763
        %v4765 = vsel %vm1855, %v4762, %v4764
        %v4766 = vsel %vm1855, %v4760, %v4762
        %v4767 = vsel %vm1855, %v4758, %v4760
        %v4768 = vsel %vm1855, %v4756, %v4758
        %v4769 = vsel %vm1855, %v4754, %v4756
        %v4770 = vsel %vm1855, %v4752, %v4754
        %v4771 = vsel %vm1855, %v4750, %v4752
        %v4772 = vsel %vm1855, %v4764, %v4750
        %v4781 = vrot.slane %v4771, 4
        %v4782 = vrot.slane %v4770, 4
        %v4783 = vrot.slane %v4769, 4
        %v4784 = vrot.slane %v4768, 4
        %v4785 = vrot.slane %v4767, 4
        %v4786 = vrot.slane %v4766, 4
        %v4787 = vrot.slane %v4765, 4
        %v4788 = vrot.slane %v4772, 4
        %4797 = vst [vmem:[#allocation2] sm:$0xf0] %v4781
        %4798 = vst [vmem:[#allocation2 + $0x8] sm:$0xf0] %v4782
        %4799 = vst [vmem:[#allocation2 + $0x10] sm:$0xf0] %v4783
        %4800 = vst [vmem:[#allocation2 + $0x18] sm:$0xf0] %v4784
        %4801 = vst [vmem:[#allocation2 + $0x20] sm:$0xf0] %v4785
        %4802 = vst [vmem:[#allocation2 + $0x28] sm:$0xf0] %v4786
        %4803 = vst [vmem:[#allocation2 + $0x30] sm:$0xf0] %v4787
        %4804 = vst [vmem:[#allocation2 + $0x38] sm:$0xf0] %v4788
        %4805 = vrot.lane.b32.xlu0 %v3238, 37
        %v4806 = vpop.permute.xlu0 %4805
        %4807 = vrot.lane.b32.xlu0 %v3239, 37
        %v4808 = vpop.permute.xlu0 %4807
        %4809 = vrot.lane.b32.xlu0 %v3240, 37
        %v4810 = vpop.permute.xlu0 %4809
        %4811 = vrot.lane.b32.xlu0 %v3241, 37
        %v4812 = vpop.permute.xlu0 %4811
        %4813 = vrot.lane.b32.xlu0 %v3242, 37
        %v4814 = vpop.permute.xlu0 %4813
        %4815 = vrot.lane.b32.xlu0 %v3243, 37
        %v4816 = vpop.permute.xlu0 %4815
        %4817 = vrot.lane.b32.xlu0 %v3244, 37
        %v4818 = vpop.permute.xlu0 %4817
        %4819 = vrot.lane.b32.xlu0 %v3245, 37
        %v4820 = vpop.permute.xlu0 %4819
        %v4821 = vsel %vm1912, %v4818, %v4820
        %v4822 = vsel %vm1912, %v4816, %v4818
        %v4823 = vsel %vm1912, %v4814, %v4816
        %v4824 = vsel %vm1912, %v4812, %v4814
        %v4825 = vsel %vm1912, %v4810, %v4812
        %v4826 = vsel %vm1912, %v4808, %v4810
        %v4827 = vsel %vm1912, %v4806, %v4808
        %v4828 = vsel %vm1912, %v4820, %v4806
        %4829 = vst [vmem:[#allocation2 + $0x40] sm:$0xf] %v4827
        %4830 = vst [vmem:[#allocation2 + $0x48] sm:$0xf] %v4826
        %4831 = vst [vmem:[#allocation2 + $0x50] sm:$0xf] %v4825
        %4832 = vst [vmem:[#allocation2 + $0x58] sm:$0xf] %v4824
        %4833 = vst [vmem:[#allocation2 + $0x60] sm:$0xf] %v4823
        %4834 = vst [vmem:[#allocation2 + $0x68] sm:$0xf] %v4822
        %4835 = vst [vmem:[#allocation2 + $0x70] sm:$0xf] %v4821
        %4836 = vst [vmem:[#allocation2 + $0x78] sm:$0xf] %v4828
        %4837 = vrot.lane.b32.xlu0 %v3238, 29
        %v4838 = vpop.permute.xlu0 %4837
        %4839 = vrot.lane.b32.xlu0 %v3239, 29
        %v4840 = vpop.permute.xlu0 %4839
        %4841 = vrot.lane.b32.xlu0 %v3240, 29
        %v4842 = vpop.permute.xlu0 %4841
        %4843 = vrot.lane.b32.xlu0 %v3241, 29
        %v4844 = vpop.permute.xlu0 %4843
        %4845 = vrot.lane.b32.xlu0 %v3242, 29
        %v4846 = vpop.permute.xlu0 %4845
        %4847 = vrot.lane.b32.xlu0 %v3243, 29
        %v4848 = vpop.permute.xlu0 %4847
        %4849 = vrot.lane.b32.xlu0 %v3244, 29
        %v4850 = vpop.permute.xlu0 %4849
        %4851 = vrot.lane.b32.xlu0 %v3245, 29
        %v4852 = vpop.permute.xlu0 %4851
        %v4853 = vsel %vm1945, %v4850, %v4852
        %v4854 = vsel %vm1945, %v4848, %v4850
        %v4855 = vsel %vm1945, %v4846, %v4848
        %v4856 = vsel %vm1945, %v4844, %v4846
        %v4857 = vsel %vm1945, %v4842, %v4844
        %v4858 = vsel %vm1945, %v4840, %v4842
        %v4859 = vsel %vm1945, %v4838, %v4840
        %v4860 = vsel %vm1945, %v4852, %v4838
        %v4869 = vrot.slane %v4859, 4
        %v4870 = vrot.slane %v4858, 4
        %v4871 = vrot.slane %v4857, 4
        %v4872 = vrot.slane %v4856, 4
        %v4873 = vrot.slane %v4855, 4
        %v4874 = vrot.slane %v4854, 4
        %v4875 = vrot.slane %v4853, 4
        %v4876 = vrot.slane %v4860, 4
        %4885 = vst [vmem:[#allocation2 + $0x40] sm:$0xf0] %v4869
        %4886 = vst [vmem:[#allocation2 + $0x48] sm:$0xf0] %v4870
        %4887 = vst [vmem:[#allocation2 + $0x50] sm:$0xf0] %v4871
        %4888 = vst [vmem:[#allocation2 + $0x58] sm:$0xf0] %v4872
        %4889 = vst [vmem:[#allocation2 + $0x60] sm:$0xf0] %v4873
        %4890 = vst [vmem:[#allocation2 + $0x68] sm:$0xf0] %v4874
        %4891 = vst [vmem:[#allocation2 + $0x70] sm:$0xf0] %v4875
        %4892 = vst [vmem:[#allocation2 + $0x78] sm:$0xf0] %v4876
        %4893 = vrot.lane.b32.xlu0 %v3238, 28
        %v4894 = vpop.permute.xlu0 %4893
        %4895 = vrot.lane.b32.xlu0 %v3239, 28
        %v4896 = vpop.permute.xlu0 %4895
        %4897 = vrot.lane.b32.xlu0 %v3240, 28
        %v4898 = vpop.permute.xlu0 %4897
        %4899 = vrot.lane.b32.xlu0 %v3241, 28
        %v4900 = vpop.permute.xlu0 %4899
        %4901 = vrot.lane.b32.xlu0 %v3242, 28
        %v4902 = vpop.permute.xlu0 %4901
        %4903 = vrot.lane.b32.xlu0 %v3243, 28
        %v4904 = vpop.permute.xlu0 %4903
        %4905 = vrot.lane.b32.xlu0 %v3244, 28
        %v4906 = vpop.permute.xlu0 %4905
        %4907 = vrot.lane.b32.xlu0 %v3245, 28
        %v4908 = vpop.permute.xlu0 %4907
        %v4909 = vsel %vm2002, %v4906, %v4908
        %v4910 = vsel %vm2002, %v4904, %v4906
        %v4911 = vsel %vm2002, %v4902, %v4904
        %v4912 = vsel %vm2002, %v4900, %v4902
        %v4913 = vsel %vm2002, %v4898, %v4900
        %v4914 = vsel %vm2002, %v4896, %v4898
        %v4915 = vsel %vm2002, %v4894, %v4896
        %v4916 = vsel %vm2002, %v4908, %v4894
        %4917 = vst [vmem:[#allocation2 + $0x80] sm:$0xf] %v4915
        %4918 = vst [vmem:[#allocation2 + $0x88] sm:$0xf] %v4914
        %4919 = vst [vmem:[#allocation2 + $0x90] sm:$0xf] %v4913
        %4920 = vst [vmem:[#allocation2 + $0x98] sm:$0xf] %v4912
        %4921 = vst [vmem:[#allocation2 + $0xa0] sm:$0xf] %v4911
        %4922 = vst [vmem:[#allocation2 + $0xa8] sm:$0xf] %v4910
        %4923 = vst [vmem:[#allocation2 + $0xb0] sm:$0xf] %v4909
        %4924 = vst [vmem:[#allocation2 + $0xb8] sm:$0xf] %v4916
        %4925 = vrot.lane.b32.xlu0 %v3238, 27
        %v4926 = vpop.permute.xlu0 %4925
        %4927 = vrot.lane.b32.xlu0 %v3239, 27
        %v4928 = vpop.permute.xlu0 %4927
        %4929 = vrot.lane.b32.xlu0 %v3240, 27
        %v4930 = vpop.permute.xlu0 %4929
        %4931 = vrot.lane.b32.xlu0 %v3241, 27
        %v4932 = vpop.permute.xlu0 %4931
        %4933 = vrot.lane.b32.xlu0 %v3242, 27
        %v4934 = vpop.permute.xlu0 %4933
        %4935 = vrot.lane.b32.xlu0 %v3243, 27
        %v4936 = vpop.permute.xlu0 %4935
        %4937 = vrot.lane.b32.xlu0 %v3244, 27
        %v4938 = vpop.permute.xlu0 %4937
        %4939 = vrot.lane.b32.xlu0 %v3245, 27
        %v4940 = vpop.permute.xlu0 %4939
        %v4941 = vsel %vm2035, %v4938, %v4940
        %v4942 = vsel %vm2035, %v4936, %v4938
        %v4943 = vsel %vm2035, %v4934, %v4936
        %v4944 = vsel %vm2035, %v4932, %v4934
        %v4945 = vsel %vm2035, %v4930, %v4932
        %v4946 = vsel %vm2035, %v4928, %v4930
        %v4947 = vsel %vm2035, %v4926, %v4928
        %v4948 = vsel %vm2035, %v4940, %v4926
        %v4957 = vrot.slane %v4947, 4
        %v4958 = vrot.slane %v4946, 4
        %v4959 = vrot.slane %v4945, 4
        %v4960 = vrot.slane %v4944, 4
        %v4961 = vrot.slane %v4943, 4
        %v4962 = vrot.slane %v4942, 4
        %v4963 = vrot.slane %v4941, 4
        %v4964 = vrot.slane %v4948, 4
        %4973 = vst [vmem:[#allocation2 + $0x80] sm:$0xf0] %v4957
        %4974 = vst [vmem:[#allocation2 + $0x88] sm:$0xf0] %v4958
        %4975 = vst [vmem:[#allocation2 + $0x90] sm:$0xf0] %v4959
        %4976 = vst [vmem:[#allocation2 + $0x98] sm:$0xf0] %v4960
        %4977 = vst [vmem:[#allocation2 + $0xa0] sm:$0xf0] %v4961
        %4978 = vst [vmem:[#allocation2 + $0xa8] sm:$0xf0] %v4962
        %4979 = vst [vmem:[#allocation2 + $0xb0] sm:$0xf0] %v4963
        %4980 = vst [vmem:[#allocation2 + $0xb8] sm:$0xf0] %v4964
        %4981 = vrot.lane.b32.xlu0 %v3238, 19
        %v4982 = vpop.permute.xlu0 %4981
        %4983 = vrot.lane.b32.xlu0 %v3239, 19
        %v4984 = vpop.permute.xlu0 %4983
        %4985 = vrot.lane.b32.xlu0 %v3240, 19
        %v4986 = vpop.permute.xlu0 %4985
        %4987 = vrot.lane.b32.xlu0 %v3241, 19
        %v4988 = vpop.permute.xlu0 %4987
        %4989 = vrot.lane.b32.xlu0 %v3242, 19
        %v4990 = vpop.permute.xlu0 %4989
        %4991 = vrot.lane.b32.xlu0 %v3243, 19
        %v4992 = vpop.permute.xlu0 %4991
        %4993 = vrot.lane.b32.xlu0 %v3244, 19
        %v4994 = vpop.permute.xlu0 %4993
        %4995 = vrot.lane.b32.xlu0 %v3245, 19
        %v4996 = vpop.permute.xlu0 %4995
        %v4997 = vsel %vm2092, %v4994, %v4996
        %v4998 = vsel %vm2092, %v4992, %v4994
        %v4999 = vsel %vm2092, %v4990, %v4992
        %v5000 = vsel %vm2092, %v4988, %v4990
        %v5001 = vsel %vm2092, %v4986, %v4988
        %v5002 = vsel %vm2092, %v4984, %v4986
        %v5003 = vsel %vm2092, %v4982, %v4984
        %v5004 = vsel %vm2092, %v4996, %v4982
        %5005 = vst [vmem:[#allocation2 + $0xc0] sm:$0xf] %v5003
        %5006 = vst [vmem:[#allocation2 + $0xc8] sm:$0xf] %v5002
        %5007 = vst [vmem:[#allocation2 + $0xd0] sm:$0xf] %v5001
        %5008 = vst [vmem:[#allocation2 + $0xd8] sm:$0xf] %v5000
        %5009 = vst [vmem:[#allocation2 + $0xe0] sm:$0xf] %v4999
        %5010 = vst [vmem:[#allocation2 + $0xe8] sm:$0xf] %v4998
        %5011 = vst [vmem:[#allocation2 + $0xf0] sm:$0xf] %v4997
        %5012 = vst [vmem:[#allocation2 + $0xf8] sm:$0xf] %v5004
        %5013 = vrot.lane.b32.xlu0 %v3238, 18
        %v5014 = vpop.permute.xlu0 %5013
        %5015 = vrot.lane.b32.xlu0 %v3239, 18
        %v5016 = vpop.permute.xlu0 %5015
        %5017 = vrot.lane.b32.xlu0 %v3240, 18
        %v5018 = vpop.permute.xlu0 %5017
        %5019 = vrot.lane.b32.xlu0 %v3241, 18
        %v5020 = vpop.permute.xlu0 %5019
        %5021 = vrot.lane.b32.xlu0 %v3242, 18
        %v5022 = vpop.permute.xlu0 %5021
        %5023 = vrot.lane.b32.xlu0 %v3243, 18
        %v5024 = vpop.permute.xlu0 %5023
        %5025 = vrot.lane.b32.xlu0 %v3244, 18
        %v5026 = vpop.permute.xlu0 %5025
        %5027 = vrot.lane.b32.xlu0 %v3245, 18
        %v5028 = vpop.permute.xlu0 %5027
        %v5029 = vsel %vm2125, %v5026, %v5028
        %v5030 = vsel %vm2125, %v5024, %v5026
        %v5031 = vsel %vm2125, %v5022, %v5024
        %v5032 = vsel %vm2125, %v5020, %v5022
        %v5033 = vsel %vm2125, %v5018, %v5020
        %v5034 = vsel %vm2125, %v5016, %v5018
        %v5035 = vsel %vm2125, %v5014, %v5016
        %v5036 = vsel %vm2125, %v5028, %v5014
        %v5045 = vrot.slane %v5035, 4
        %v5046 = vrot.slane %v5034, 4
        %v5047 = vrot.slane %v5033, 4
        %v5048 = vrot.slane %v5032, 4
        %v5049 = vrot.slane %v5031, 4
        %v5050 = vrot.slane %v5030, 4
        %v5051 = vrot.slane %v5029, 4
        %v5052 = vrot.slane %v5036, 4
        %5061 = vst [vmem:[#allocation2 + $0xc0] sm:$0xf0] %v5045
        %5062 = vst [vmem:[#allocation2 + $0xc8] sm:$0xf0] %v5046
        %5063 = vst [vmem:[#allocation2 + $0xd0] sm:$0xf0] %v5047
        %5064 = vst [vmem:[#allocation2 + $0xd8] sm:$0xf0] %v5048
        %5065 = vst [vmem:[#allocation2 + $0xe0] sm:$0xf0] %v5049
        %5066 = vst [vmem:[#allocation2 + $0xe8] sm:$0xf0] %v5050
        %5067 = vst [vmem:[#allocation2 + $0xf0] sm:$0xf0] %v5051
        %5068 = vst [vmem:[#allocation2 + $0xf8] sm:$0xf0] %v5052
        %5069 = vrot.lane.b32.xlu0 %v3238, 17
        %v5070 = vpop.permute.xlu0 %5069
        %5071 = vrot.lane.b32.xlu0 %v3239, 17
        %v5072 = vpop.permute.xlu0 %5071
        %5073 = vrot.lane.b32.xlu0 %v3240, 17
        %v5074 = vpop.permute.xlu0 %5073
        %5075 = vrot.lane.b32.xlu0 %v3241, 17
        %v5076 = vpop.permute.xlu0 %5075
        %5077 = vrot.lane.b32.xlu0 %v3242, 17
        %v5078 = vpop.permute.xlu0 %5077
        %5079 = vrot.lane.b32.xlu0 %v3243, 17
        %v5080 = vpop.permute.xlu0 %5079
        %5081 = vrot.lane.b32.xlu0 %v3244, 17
        %v5082 = vpop.permute.xlu0 %5081
        %5083 = vrot.lane.b32.xlu0 %v3245, 17
        %v5084 = vpop.permute.xlu0 %5083
        %v5085 = vsel %vm2182, %v5082, %v5084
        %v5086 = vsel %vm2182, %v5080, %v5082
        %v5087 = vsel %vm2182, %v5078, %v5080
        %v5088 = vsel %vm2182, %v5076, %v5078
        %v5089 = vsel %vm2182, %v5074, %v5076
        %v5090 = vsel %vm2182, %v5072, %v5074
        %v5091 = vsel %vm2182, %v5070, %v5072
        %v5092 = vsel %vm2182, %v5084, %v5070
        %5093 = vst [vmem:[#allocation2 + $0x100] sm:$0xf] %v5091
        %5094 = vst [vmem:[#allocation2 + $0x108] sm:$0xf] %v5090
        %5095 = vst [vmem:[#allocation2 + $0x110] sm:$0xf] %v5089
        %5096 = vst [vmem:[#allocation2 + $0x118] sm:$0xf] %v5088
        %5097 = vst [vmem:[#allocation2 + $0x120] sm:$0xf] %v5087
        %5098 = vst [vmem:[#allocation2 + $0x128] sm:$0xf] %v5086
        %5099 = vst [vmem:[#allocation2 + $0x130] sm:$0xf] %v5085
        %5100 = vst [vmem:[#allocation2 + $0x138] sm:$0xf] %v5092
        %s5101 = scalar_lea.vmem [#allocation6], 8
        %v5102 = vld [vmem:[%s5101] sm:$0xf]
        %v5103 = vld [vmem:[#allocation2] sm:$0xff]
        %v5104 = vld [vmem:[#allocation2 + $0x8] sm:$0xff]
        %v5105 = vld [vmem:[#allocation2 + $0x10] sm:$0xff]
        %v5106 = vld [vmem:[#allocation2 + $0x18] sm:$0xff]
        %v5107 = vld [vmem:[#allocation2 + $0x20] sm:$0xff]
        %v5108 = vld [vmem:[#allocation2 + $0x28] sm:$0xff]
        %v5109 = vld [vmem:[#allocation2 + $0x30] sm:$0xff]
        %v5110 = vld [vmem:[#allocation2 + $0x38] sm:$0xff]
        %v5111 = vld [vmem:[#allocation2 + $0x40] sm:$0xff]
        %v5112 = vld [vmem:[#allocation2 + $0x48] sm:$0xff]
        %v5113 = vld [vmem:[#allocation2 + $0x50] sm:$0xff]
        %v5114 = vld [vmem:[#allocation2 + $0x58] sm:$0xff]
        %v5115 = vld [vmem:[#allocation2 + $0x60] sm:$0xff]
        %v5116 = vld [vmem:[#allocation2 + $0x68] sm:$0xff]
        %v5117 = vld [vmem:[#allocation2 + $0x70] sm:$0xff]
        %v5118 = vld [vmem:[#allocation2 + $0x78] sm:$0xff]
        %v5119 = vld [vmem:[#allocation2 + $0x80] sm:$0xff]
        %v5120 = vld [vmem:[#allocation2 + $0x88] sm:$0xff]
        %v5121 = vld [vmem:[#allocation2 + $0x90] sm:$0xff]
        %v5122 = vld [vmem:[#allocation2 + $0x98] sm:$0xff]
        %v5123 = vld [vmem:[#allocation2 + $0xa0] sm:$0xff]
        %v5124 = vld [vmem:[#allocation2 + $0xa8] sm:$0xff]
        %v5125 = vld [vmem:[#allocation2 + $0xb0] sm:$0xff]
        %v5126 = vld [vmem:[#allocation2 + $0xb8] sm:$0xff]
        %v5127 = vld [vmem:[#allocation2 + $0xc0] sm:$0xff]
        %v5128 = vld [vmem:[#allocation2 + $0xc8] sm:$0xff]
        %v5129 = vld [vmem:[#allocation2 + $0xd0] sm:$0xff]
        %v5130 = vld [vmem:[#allocation2 + $0xd8] sm:$0xff]
        %v5131 = vld [vmem:[#allocation2 + $0xe0] sm:$0xff]
        %v5132 = vld [vmem:[#allocation2 + $0xe8] sm:$0xff]
        %v5133 = vld [vmem:[#allocation2 + $0xf0] sm:$0xff]
        %v5134 = vld [vmem:[#allocation2 + $0xf8] sm:$0xff]
        %v5135 = vld [vmem:[#allocation2 + $0x100] sm:$0xf]
        %v5136 = vld [vmem:[#allocation2 + $0x108] sm:$0xf]
        %v5137 = vld [vmem:[#allocation2 + $0x110] sm:$0xf]
        %v5138 = vld [vmem:[#allocation2 + $0x118] sm:$0xf]
        %v5139 = vld [vmem:[#allocation2 + $0x120] sm:$0xf]
        %v5140 = vld [vmem:[#allocation2 + $0x128] sm:$0xf]
        %v5141 = vld [vmem:[#allocation2 + $0x130] sm:$0xf]
        %v5142 = vld [vmem:[#allocation2 + $0x138] sm:$0xf]
        %v5144 = vsel %vm756, %v5102, 0
        %v5147 = vsel %vm760, %v5135, 0
        %v5150 = vsel %vm760, %v5136, 0
        %v5153 = vsel %vm760, %v5137, 0
        %v5156 = vsel %vm760, %v5138, 0
        %v5159 = vsel %vm760, %v5139, 0
        %v5162 = vsel %vm760, %v5140, 0
        %v5165 = vsel %vm760, %v5141, 0
        %v5168 = vsel %vm760, %v5142, 0
        %5170 = vmatprep.subr.mxu0 %v5104
        %5171 = vmatpush1.msra.mxu0 %v5103
        %5172 = vmatprep.subr.mxu0 %v5112
        %5173 = vmatpush1.msra.mxu0 %v5111
        %5174 = vmatprep.subr.mxu0 %v5120
        %5175 = vmatpush1.msra.mxu0 %v5119
        %5176 = vmatprep.subr.mxu0 %v5128
        %5177 = vmatpush1.msra.mxu0 %v5127
        %5178 = vmatprep.subr.mxu0 %v5150
        %5179 = vmatpush1.msra.mxu0 %v5147
        %5180 = vmatprep.subr.mxu0 0.0
        %5181 = vmatpush1.msra.mxu0 0.0
        %5182 = vmatprep.subr.mxu0 0.0
        %5183 = vmatpush1.msra.mxu0 0.0
        %5184 = vmatprep.subr.mxu0 0.0
        %5185 = vmatpush1.msra.mxu0 0.0
        %5186 = vmatprep.subr.mxu0 0.0
        %5187 = vmatpush1.msra.mxu0 0.0
        %5188 = vmatprep.subr.mxu0 0.0
        %5189 = vmatpush1.msra.mxu0 0.0
        %5190 = vmatprep.subr.mxu0 0.0
        %5191 = vmatpush1.msra.mxu0 0.0
        %5192 = vmatprep.subr.mxu0 0.0
        %5193 = vmatpush1.msra.mxu0 0.0
        %5194 = vmatprep.subr.mxu0 0.0
        %5195 = vmatpush1.msra.mxu0 0.0
        %5196 = vmatprep.subr.mxu0 0.0
        %5197 = vmatpush1.msra.mxu0 0.0
        %5198 = vmatprep.subr.mxu0 0.0
        %5199 = vmatpush1.msra.mxu0 0.0
        %5200 = vmatprep.subr.mxu0 0.0
        %5201 = vmatpush1.msra.mxu0 0.0
        %5202 = vmatprep.subr.mxu0 0.0
        %5203 = vmatpush1.msra.mxu0 0.0
        %5204 = vmatprep.subr.mxu0 0.0
        %5205 = vmatpush1.msra.mxu0 0.0
        %5206 = vmatprep.subr.mxu0 0.0
        %5207 = vmatpush1.msra.mxu0 0.0
        %5208 = vmatprep.subr.mxu0 0.0
        %5209 = vmatpush1.msra.mxu0 0.0
        %5210 = vmatprep.subr.mxu0 0.0
        %5211 = vmatpush1.msra.mxu0 0.0
        %5212 = vmatprep.subr.mxu0 0.0
        %5213 = vmatpush1.msra.mxu0 0.0
        %5214 = vmatprep.subr.mxu0 0.0
        %5215 = vmatpush1.msra.mxu0 0.0
        %5216 = vmatprep.subr.mxu0 0.0
        %5217 = vmatpush1.msra.mxu0 0.0
        %5218 = vmatprep.subr.mxu0 0.0
        %5219 = vmatpush1.msra.mxu0 0.0
        %5220 = vmatprep.subr.mxu0 0.0
        %5221 = vmatpush1.msra.mxu0 0.0
        %5222 = vmatprep.subr.mxu0 0.0
        %5223 = vmatpush1.msra.mxu0 0.0
        %5224 = vmatprep.subr.mxu0 0.0
        %5225 = vmatpush1.msra.mxu0 0.0
        %5226 = vmatprep.subr.mxu0 0.0
        %5227 = vmatpush1.msra.mxu0 0.0
        %5228 = vmatprep.subr.mxu0 0.0
        %5229 = vmatpush1.msra.mxu0 0.0
        %5230 = vmatprep.subr.mxu0 0.0
        %5231 = vmatpush1.msra.mxu0 0.0
        %5232 = vmatprep.subr.mxu0 0.0
        %5233 = vmatpush1.msra.mxu0 0.0
        %5234 = vmatprep.mubr.f32.mxu0 0.0
        %5235 = vmatmul.mubr.f32.gmra.mrb[0].mxu0 %v5144
        %v5236 = vpop.f32.mrb[0].mxu0
        %v5237 = vadd.f32 0.0, %v5236
        %v5238 = vpop.f32.mrb[0].mxu0
        %v5239 = vadd.f32 0.0, %v5238
        %5240 = vdwg.mxu0
        %5241 = vmatprep.subr.mxu0 %v5106
        %5242 = vmatpush1.msra.mxu0 %v5105
        %5243 = vmatprep.subr.mxu0 %v5114
        %5244 = vmatpush1.msra.mxu0 %v5113
        %5245 = vmatprep.subr.mxu0 %v5122
        %5246 = vmatpush1.msra.mxu0 %v5121
        %5247 = vmatprep.subr.mxu0 %v5130
        %5248 = vmatpush1.msra.mxu0 %v5129
        %5249 = vmatprep.subr.mxu0 %v5156
        %5250 = vmatpush1.msra.mxu0 %v5153
        %5251 = vmatprep.subr.mxu0 0.0
        %5252 = vmatpush1.msra.mxu0 0.0
        %5253 = vmatprep.subr.mxu0 0.0
        %5254 = vmatpush1.msra.mxu0 0.0
        %5255 = vmatprep.subr.mxu0 0.0
        %5256 = vmatpush1.msra.mxu0 0.0
        %5257 = vmatprep.subr.mxu0 0.0
        %5258 = vmatpush1.msra.mxu0 0.0
        %5259 = vmatprep.subr.mxu0 0.0
        %5260 = vmatpush1.msra.mxu0 0.0
        %5261 = vmatprep.subr.mxu0 0.0
        %5262 = vmatpush1.msra.mxu0 0.0
        %5263 = vmatprep.subr.mxu0 0.0
        %5264 = vmatpush1.msra.mxu0 0.0
        %5265 = vmatprep.subr.mxu0 0.0
        %5266 = vmatpush1.msra.mxu0 0.0
        %5267 = vmatprep.subr.mxu0 0.0
        %5268 = vmatpush1.msra.mxu0 0.0
        %5269 = vmatprep.subr.mxu0 0.0
        %5270 = vmatpush1.msra.mxu0 0.0
        %5271 = vmatprep.subr.mxu0 0.0
        %5272 = vmatpush1.msra.mxu0 0.0
        %5273 = vmatprep.subr.mxu0 0.0
        %5274 = vmatpush1.msra.mxu0 0.0
        %5275 = vmatprep.subr.mxu0 0.0
        %5276 = vmatpush1.msra.mxu0 0.0
        %5277 = vmatprep.subr.mxu0 0.0
        %5278 = vmatpush1.msra.mxu0 0.0
        %5279 = vmatprep.subr.mxu0 0.0
        %5280 = vmatpush1.msra.mxu0 0.0
        %5281 = vmatprep.subr.mxu0 0.0
        %5282 = vmatpush1.msra.mxu0 0.0
        %5283 = vmatprep.subr.mxu0 0.0
        %5284 = vmatpush1.msra.mxu0 0.0
        %5285 = vmatprep.subr.mxu0 0.0
        %5286 = vmatpush1.msra.mxu0 0.0
        %5287 = vmatprep.subr.mxu0 0.0
        %5288 = vmatpush1.msra.mxu0 0.0
        %5289 = vmatprep.subr.mxu0 0.0
        %5290 = vmatpush1.msra.mxu0 0.0
        %5291 = vmatprep.subr.mxu0 0.0
        %5292 = vmatpush1.msra.mxu0 0.0
        %5293 = vmatprep.subr.mxu0 0.0
        %5294 = vmatpush1.msra.mxu0 0.0
        %5295 = vmatprep.subr.mxu0 0.0
        %5296 = vmatpush1.msra.mxu0 0.0
        %5297 = vmatprep.subr.mxu0 0.0
        %5298 = vmatpush1.msra.mxu0 0.0
        %5299 = vmatprep.subr.mxu0 0.0
        %5300 = vmatpush1.msra.mxu0 0.0
        %5301 = vmatprep.subr.mxu0 0.0
        %5302 = vmatpush1.msra.mxu0 0.0
        %5303 = vmatprep.subr.mxu0 0.0
        %5304 = vmatpush1.msra.mxu0 0.0
        %5305 = vmatprep.mubr.f32.mxu0 0.0
        %5306 = vmatmul.mubr.f32.gmra.mrb[0].mxu0 %v5144
        %v5307 = vpop.f32.mrb[0].mxu0
        %v5308 = vadd.f32 0.0, %v5307
        %v5309 = vpop.f32.mrb[0].mxu0
        %v5310 = vadd.f32 0.0, %v5309
        %5311 = vdwg.mxu0
        %5312 = vmatprep.subr.mxu0 %v5108
        %5313 = vmatpush1.msra.mxu0 %v5107
        %5314 = vmatprep.subr.mxu0 %v5116
        %5315 = vmatpush1.msra.mxu0 %v5115
        %5316 = vmatprep.subr.mxu0 %v5124
        %5317 = vmatpush1.msra.mxu0 %v5123
        %5318 = vmatprep.subr.mxu0 %v5132
        %5319 = vmatpush1.msra.mxu0 %v5131
        %5320 = vmatprep.subr.mxu0 %v5162
        %5321 = vmatpush1.msra.mxu0 %v5159
        %5322 = vmatprep.subr.mxu0 0.0
        %5323 = vmatpush1.msra.mxu0 0.0
        %5324 = vmatprep.subr.mxu0 0.0
        %5325 = vmatpush1.msra.mxu0 0.0
        %5326 = vmatprep.subr.mxu0 0.0
        %5327 = vmatpush1.msra.mxu0 0.0
        %5328 = vmatprep.subr.mxu0 0.0
        %5329 = vmatpush1.msra.mxu0 0.0
        %5330 = vmatprep.subr.mxu0 0.0
        %5331 = vmatpush1.msra.mxu0 0.0
        %5332 = vmatprep.subr.mxu0 0.0
        %5333 = vmatpush1.msra.mxu0 0.0
        %5334 = vmatprep.subr.mxu0 0.0
        %5335 = vmatpush1.msra.mxu0 0.0
        %5336 = vmatprep.subr.mxu0 0.0
        %5337 = vmatpush1.msra.mxu0 0.0
        %5338 = vmatprep.subr.mxu0 0.0
        %5339 = vmatpush1.msra.mxu0 0.0
        %5340 = vmatprep.subr.mxu0 0.0
        %5341 = vmatpush1.msra.mxu0 0.0
        %5342 = vmatprep.subr.mxu0 0.0
        %5343 = vmatpush1.msra.mxu0 0.0
        %5344 = vmatprep.subr.mxu0 0.0
        %5345 = vmatpush1.msra.mxu0 0.0
        %5346 = vmatprep.subr.mxu0 0.0
        %5347 = vmatpush1.msra.mxu0 0.0
        %5348 = vmatprep.subr.mxu0 0.0
        %5349 = vmatpush1.msra.mxu0 0.0
        %5350 = vmatprep.subr.mxu0 0.0
        %5351 = vmatpush1.msra.mxu0 0.0
        %5352 = vmatprep.subr.mxu0 0.0
        %5353 = vmatpush1.msra.mxu0 0.0
        %5354 = vmatprep.subr.mxu0 0.0
        %5355 = vmatpush1.msra.mxu0 0.0
        %5356 = vmatprep.subr.mxu0 0.0
        %5357 = vmatpush1.msra.mxu0 0.0
        %5358 = vmatprep.subr.mxu0 0.0
        %5359 = vmatpush1.msra.mxu0 0.0
        %5360 = vmatprep.subr.mxu0 0.0
        %5361 = vmatpush1.msra.mxu0 0.0
        %5362 = vmatprep.subr.mxu0 0.0
        %5363 = vmatpush1.msra.mxu0 0.0
        %5364 = vmatprep.subr.mxu0 0.0
        %5365 = vmatpush1.msra.mxu0 0.0
        %5366 = vmatprep.subr.mxu0 0.0
        %5367 = vmatpush1.msra.mxu0 0.0
        %5368 = vmatprep.subr.mxu0 0.0
        %5369 = vmatpush1.msra.mxu0 0.0
        %5370 = vmatprep.subr.mxu0 0.0
        %5371 = vmatpush1.msra.mxu0 0.0
        %5372 = vmatprep.subr.mxu0 0.0
        %5373 = vmatpush1.msra.mxu0 0.0
        %5374 = vmatprep.subr.mxu0 0.0
        %5375 = vmatpush1.msra.mxu0 0.0
        %5376 = vmatprep.mubr.f32.mxu0 0.0
        %5377 = vmatmul.mubr.f32.gmra.mrb[0].mxu0 %v5144
        %v5378 = vpop.f32.mrb[0].mxu0
        %v5379 = vadd.f32 0.0, %v5378
        %v5380 = vpop.f32.mrb[0].mxu0
        %v5381 = vadd.f32 0.0, %v5380
        %5382 = vdwg.mxu0
        %5383 = vmatprep.subr.mxu0 %v5110
        %5384 = vmatpush1.msra.mxu0 %v5109
        %5385 = vmatprep.subr.mxu0 %v5118
        %5386 = vmatpush1.msra.mxu0 %v5117
        %5387 = vmatprep.subr.mxu0 %v5126
        %5388 = vmatpush1.msra.mxu0 %v5125
        %5389 = vmatprep.subr.mxu0 %v5134
        %5390 = vmatpush1.msra.mxu0 %v5133
        %5391 = vmatprep.subr.mxu0 %v5168
        %5392 = vmatpush1.msra.mxu0 %v5165
        %5393 = vmatprep.subr.mxu0 0.0
        %5394 = vmatpush1.msra.mxu0 0.0
        %5395 = vmatprep.subr.mxu0 0.0
        %5396 = vmatpush1.msra.mxu0 0.0
        %5397 = vmatprep.subr.mxu0 0.0
        %5398 = vmatpush1.msra.mxu0 0.0
        %5399 = vmatprep.subr.mxu0 0.0
        %5400 = vmatpush1.msra.mxu0 0.0
        %5401 = vmatprep.subr.mxu0 0.0
        %5402 = vmatpush1.msra.mxu0 0.0
        %5403 = vmatprep.subr.mxu0 0.0
        %5404 = vmatpush1.msra.mxu0 0.0
        %5405 = vmatprep.subr.mxu0 0.0
        %5406 = vmatpush1.msra.mxu0 0.0
        %5407 = vmatprep.subr.mxu0 0.0
        %5408 = vmatpush1.msra.mxu0 0.0
        %5409 = vmatprep.subr.mxu0 0.0
        %5410 = vmatpush1.msra.mxu0 0.0
        %5411 = vmatprep.subr.mxu0 0.0
        %5412 = vmatpush1.msra.mxu0 0.0
        %5413 = vmatprep.subr.mxu0 0.0
        %5414 = vmatpush1.msra.mxu0 0.0
        %5415 = vmatprep.subr.mxu0 0.0
        %5416 = vmatpush1.msra.mxu0 0.0
        %5417 = vmatprep.subr.mxu0 0.0
        %5418 = vmatpush1.msra.mxu0 0.0
        %5419 = vmatprep.subr.mxu0 0.0
        %5420 = vmatpush1.msra.mxu0 0.0
        %5421 = vmatprep.subr.mxu0 0.0
        %5422 = vmatpush1.msra.mxu0 0.0
        %5423 = vmatprep.subr.mxu0 0.0
        %5424 = vmatpush1.msra.mxu0 0.0
        %5425 = vmatprep.subr.mxu0 0.0
        %5426 = vmatpush1.msra.mxu0 0.0
        %5427 = vmatprep.subr.mxu0 0.0
        %5428 = vmatpush1.msra.mxu0 0.0
        %5429 = vmatprep.subr.mxu0 0.0
        %5430 = vmatpush1.msra.mxu0 0.0
        %5431 = vmatprep.subr.mxu0 0.0
        %5432 = vmatpush1.msra.mxu0 0.0
        %5433 = vmatprep.subr.mxu0 0.0
        %5434 = vmatpush1.msra.mxu0 0.0
        %5435 = vmatprep.subr.mxu0 0.0
        %5436 = vmatpush1.msra.mxu0 0.0
        %5437 = vmatprep.subr.mxu0 0.0
        %5438 = vmatpush1.msra.mxu0 0.0
        %5439 = vmatprep.subr.mxu0 0.0
        %5440 = vmatpush1.msra.mxu0 0.0
        %5441 = vmatprep.subr.mxu0 0.0
        %5442 = vmatpush1.msra.mxu0 0.0
        %5443 = vmatprep.subr.mxu0 0.0
        %5444 = vmatpush1.msra.mxu0 0.0
        %5445 = vmatprep.subr.mxu0 0.0
        %5446 = vmatpush1.msra.mxu0 0.0
        %5447 = vmatprep.mubr.f32.mxu0 0.0
        %5448 = vmatmul.mubr.f32.gmra.mrb[0].mxu0 %v5144
        %v5449 = vpop.f32.mrb[0].mxu0
        %v5450 = vadd.f32 0.0, %v5449
        %v5451 = vpop.f32.mrb[0].mxu0
        %v5452 = vadd.f32 0.0, %v5451
        %5453 = vdwg.mxu0
        %v5454 = vadd.f32 %v4709, %v5237
        %v5455 = vadd.f32 %v4710, %v5239
        %v5456 = vadd.f32 %v4711, %v5308
        %v5457 = vadd.f32 %v4712, %v5310
        %v5458 = vadd.f32 %v4713, %v5379
        %v5459 = vadd.f32 %v4714, %v5381
        %v5460 = vadd.f32 %v4715, %v5450
        %v5461 = vadd.f32 %v4716, %v5452
        %v5462 = vmul.f32 %v5454, %v2564
        %v5463 = vmul.f32 %v5455, %v2568
        %v5464 = vmul.f32 %v5456, %v2572
        %v5465 = vmul.f32 %v5457, %v2576
        %v5466 = vmul.f32 %v5458, %v2580
        %v5467 = vmul.f32 %v5459, %v2584
        %v5468 = vmul.f32 %v5460, %v2588
        %v5469 = vmul.f32 %v5461, %v2592
        %v5470 = vsel %vm760, %v5462, 0.0
        %v5471 = vsel %vm760, %v5463, 0.0
        %v5472 = vadd.f32 %v5470, %v5471
        %v5473 = vsel %vm760, %v5464, 0.0
        %v5474 = vadd.f32 %v5472, %v5473
        %v5475 = vsel %vm760, %v5465, 0.0
        %v5476 = vadd.f32 %v5474, %v5475
        %v5477 = vsel %vm760, %v5466, 0.0
        %v5478 = vadd.f32 %v5476, %v5477
        %v5479 = vsel %vm760, %v5467, 0.0
        %v5480 = vadd.f32 %v5478, %v5479
        %v5481 = vsel %vm760, %v5468, 0.0
        %v5482 = vadd.f32 %v5480, %v5481
        %v5483 = vsel %vm760, %v5469, 0.0
        %v5484 = vadd.f32 %v5482, %v5483
        %5485 = vadd.xlane.f32.xlu0 %v5484
        %v5486 = vpop.xlane.xlu0 %5485
        %v5487 = vmul.f32 %v5462, %v5454
        %v5488 = vmul.f32 %v5463, %v5455
        %v5489 = vmul.f32 %v5464, %v5456
        %v5490 = vmul.f32 %v5465, %v5457
        %v5491 = vmul.f32 %v5466, %v5458
        %v5492 = vmul.f32 %v5467, %v5459
        %v5493 = vmul.f32 %v5468, %v5460
        %v5494 = vmul.f32 %v5469, %v5461
        %v5495 = vsel %vm760, %v5487, 0.0
        %v5496 = vsel %vm760, %v5488, 0.0
        %v5497 = vadd.f32 %v5495, %v5496
        %v5498 = vsel %vm760, %v5489, 0.0
        %v5499 = vadd.f32 %v5497, %v5498
        %v5500 = vsel %vm760, %v5490, 0.0
        %v5501 = vadd.f32 %v5499, %v5500
        %v5502 = vsel %vm760, %v5491, 0.0
        %v5503 = vadd.f32 %v5501, %v5502
        %v5504 = vsel %vm760, %v5492, 0.0
        %v5505 = vadd.f32 %v5503, %v5504
        %v5506 = vsel %vm760, %v5493, 0.0
        %v5507 = vadd.f32 %v5505, %v5506
        %v5508 = vsel %vm760, %v5494, 0.0
        %v5509 = vadd.f32 %v5507, %v5508
        %5510 = vadd.xlane.f32.xlu0 %v5509
        %v5511 = vpop.xlane.xlu0 %5510
        %v5512 = vmul.f32 %v5486, 0.001953125
        %v5513 = vmul.f32 %v5511, 0.001953125
        %v5514 = vmul.f32 %v5512, %v5512
        %v5515 = vsub.f32 %v5513, %v5514
        %v5516 = vmax.f32 %v5515, 0.0
        %v5517 = vsub.f32 %v5454, %v5512
        %v5518 = vsub.f32 %v5455, %v5512
        %v5519 = vsub.f32 %v5456, %v5512
        %v5520 = vsub.f32 %v5457, %v5512
        %v5521 = vsub.f32 %v5458, %v5512
        %v5522 = vsub.f32 %v5459, %v5512
        %v5523 = vsub.f32 %v5460, %v5512
        %v5524 = vsub.f32 %v5461, %v5512
        %v5525 = vadd.f32 %v5516, 1e-05
        %v5526 = vrsqrt.pop %v5525
        %v5527 = vmul.f32 %v5517, %v5526
        %v5528 = vmul.f32 %v5518, %v5526
        %v5529 = vmul.f32 %v5519, %v5526
        %v5530 = vmul.f32 %v5520, %v5526
        %v5531 = vmul.f32 %v5521, %v5526
        %v5532 = vmul.f32 %v5522, %v5526
        %v5533 = vmul.f32 %v5523, %v5526
        %v5534 = vmul.f32 %v5524, %v5526
        %v5535 = vld [vmem:[%s258] sm:$0xff]
        %v5536 = vld [vmem:[%s258 + $0x8] sm:$0xff]
        %v5537 = vld [vmem:[%s258 + $0x10] sm:$0xff]
        %v5538 = vld [vmem:[%s258 + $0x18] sm:$0xff]
        %v5543 = vcombine.high %v5535, %v5535
        %v5544 = vcombine.high %v5536, %v5536
        %v5545 = vcombine.high %v5537, %v5537
        %v5546 = vcombine.high %v5538, %v5538
        %v5551 = vadd.f32 %v5527, %v5535
        %v5552 = vadd.f32 %v5528, %v5543
        %v5553 = vadd.f32 %v5529, %v5536
        %v5554 = vadd.f32 %v5530, %v5544
        %v5555 = vadd.f32 %v5531, %v5537
        %v5556 = vadd.f32 %v5532, %v5545
        %v5557 = vadd.f32 %v5533, %v5538
        %v5558 = vadd.f32 %v5534, %v5546
        %v5567 = vcombine.low %v5551, %v5552
        %v5568 = vcombine.low %v5553, %v5554
        %v5569 = vcombine.low %v5555, %v5556
        %v5570 = vcombine.low %v5557, %v5558
        %5575 = vst [vmem:[%s294] sm:$0xff] %v5567
        %5576 = vst [vmem:[%s294 + $0x8] sm:$0xff] %v5568
        %5577 = vst [vmem:[%s294 + $0x10] sm:$0xff] %v5569
        %5578 = vst [vmem:[%s294 + $0x18] sm:$0xff] %v5570
        %s5579 = sand.u32 %s163, 1
        %s5580 = scalar_lea.sflag [#allocation5], %s5579
        %s5581 = sand.u32 %s163, 1
        %s5582 = smul.addr %s5581, 32
        %s5583 = scalar_lea.vmem [#allocation9], %s5582
        // Predicated region
        $region57: #{tpu_custom_call.1} parent=43 // pred_check
          %p5584 = pneg %p173
        $region58: #{tpu_custom_call.1} parent=43 // pred_check_branch
          %5586 = sbr.rel (%p5584) target = $region60
        $region59: #{tpu_custom_call.1} parent=43 // pred_region
          %s5588 = ssub.s32 512, 512
          %5589 = vsyncadd %s5580, %s5588
          %s5590 = smul.addr %s24, 8
          %s5591 = smul.addr %s5590, 64
          %s5592 = scalar_lea.hbm %s6, %s5591
          %s5594 = sshll.u32 %s5583, 4
          %s5595 = int_to_ptr.vmem [resolvable:$true] %s5594
          %5597 = dma.vmem_to_hbm [thread:$0]  %s5595, 512, %s5592, %s5580
        $region60: #{tpu_custom_call.1} parent=43 // pred_fallthru
          _
      $region44: #{tpu_custom_call.1} parent=5 // pred_fallthru
        _
      %p5598 = scmp.le.s32.totalorder 2, %s19
      // Predicated region
      $region61: #{tpu_custom_call.1} parent=5 // pred_check
        %p5599 = pneg %p5598
      $region62: #{tpu_custom_call.1} parent=5 // pred_check_branch
        %5601 = sbr.rel (%p5599) target = $region64
      $region63: #{tpu_custom_call.1} parent=5 // pred_region
        %s5602 = ssub.s32 %s19, 2
        // Predicated region
        $region65: #{tpu_custom_call.1} parent=63 // pred_check
          %p5603 = pneg %p179
        $region66: #{tpu_custom_call.1} parent=63 // pred_check_branch
          %5605 = sbr.rel (%p5603) target = $region68
        $region67: #{tpu_custom_call.1} parent=63 // pred_region
          %s5606 = sand.u32 %s164, 1
          %s5607 = scalar_lea.sflag [#allocation5], %s5606
          %s5608 = sand.u32 %s164, 1
          %s5609 = smul.addr %s5608, 32
          %s5610 = scalar_lea.vmem [#allocation9], %s5609
          %5611 = dma.done %s5607, 512
        $region68: #{tpu_custom_call.1} parent=63 // pred_fallthru
          _
      $region64: #{tpu_custom_call.1} parent=5 // pred_fallthru
        _
    $region6: #{tpu_custom_call.1} parent=1 // loop_footer
      %s23 = sadd.s32 1, %s19
    $region7: #{tpu_custom_call.1} parent=1 // loop_footer_branch
      %18 = sbr.rel target = $region3
    $region8: #{tpu_custom_call.1} parent=1 // loop_exit
      _
    %5612 = vsyncpa [#allocation4], 1
    %s5613 = scalar_lea.sflag [#allocation4], 1
    %5614 = vsyncpa %s5613, 1
    %5615 = vsyncpa [#allocation7], 1
    %5616 = vsyncpa [#allocation5], 1
    %s5617 = scalar_lea.sflag [#allocation5], 1
    %5618 = vsyncpa %s5617, 1

</llo_original>
